<compile_context>
chip_gen: v7x
topology: tpu7x:2x2x1
jax: 0.10.0
libtpu: 0.0.40
codegen_flags: <defaults>
</compile_context>

<pallas_src>
import functools

import jax
import jax.numpy as jnp
from jax.experimental import pallas as pl
from jax.experimental.pallas import tpu as pltpu


def _full_spec(shape):
    nd = len(shape)
    return pl.BlockSpec(shape, lambda i, _nd=nd: (0,) * _nd)


# ---------------------------------------------------------------------------
# Fully fused kernel: conv -> fc1 -> fc2 -> masked GRU cell -> LayerNorm -> v_out
# ---------------------------------------------------------------------------
def _r_critic_kernel(obs_ref, h_ref, m_ref,
                     wc_ref, bc_ref,
                     w1_ref, b1_ref, w2_ref, b2_ref,
                     wir_ref, wiz_ref, win_ref,
                     whr_ref, whz_ref, whn_ref,
                     br_ref, bz_ref, bni_ref, bnh_ref,
                     lng_ref, lnb_ref, wv_ref, bv_ref,
                     h_out_ref, v_ref,
                     *, B, Ww, K, HW, cout, eps):
    BHW = B * HW

    # --- 3x3 'valid' conv: in-kernel im2col via 9 statically shifted lane views of
    #     the flattened obs (loaded from VMEM once), 9 accumulated MXU matmuls.
    #     Invalid output positions contain finite garbage that is killed later by
    #     zero rows in fc1_w, so no masking is needed.
    x_all = obs_ref[...]                                       # (C, PADW) f32
    acc = jnp.zeros((cout, BHW), jnp.float32)
    for kh in range(K):
        for kw in range(K):
            off = kh * Ww + kw
            t = kh * K + kw
            w_t = wc_ref[t * cout:(t + 1) * cout, :]           # (cout, C)   tile-aligned rows
            x_t = x_all[:, off:off + BHW]                      # (C, BHW)    static lane window
            acc = acc + jnp.dot(w_t, x_t, preferred_element_type=jnp.float32)
    a = jnp.maximum(acc + bc_ref[...], 0.0).astype(jnp.bfloat16)   # (cout, BHW) lane-dense

    # --- fc1: per-sample contraction of (cout, HW) against (cout, HW, hidden) weights
    #     (zero rows at invalid spatial positions). Pure major-dim / 128-aligned slices.
    rows = []
    for b in range(B):
        a_b = a[:, b * HW:(b + 1) * HW]                        # (cout, HW), 128-aligned slice
        y_b = b1_ref[...]                                      # (1, hidden) f32
        for co in range(cout):
            y_b = y_b + jnp.dot(a_b[co:co + 1, :], w1_ref[co],
                                preferred_element_type=jnp.float32)
        rows.append(jnp.maximum(y_b, 0.0))
    feat = jnp.concatenate(rows, axis=0)                       # (B, hidden)

    # --- fc2 + ReLU (bf16 operands, f32 accumulate)
    y2 = jnp.dot(feat.astype(jnp.bfloat16), w2_ref[...],
                 preferred_element_type=jnp.float32) + b2_ref[...]
    feat2 = jnp.maximum(y2, 0.0)                               # (B, hidden)

    # --- masked GRU cell: three lane-aligned gate matmuls per operand (no intra-vreg
    #     gate slicing); gate math in f32; PyTorch nn.GRU equations.
    h = h_ref[...] * m_ref[...]                                # mask-reset state, (B, H)
    xb = feat2.astype(jnp.bfloat16)
    hb = h.astype(jnp.bfloat16)

    def mm(lhs, w_ref):
        return jnp.dot(lhs, w_ref[...], preferred_element_type=jnp.float32)

    r = jax.nn.sigmoid(mm(xb, wir_ref) + mm(hb, whr_ref) + br_ref[...])
    z = jax.nn.sigmoid(mm(xb, wiz_ref) + mm(hb, whz_ref) + bz_ref[...])
    n = jnp.tanh(mm(xb, win_ref) + bni_ref[...] + r * (mm(hb, whn_ref) + bnh_ref[...]))
    h_new = (1.0 - z) * n + z * h                              # (B, H)
    h_out_ref[...] = h_new

    # --- LayerNorm on the GRU output (critic features)
    mean = jnp.mean(h_new, axis=-1, keepdims=True)
    c = h_new - mean
    var = jnp.mean(c * c, axis=-1, keepdims=True)
    ln = c * jax.lax.rsqrt(var + eps) * lng_ref[...] + lnb_ref[...]

    # --- value head on batch row 0 as a VPU multiply-reduce (no MXU push for (1,H)@(H,1))
    v = jnp.sum(ln[0:1, :] * wv_ref[...], axis=-1, keepdims=True) + bv_ref[...]
    v_ref[...] = v                                             # (1, 1)


# ---------------------------------------------------------------------------
# Parameters (deterministic synthetic init; biases zero like init_(constant_ 0))
# ---------------------------------------------------------------------------
def init_params(key, obs_shape, hidden):
    C, Hh, Ww = obs_shape
    K = 3
    OH, OW = Hh - K + 1, Ww - K + 1
    HW = Hh * Ww
    cout = hidden // 2
    keys = jax.random.split(key, 10)

    def w(kk, shape, scale):
        return scale * jax.random.normal(kk, shape, jnp.float32)

    # Conv weight in tap-major row order: rows [t*cout:(t+1)*cout] hold w[:, :, kh, kw]
    # for tap t = kh*K + kw, matching the in-kernel shifted-view accumulation order.
    conv_w = w(keys[0], (cout, C, K, K), 0.1)
    conv_w_taps = jnp.transpose(conv_w, (2, 3, 0, 1)).reshape(K * K * cout, C)

    # fc1 weight laid out (cout, Hh*Ww, hidden) with ZERO rows at spatial positions that
    # are not valid 'valid'-conv outputs.  Valid rows are the (offline, init-time)
    # permutation of the PyTorch Flatten (c, oh, ow) row order. Stored bf16 (f32 accum).
    w1_core = w(keys[1], (cout, OH, OW, hidden), 0.02)
    w1_full = jnp.pad(w1_core, ((0, 0), (0, Hh - OH), (0, Ww - OW), (0, 0)))
    fc1_w = w1_full.reshape(cout, HW, hidden).astype(jnp.bfloat16)

    return dict(
        conv_w=conv_w_taps,
        conv_b=jnp.zeros((cout, 1), jnp.float32),
        fc1_w=fc1_w,
        fc1_b=jnp.zeros((1, hidden), jnp.float32),
        fc2_w=w(keys[2], (hidden, hidden), 0.1).astype(jnp.bfloat16),
        fc2_b=jnp.zeros((1, hidden), jnp.float32),
        # Separate lane-aligned GRU gate matrices, stored (in_features, hidden), bf16.
        gru_w_ir=w(keys[3], (hidden, hidden), 0.1).astype(jnp.bfloat16),
        gru_w_iz=w(keys[4], (hidden, hidden), 0.1).astype(jnp.bfloat16),
        gru_w_in=w(keys[5], (hidden, hidden), 0.1).astype(jnp.bfloat16),
        gru_w_hr=w(keys[6], (hidden, hidden), 0.1).astype(jnp.bfloat16),
        gru_w_hz=w(keys[7], (hidden, hidden), 0.1).astype(jnp.bfloat16),
        gru_w_hn=w(keys[8], (hidden, hidden), 0.1).astype(jnp.bfloat16),
        gru_b_r=jnp.zeros((1, hidden), jnp.float32),   # b_ir + b_hr (folded)
        gru_b_z=jnp.zeros((1, hidden), jnp.float32),   # b_iz + b_hz (folded)
        gru_b_in=jnp.zeros((1, hidden), jnp.float32),
        gru_b_hn=jnp.zeros((1, hidden), jnp.float32),
        ln_g=jnp.ones((1, hidden), jnp.float32),
        ln_b=jnp.zeros((1, hidden), jnp.float32),
        vout_w=w(keys[9], (1, hidden), 0.1),
        vout_b=jnp.zeros((1, 1), jnp.float32),
    )


# ---------------------------------------------------------------------------
# Forward pass (R_Critic.forward semantics), one pallas_call
# ---------------------------------------------------------------------------
def r_critic_forward(params, cent_obs, rnn_states, masks, *, hidden):
    cent_obs = cent_obs.astype(jnp.float32)
    rnn_states = rnn_states.astype(jnp.float32)
    masks = masks.astype(jnp.float32)

    B, C, Hh, Ww = cent_obs.shape
    K = 3
    HW = Hh * Ww
    BHW = B * HW
    cout = hidden // 2

    # Lane-flatten the obs (contiguous, free in XLA) and zero-pad the lane axis so the
    # in-kernel shifted tap views never read out of bounds. Garbage / cross-batch reads
    # only land on positions whose fc1 rows are zero.
    max_off = (K - 1) * Ww + (K - 1)
    PADW = BHW + ((max_off + 127) // 128) * 128
    obs_cat = jnp.transpose(cent_obs, (1, 0, 2, 3)).reshape(C, BHW)
    obs_pad = jnp.pad(obs_cat, ((0, 0), (0, PADW - BHW)))

    h_prev = rnn_states[:, 0, :]                         # recurrent_N == 1

    args = (obs_pad, h_prev, masks,
            params["conv_w"], params["conv_b"],
            params["fc1_w"], params["fc1_b"], params["fc2_w"], params["fc2_b"],
            params["gru_w_ir"], params["gru_w_iz"], params["gru_w_in"],
            params["gru_w_hr"], params["gru_w_hz"], params["gru_w_hn"],
            params["gru_b_r"], params["gru_b_z"], params["gru_b_in"], params["gru_b_hn"],
            params["ln_g"], params["ln_b"], params["vout_w"], params["vout_b"])

    kernel = functools.partial(_r_critic_kernel, B=B, Ww=Ww, K=K, HW=HW,
                               cout=cout, eps=1e-5)

    h_new, values = pl.pallas_call(
        kernel,
        out_shape=(jax.ShapeDtypeStruct((B, hidden), jnp.float32),
                   jax.ShapeDtypeStruct((1, 1), jnp.float32)),
        grid=(1,),
        in_specs=[_full_spec(a.shape) for a in args],
        out_specs=(_full_spec((B, hidden)), _full_spec((1, 1))),
        compiler_params=pltpu.CompilerParams(dimension_semantics=("arbitrary",)),
    )(*args)

    new_rnn_states = h_new[:, None, :]                   # (B, recurrent_N, hidden)
    return values.reshape(1), new_rnn_states


# ---------------------------------------------------------------------------
if __name__ == "__main__":
    hidden_size = 32
    B, C, Hh, Ww = 2, 4, 16, 16
    recurrent_N = 1

    key = jax.random.PRNGKey(0)
    kp, ko, kr = jax.random.split(key, 3)
    params = init_params(kp, (C, Hh, Ww), hidden_size)
    cent_obs = jax.random.normal(ko, (B, C, Hh, Ww), jnp.float32)
    rnn_states = jax.random.normal(kr, (B, recurrent_N, hidden_size), jnp.float32)
    masks = jnp.ones((B, 1), jnp.float32)

    fwd = jax.jit(functools.partial(r_critic_forward, hidden=hidden_size))
    values, new_rnn_states = fwd(params, cent_obs, rnn_states, masks)
    jax.block_until_ready((values, new_rnn_states))

    assert values.shape == (1,)
    assert new_rnn_states.shape == (B, recurrent_N, hidden_size)
    assert bool(jnp.all(jnp.isfinite(values)))
    assert bool(jnp.all(jnp.isfinite(new_rnn_states)))
    print("KERNEL_OK")
</pallas_src>

<mosaic_0001>
module attributes {stable_mosaic.version = 11 : i64} {
  func.func @_r_critic_kernel(%arg0: i32, %arg1: memref<4x640xf32, #tpu.memory_space<vmem>>, %arg2: memref<2x32xf32, #tpu.memory_space<vmem>>, %arg3: memref<2x1xf32, #tpu.memory_space<vmem>>, %arg4: memref<144x4xf32, #tpu.memory_space<vmem>>, %arg5: memref<16x1xf32, #tpu.memory_space<vmem>>, %arg6: memref<16x256x32xbf16, #tpu.memory_space<vmem>>, %arg7: memref<1x32xf32, #tpu.memory_space<vmem>>, %arg8: memref<32x32xbf16, #tpu.memory_space<vmem>>, %arg9: memref<1x32xf32, #tpu.memory_space<vmem>>, %arg10: memref<32x32xbf16, #tpu.memory_space<vmem>>, %arg11: memref<32x32xbf16, #tpu.memory_space<vmem>>, %arg12: memref<32x32xbf16, #tpu.memory_space<vmem>>, %arg13: memref<32x32xbf16, #tpu.memory_space<vmem>>, %arg14: memref<32x32xbf16, #tpu.memory_space<vmem>>, %arg15: memref<32x32xbf16, #tpu.memory_space<vmem>>, %arg16: memref<1x32xf32, #tpu.memory_space<vmem>>, %arg17: memref<1x32xf32, #tpu.memory_space<vmem>>, %arg18: memref<1x32xf32, #tpu.memory_space<vmem>>, %arg19: memref<1x32xf32, #tpu.memory_space<vmem>>, %arg20: memref<1x32xf32, #tpu.memory_space<vmem>>, %arg21: memref<1x32xf32, #tpu.memory_space<vmem>>, %arg22: memref<1x32xf32, #tpu.memory_space<vmem>>, %arg23: memref<1x1xf32, #tpu.memory_space<vmem>>, %arg24: memref<2x32xf32, #tpu.memory_space<vmem>>, %arg25: memref<1x1xf32, #tpu.memory_space<vmem>>) attributes {dimension_semantics = [#tpu.dimension_semantics<arbitrary>], iteration_bounds = array<i64: 1>, scalar_prefetch = 0 : i64, scratch_operands = 0 : i64, tpu.core_type = #tpu.core_type<tc>, window_params = [{pipeline_mode = #tpu.pipeline_mode<synchronous>, transform_indices = @transform_0, window_bounds = array<i64: 4, 640>}, {pipeline_mode = #tpu.pipeline_mode<synchronous>, transform_indices = @transform_1, window_bounds = array<i64: 2, 32>}, {pipeline_mode = #tpu.pipeline_mode<synchronous>, transform_indices = @transform_2, window_bounds = array<i64: 2, 1>}, {pipeline_mode = #tpu.pipeline_mode<synchronous>, transform_indices = @transform_3, window_bounds = array<i64: 144, 4>}, {pipeline_mode = #tpu.pipeline_mode<synchronous>, transform_indices = @transform_4, window_bounds = array<i64: 16, 1>}, {pipeline_mode = #tpu.pipeline_mode<synchronous>, transform_indices = @transform_5, window_bounds = array<i64: 16, 256, 32>}, {pipeline_mode = #tpu.pipeline_mode<synchronous>, transform_indices = @transform_6, window_bounds = array<i64: 1, 32>}, {pipeline_mode = #tpu.pipeline_mode<synchronous>, transform_indices = @transform_7, window_bounds = array<i64: 32, 32>}, {pipeline_mode = #tpu.pipeline_mode<synchronous>, transform_indices = @transform_8, window_bounds = array<i64: 1, 32>}, {pipeline_mode = #tpu.pipeline_mode<synchronous>, transform_indices = @transform_9, window_bounds = array<i64: 32, 32>}, {pipeline_mode = #tpu.pipeline_mode<synchronous>, transform_indices = @transform_10, window_bounds = array<i64: 32, 32>}, {pipeline_mode = #tpu.pipeline_mode<synchronous>, transform_indices = @transform_11, window_bounds = array<i64: 32, 32>}, {pipeline_mode = #tpu.pipeline_mode<synchronous>, transform_indices = @transform_12, window_bounds = array<i64: 32, 32>}, {pipeline_mode = #tpu.pipeline_mode<synchronous>, transform_indices = @transform_13, window_bounds = array<i64: 32, 32>}, {pipeline_mode = #tpu.pipeline_mode<synchronous>, transform_indices = @transform_14, window_bounds = array<i64: 32, 32>}, {pipeline_mode = #tpu.pipeline_mode<synchronous>, transform_indices = @transform_15, window_bounds = array<i64: 1, 32>}, {pipeline_mode = #tpu.pipeline_mode<synchronous>, transform_indices = @transform_16, window_bounds = array<i64: 1, 32>}, {pipeline_mode = #tpu.pipeline_mode<synchronous>, transform_indices = @transform_17, window_bounds = array<i64: 1, 32>}, {pipeline_mode = #tpu.pipeline_mode<synchronous>, transform_indices = @transform_18, window_bounds = array<i64: 1, 32>}, {pipeline_mode = #tpu.pipeline_mode<synchronous>, transform_indices = @transform_19, window_bounds = array<i64: 1, 32>}, {pipeline_mode = #tpu.pipeline_mode<synchronous>, transform_indices = @transform_20, window_bounds = array<i64: 1, 32>}, {pipeline_mode = #tpu.pipeline_mode<synchronous>, transform_indices = @transform_21, window_bounds = array<i64: 1, 32>}, {pipeline_mode = #tpu.pipeline_mode<synchronous>, transform_indices = @transform_22, window_bounds = array<i64: 1, 1>}, {pipeline_mode = #tpu.pipeline_mode<synchronous>, transform_indices = @transform_23, window_bounds = array<i64: 2, 32>}, {pipeline_mode = #tpu.pipeline_mode<synchronous>, transform_indices = @transform_24, window_bounds = array<i64: 1, 1>}]} {
    %c0 = arith.constant 0 : index
    %c0_0 = arith.constant 0 : index
    %0 = vector.load %arg1[%c0, %c0_0] : memref<4x640xf32, #tpu.memory_space<vmem>>, vector<4x640xf32>
    %cst = arith.constant 0.000000e+00 : f32
    %1 = vector.broadcast %cst : f32 to vector<16x512xf32>
    %c0_1 = arith.constant 0 : index
    %c0_2 = arith.constant 0 : index
    %2 = vector.load %arg4[%c0_1, %c0_2] : memref<144x4xf32, #tpu.memory_space<vmem>>, vector<16x4xf32>
    %3 = vector.extract_strided_slice %0 {offsets = [0, 0], sizes = [4, 512], strides = [1, 1]} : vector<4x640xf32> to vector<4x512xf32>
    %cst_3 = arith.constant dense<0.000000e+00> : vector<16x512xf32>
    %4 = tpu.matmul %2, %3, %cst_3 {dimension_numbers = #tpu.dot_dimension_numbers<[1], [0], [0], [1], [0, 0, 1, 1], [], []>} : vector<16x4xf32>, vector<4x512xf32>, vector<16x512xf32> -> vector<16x512xf32>
    %5 = arith.addf %1, %4 : vector<16x512xf32>
    %c16 = arith.constant 16 : index
    %c0_4 = arith.constant 0 : index
    %6 = vector.load %arg4[%c16, %c0_4] : memref<144x4xf32, #tpu.memory_space<vmem>>, vector<16x4xf32>
    %7 = vector.extract_strided_slice %0 {offsets = [0, 1], sizes = [4, 512], strides = [1, 1]} : vector<4x640xf32> to vector<4x512xf32>
    %cst_5 = arith.constant dense<0.000000e+00> : vector<16x512xf32>
    %8 = tpu.matmul %6, %7, %cst_5 {dimension_numbers = #tpu.dot_dimension_numbers<[1], [0], [0], [1], [0, 0, 1, 1], [], []>} : vector<16x4xf32>, vector<4x512xf32>, vector<16x512xf32> -> vector<16x512xf32>
    %9 = arith.addf %5, %8 : vector<16x512xf32>
    %c32 = arith.constant 32 : index
    %c0_6 = arith.constant 0 : index
    %10 = vector.load %arg4[%c32, %c0_6] : memref<144x4xf32, #tpu.memory_space<vmem>>, vector<16x4xf32>
    %11 = vector.extract_strided_slice %0 {offsets = [0, 2], sizes = [4, 512], strides = [1, 1]} : vector<4x640xf32> to vector<4x512xf32>
    %cst_7 = arith.constant dense<0.000000e+00> : vector<16x512xf32>
    %12 = tpu.matmul %10, %11, %cst_7 {dimension_numbers = #tpu.dot_dimension_numbers<[1], [0], [0], [1], [0, 0, 1, 1], [], []>} : vector<16x4xf32>, vector<4x512xf32>, vector<16x512xf32> -> vector<16x512xf32>
    %13 = arith.addf %9, %12 : vector<16x512xf32>
    %c48 = arith.constant 48 : index
    %c0_8 = arith.constant 0 : index
    %14 = vector.load %arg4[%c48, %c0_8] : memref<144x4xf32, #tpu.memory_space<vmem>>, vector<16x4xf32>
    %15 = vector.extract_strided_slice %0 {offsets = [0, 16], sizes = [4, 512], strides = [1, 1]} : vector<4x640xf32> to vector<4x512xf32>
    %cst_9 = arith.constant dense<0.000000e+00> : vector<16x512xf32>
    %16 = tpu.matmul %14, %15, %cst_9 {dimension_numbers = #tpu.dot_dimension_numbers<[1], [0], [0], [1], [0, 0, 1, 1], [], []>} : vector<16x4xf32>, vector<4x512xf32>, vector<16x512xf32> -> vector<16x512xf32>
    %17 = arith.addf %13, %16 : vector<16x512xf32>
    %c64 = arith.constant 64 : index
    %c0_10 = arith.constant 0 : index
    %18 = vector.load %arg4[%c64, %c0_10] : memref<144x4xf32, #tpu.memory_space<vmem>>, vector<16x4xf32>
    %19 = vector.extract_strided_slice %0 {offsets = [0, 17], sizes = [4, 512], strides = [1, 1]} : vector<4x640xf32> to vector<4x512xf32>
    %cst_11 = arith.constant dense<0.000000e+00> : vector<16x512xf32>
    %20 = tpu.matmul %18, %19, %cst_11 {dimension_numbers = #tpu.dot_dimension_numbers<[1], [0], [0], [1], [0, 0, 1, 1], [], []>} : vector<16x4xf32>, vector<4x512xf32>, vector<16x512xf32> -> vector<16x512xf32>
    %21 = arith.addf %17, %20 : vector<16x512xf32>
    %c80 = arith.constant 80 : index
    %c0_12 = arith.constant 0 : index
    %22 = vector.load %arg4[%c80, %c0_12] : memref<144x4xf32, #tpu.memory_space<vmem>>, vector<16x4xf32>
    %23 = vector.extract_strided_slice %0 {offsets = [0, 18], sizes = [4, 512], strides = [1, 1]} : vector<4x640xf32> to vector<4x512xf32>
    %cst_13 = arith.constant dense<0.000000e+00> : vector<16x512xf32>
    %24 = tpu.matmul %22, %23, %cst_13 {dimension_numbers = #tpu.dot_dimension_numbers<[1], [0], [0], [1], [0, 0, 1, 1], [], []>} : vector<16x4xf32>, vector<4x512xf32>, vector<16x512xf32> -> vector<16x512xf32>
    %25 = arith.addf %21, %24 : vector<16x512xf32>
    %c96 = arith.constant 96 : index
    %c0_14 = arith.constant 0 : index
    %26 = vector.load %arg4[%c96, %c0_14] : memref<144x4xf32, #tpu.memory_space<vmem>>, vector<16x4xf32>
    %27 = vector.extract_strided_slice %0 {offsets = [0, 32], sizes = [4, 512], strides = [1, 1]} : vector<4x640xf32> to vector<4x512xf32>
    %cst_15 = arith.constant dense<0.000000e+00> : vector<16x512xf32>
    %28 = tpu.matmul %26, %27, %cst_15 {dimension_numbers = #tpu.dot_dimension_numbers<[1], [0], [0], [1], [0, 0, 1, 1], [], []>} : vector<16x4xf32>, vector<4x512xf32>, vector<16x512xf32> -> vector<16x512xf32>
    %29 = arith.addf %25, %28 : vector<16x512xf32>
    %c112 = arith.constant 112 : index
    %c0_16 = arith.constant 0 : index
    %30 = vector.load %arg4[%c112, %c0_16] : memref<144x4xf32, #tpu.memory_space<vmem>>, vector<16x4xf32>
    %31 = vector.extract_strided_slice %0 {offsets = [0, 33], sizes = [4, 512], strides = [1, 1]} : vector<4x640xf32> to vector<4x512xf32>
    %cst_17 = arith.constant dense<0.000000e+00> : vector<16x512xf32>
    %32 = tpu.matmul %30, %31, %cst_17 {dimension_numbers = #tpu.dot_dimension_numbers<[1], [0], [0], [1], [0, 0, 1, 1], [], []>} : vector<16x4xf32>, vector<4x512xf32>, vector<16x512xf32> -> vector<16x512xf32>
    %33 = arith.addf %29, %32 : vector<16x512xf32>
    %c128 = arith.constant 128 : index
    %c0_18 = arith.constant 0 : index
    %34 = vector.load %arg4[%c128, %c0_18] : memref<144x4xf32, #tpu.memory_space<vmem>>, vector<16x4xf32>
    %35 = vector.extract_strided_slice %0 {offsets = [0, 34], sizes = [4, 512], strides = [1, 1]} : vector<4x640xf32> to vector<4x512xf32>
    %cst_19 = arith.constant dense<0.000000e+00> : vector<16x512xf32>
    %36 = tpu.matmul %34, %35, %cst_19 {dimension_numbers = #tpu.dot_dimension_numbers<[1], [0], [0], [1], [0, 0, 1, 1], [], []>} : vector<16x4xf32>, vector<4x512xf32>, vector<16x512xf32> -> vector<16x512xf32>
    %37 = arith.addf %33, %36 : vector<16x512xf32>
    %c0_20 = arith.constant 0 : index
    %c0_21 = arith.constant 0 : index
    %38 = vector.load %arg5[%c0_20, %c0_21] : memref<16x1xf32, #tpu.memory_space<vmem>>, vector<16x1xf32>
    %39 = vector.broadcast %38 : vector<16x1xf32> to vector<16x512xf32>
    %40 = arith.addf %37, %39 : vector<16x512xf32>
    %cst_22 = arith.constant 0.000000e+00 : f32
    %41 = vector.broadcast %cst_22 : f32 to vector<16x512xf32>
    %42 = arith.maximumf %40, %41 : vector<16x512xf32>
    %43 = arith.truncf %42 : vector<16x512xf32> to vector<16x512xbf16>
    %44 = vector.extract_strided_slice %43 {offsets = [0, 0], sizes = [16, 256], strides = [1, 1]} : vector<16x512xbf16> to vector<16x256xbf16>
    %c0_23 = arith.constant 0 : index
    %c0_24 = arith.constant 0 : index
    %45 = vector.load %arg7[%c0_23, %c0_24] : memref<1x32xf32, #tpu.memory_space<vmem>>, vector<1x32xf32>
    %46 = vector.extract_strided_slice %44 {offsets = [0, 0], sizes = [1, 256], strides = [1, 1]} : vector<16x256xbf16> to vector<1x256xbf16>
    %c0_25 = arith.constant 0 : index
    %c0_26 = arith.constant 0 : index
    %c0_27 = arith.constant 0 : index
    %47 = vector.load %arg6[%c0_25, %c0_26, %c0_27] : memref<16x256x32xbf16, #tpu.memory_space<vmem>>, vector<1x256x32xbf16>
    %48 = vector.shape_cast %47 : vector<1x256x32xbf16> to vector<256x32xbf16>
    %cst_28 = arith.constant dense<0.000000e+00> : vector<1x32xf32>
    %49 = tpu.matmul %46, %48, %cst_28 {dimension_numbers = #tpu.dot_dimension_numbers<[1], [0], [0], [1], [0, 0, 1, 1], [], []>} : vector<1x256xbf16>, vector<256x32xbf16>, vector<1x32xf32> -> vector<1x32xf32>
    %50 = arith.addf %45, %49 : vector<1x32xf32>
    %51 = vector.extract_strided_slice %44 {offsets = [1, 0], sizes = [1, 256], strides = [1, 1]} : vector<16x256xbf16> to vector<1x256xbf16>
    %c1 = arith.constant 1 : index
    %c0_29 = arith.constant 0 : index
    %c0_30 = arith.constant 0 : index
    %52 = vector.load %arg6[%c1, %c0_29, %c0_30] : memref<16x256x32xbf16, #tpu.memory_space<vmem>>, vector<1x256x32xbf16>
    %53 = vector.shape_cast %52 : vector<1x256x32xbf16> to vector<256x32xbf16>
    %cst_31 = arith.constant dense<0.000000e+00> : vector<1x32xf32>
    %54 = tpu.matmul %51, %53, %cst_31 {dimension_numbers = #tpu.dot_dimension_numbers<[1], [0], [0], [1], [0, 0, 1, 1], [], []>} : vector<1x256xbf16>, vector<256x32xbf16>, vector<1x32xf32> -> vector<1x32xf32>
    %55 = arith.addf %50, %54 : vector<1x32xf32>
    %56 = vector.extract_strided_slice %44 {offsets = [2, 0], sizes = [1, 256], strides = [1, 1]} : vector<16x256xbf16> to vector<1x256xbf16>
    %c2 = arith.constant 2 : index
    %c0_32 = arith.constant 0 : index
    %c0_33 = arith.constant 0 : index
    %57 = vector.load %arg6[%c2, %c0_32, %c0_33] : memref<16x256x32xbf16, #tpu.memory_space<vmem>>, vector<1x256x32xbf16>
    %58 = vector.shape_cast %57 : vector<1x256x32xbf16> to vector<256x32xbf16>
    %cst_34 = arith.constant dense<0.000000e+00> : vector<1x32xf32>
    %59 = tpu.matmul %56, %58, %cst_34 {dimension_numbers = #tpu.dot_dimension_numbers<[1], [0], [0], [1], [0, 0, 1, 1], [], []>} : vector<1x256xbf16>, vector<256x32xbf16>, vector<1x32xf32> -> vector<1x32xf32>
    %60 = arith.addf %55, %59 : vector<1x32xf32>
    %61 = vector.extract_strided_slice %44 {offsets = [3, 0], sizes = [1, 256], strides = [1, 1]} : vector<16x256xbf16> to vector<1x256xbf16>
    %c3 = arith.constant 3 : index
    %c0_35 = arith.constant 0 : index
    %c0_36 = arith.constant 0 : index
    %62 = vector.load %arg6[%c3, %c0_35, %c0_36] : memref<16x256x32xbf16, #tpu.memory_space<vmem>>, vector<1x256x32xbf16>
    %63 = vector.shape_cast %62 : vector<1x256x32xbf16> to vector<256x32xbf16>
    %cst_37 = arith.constant dense<0.000000e+00> : vector<1x32xf32>
    %64 = tpu.matmul %61, %63, %cst_37 {dimension_numbers = #tpu.dot_dimension_numbers<[1], [0], [0], [1], [0, 0, 1, 1], [], []>} : vector<1x256xbf16>, vector<256x32xbf16>, vector<1x32xf32> -> vector<1x32xf32>
    %65 = arith.addf %60, %64 : vector<1x32xf32>
    %66 = vector.extract_strided_slice %44 {offsets = [4, 0], sizes = [1, 256], strides = [1, 1]} : vector<16x256xbf16> to vector<1x256xbf16>
    %c4 = arith.constant 4 : index
    %c0_38 = arith.constant 0 : index
    %c0_39 = arith.constant 0 : index
    %67 = vector.load %arg6[%c4, %c0_38, %c0_39] : memref<16x256x32xbf16, #tpu.memory_space<vmem>>, vector<1x256x32xbf16>
    %68 = vector.shape_cast %67 : vector<1x256x32xbf16> to vector<256x32xbf16>
    %cst_40 = arith.constant dense<0.000000e+00> : vector<1x32xf32>
    %69 = tpu.matmul %66, %68, %cst_40 {dimension_numbers = #tpu.dot_dimension_numbers<[1], [0], [0], [1], [0, 0, 1, 1], [], []>} : vector<1x256xbf16>, vector<256x32xbf16>, vector<1x32xf32> -> vector<1x32xf32>
    %70 = arith.addf %65, %69 : vector<1x32xf32>
    %71 = vector.extract_strided_slice %44 {offsets = [5, 0], sizes = [1, 256], strides = [1, 1]} : vector<16x256xbf16> to vector<1x256xbf16>
    %c5 = arith.constant 5 : index
    %c0_41 = arith.constant 0 : index
    %c0_42 = arith.constant 0 : index
    %72 = vector.load %arg6[%c5, %c0_41, %c0_42] : memref<16x256x32xbf16, #tpu.memory_space<vmem>>, vector<1x256x32xbf16>
    %73 = vector.shape_cast %72 : vector<1x256x32xbf16> to vector<256x32xbf16>
    %cst_43 = arith.constant dense<0.000000e+00> : vector<1x32xf32>
    %74 = tpu.matmul %71, %73, %cst_43 {dimension_numbers = #tpu.dot_dimension_numbers<[1], [0], [0], [1], [0, 0, 1, 1], [], []>} : vector<1x256xbf16>, vector<256x32xbf16>, vector<1x32xf32> -> vector<1x32xf32>
    %75 = arith.addf %70, %74 : vector<1x32xf32>
    %76 = vector.extract_strided_slice %44 {offsets = [6, 0], sizes = [1, 256], strides = [1, 1]} : vector<16x256xbf16> to vector<1x256xbf16>
    %c6 = arith.constant 6 : index
    %c0_44 = arith.constant 0 : index
    %c0_45 = arith.constant 0 : index
    %77 = vector.load %arg6[%c6, %c0_44, %c0_45] : memref<16x256x32xbf16, #tpu.memory_space<vmem>>, vector<1x256x32xbf16>
    %78 = vector.shape_cast %77 : vector<1x256x32xbf16> to vector<256x32xbf16>
    %cst_46 = arith.constant dense<0.000000e+00> : vector<1x32xf32>
    %79 = tpu.matmul %76, %78, %cst_46 {dimension_numbers = #tpu.dot_dimension_numbers<[1], [0], [0], [1], [0, 0, 1, 1], [], []>} : vector<1x256xbf16>, vector<256x32xbf16>, vector<1x32xf32> -> vector<1x32xf32>
    %80 = arith.addf %75, %79 : vector<1x32xf32>
    %81 = vector.extract_strided_slice %44 {offsets = [7, 0], sizes = [1, 256], strides = [1, 1]} : vector<16x256xbf16> to vector<1x256xbf16>
    %c7 = arith.constant 7 : index
    %c0_47 = arith.constant 0 : index
    %c0_48 = arith.constant 0 : index
    %82 = vector.load %arg6[%c7, %c0_47, %c0_48] : memref<16x256x32xbf16, #tpu.memory_space<vmem>>, vector<1x256x32xbf16>
    %83 = vector.shape_cast %82 : vector<1x256x32xbf16> to vector<256x32xbf16>
    %cst_49 = arith.constant dense<0.000000e+00> : vector<1x32xf32>
    %84 = tpu.matmul %81, %83, %cst_49 {dimension_numbers = #tpu.dot_dimension_numbers<[1], [0], [0], [1], [0, 0, 1, 1], [], []>} : vector<1x256xbf16>, vector<256x32xbf16>, vector<1x32xf32> -> vector<1x32xf32>
    %85 = arith.addf %80, %84 : vector<1x32xf32>
    %86 = vector.extract_strided_slice %44 {offsets = [8, 0], sizes = [1, 256], strides = [1, 1]} : vector<16x256xbf16> to vector<1x256xbf16>
    %c8 = arith.constant 8 : index
    %c0_50 = arith.constant 0 : index
    %c0_51 = arith.constant 0 : index
    %87 = vector.load %arg6[%c8, %c0_50, %c0_51] : memref<16x256x32xbf16, #tpu.memory_space<vmem>>, vector<1x256x32xbf16>
    %88 = vector.shape_cast %87 : vector<1x256x32xbf16> to vector<256x32xbf16>
    %cst_52 = arith.constant dense<0.000000e+00> : vector<1x32xf32>
    %89 = tpu.matmul %86, %88, %cst_52 {dimension_numbers = #tpu.dot_dimension_numbers<[1], [0], [0], [1], [0, 0, 1, 1], [], []>} : vector<1x256xbf16>, vector<256x32xbf16>, vector<1x32xf32> -> vector<1x32xf32>
    %90 = arith.addf %85, %89 : vector<1x32xf32>
    %91 = vector.extract_strided_slice %44 {offsets = [9, 0], sizes = [1, 256], strides = [1, 1]} : vector<16x256xbf16> to vector<1x256xbf16>
    %c9 = arith.constant 9 : index
    %c0_53 = arith.constant 0 : index
    %c0_54 = arith.constant 0 : index
    %92 = vector.load %arg6[%c9, %c0_53, %c0_54] : memref<16x256x32xbf16, #tpu.memory_space<vmem>>, vector<1x256x32xbf16>
    %93 = vector.shape_cast %92 : vector<1x256x32xbf16> to vector<256x32xbf16>
    %cst_55 = arith.constant dense<0.000000e+00> : vector<1x32xf32>
    %94 = tpu.matmul %91, %93, %cst_55 {dimension_numbers = #tpu.dot_dimension_numbers<[1], [0], [0], [1], [0, 0, 1, 1], [], []>} : vector<1x256xbf16>, vector<256x32xbf16>, vector<1x32xf32> -> vector<1x32xf32>
    %95 = arith.addf %90, %94 : vector<1x32xf32>
    %96 = vector.extract_strided_slice %44 {offsets = [10, 0], sizes = [1, 256], strides = [1, 1]} : vector<16x256xbf16> to vector<1x256xbf16>
    %c10 = arith.constant 10 : index
    %c0_56 = arith.constant 0 : index
    %c0_57 = arith.constant 0 : index
    %97 = vector.load %arg6[%c10, %c0_56, %c0_57] : memref<16x256x32xbf16, #tpu.memory_space<vmem>>, vector<1x256x32xbf16>
    %98 = vector.shape_cast %97 : vector<1x256x32xbf16> to vector<256x32xbf16>
    %cst_58 = arith.constant dense<0.000000e+00> : vector<1x32xf32>
    %99 = tpu.matmul %96, %98, %cst_58 {dimension_numbers = #tpu.dot_dimension_numbers<[1], [0], [0], [1], [0, 0, 1, 1], [], []>} : vector<1x256xbf16>, vector<256x32xbf16>, vector<1x32xf32> -> vector<1x32xf32>
    %100 = arith.addf %95, %99 : vector<1x32xf32>
    %101 = vector.extract_strided_slice %44 {offsets = [11, 0], sizes = [1, 256], strides = [1, 1]} : vector<16x256xbf16> to vector<1x256xbf16>
    %c11 = arith.constant 11 : index
    %c0_59 = arith.constant 0 : index
    %c0_60 = arith.constant 0 : index
    %102 = vector.load %arg6[%c11, %c0_59, %c0_60] : memref<16x256x32xbf16, #tpu.memory_space<vmem>>, vector<1x256x32xbf16>
    %103 = vector.shape_cast %102 : vector<1x256x32xbf16> to vector<256x32xbf16>
    %cst_61 = arith.constant dense<0.000000e+00> : vector<1x32xf32>
    %104 = tpu.matmul %101, %103, %cst_61 {dimension_numbers = #tpu.dot_dimension_numbers<[1], [0], [0], [1], [0, 0, 1, 1], [], []>} : vector<1x256xbf16>, vector<256x32xbf16>, vector<1x32xf32> -> vector<1x32xf32>
    %105 = arith.addf %100, %104 : vector<1x32xf32>
    %106 = vector.extract_strided_slice %44 {offsets = [12, 0], sizes = [1, 256], strides = [1, 1]} : vector<16x256xbf16> to vector<1x256xbf16>
    %c12 = arith.constant 12 : index
    %c0_62 = arith.constant 0 : index
    %c0_63 = arith.constant 0 : index
    %107 = vector.load %arg6[%c12, %c0_62, %c0_63] : memref<16x256x32xbf16, #tpu.memory_space<vmem>>, vector<1x256x32xbf16>
    %108 = vector.shape_cast %107 : vector<1x256x32xbf16> to vector<256x32xbf16>
    %cst_64 = arith.constant dense<0.000000e+00> : vector<1x32xf32>
    %109 = tpu.matmul %106, %108, %cst_64 {dimension_numbers = #tpu.dot_dimension_numbers<[1], [0], [0], [1], [0, 0, 1, 1], [], []>} : vector<1x256xbf16>, vector<256x32xbf16>, vector<1x32xf32> -> vector<1x32xf32>
    %110 = arith.addf %105, %109 : vector<1x32xf32>
    %111 = vector.extract_strided_slice %44 {offsets = [13, 0], sizes = [1, 256], strides = [1, 1]} : vector<16x256xbf16> to vector<1x256xbf16>
    %c13 = arith.constant 13 : index
    %c0_65 = arith.constant 0 : index
    %c0_66 = arith.constant 0 : index
    %112 = vector.load %arg6[%c13, %c0_65, %c0_66] : memref<16x256x32xbf16, #tpu.memory_space<vmem>>, vector<1x256x32xbf16>
    %113 = vector.shape_cast %112 : vector<1x256x32xbf16> to vector<256x32xbf16>
    %cst_67 = arith.constant dense<0.000000e+00> : vector<1x32xf32>
    %114 = tpu.matmul %111, %113, %cst_67 {dimension_numbers = #tpu.dot_dimension_numbers<[1], [0], [0], [1], [0, 0, 1, 1], [], []>} : vector<1x256xbf16>, vector<256x32xbf16>, vector<1x32xf32> -> vector<1x32xf32>
    %115 = arith.addf %110, %114 : vector<1x32xf32>
    %116 = vector.extract_strided_slice %44 {offsets = [14, 0], sizes = [1, 256], strides = [1, 1]} : vector<16x256xbf16> to vector<1x256xbf16>
    %c14 = arith.constant 14 : index
    %c0_68 = arith.constant 0 : index
    %c0_69 = arith.constant 0 : index
    %117 = vector.load %arg6[%c14, %c0_68, %c0_69] : memref<16x256x32xbf16, #tpu.memory_space<vmem>>, vector<1x256x32xbf16>
    %118 = vector.shape_cast %117 : vector<1x256x32xbf16> to vector<256x32xbf16>
    %cst_70 = arith.constant dense<0.000000e+00> : vector<1x32xf32>
    %119 = tpu.matmul %116, %118, %cst_70 {dimension_numbers = #tpu.dot_dimension_numbers<[1], [0], [0], [1], [0, 0, 1, 1], [], []>} : vector<1x256xbf16>, vector<256x32xbf16>, vector<1x32xf32> -> vector<1x32xf32>
    %120 = arith.addf %115, %119 : vector<1x32xf32>
    %121 = vector.extract_strided_slice %44 {offsets = [15, 0], sizes = [1, 256], strides = [1, 1]} : vector<16x256xbf16> to vector<1x256xbf16>
    %c15 = arith.constant 15 : index
    %c0_71 = arith.constant 0 : index
    %c0_72 = arith.constant 0 : index
    %122 = vector.load %arg6[%c15, %c0_71, %c0_72] : memref<16x256x32xbf16, #tpu.memory_space<vmem>>, vector<1x256x32xbf16>
    %123 = vector.shape_cast %122 : vector<1x256x32xbf16> to vector<256x32xbf16>
    %cst_73 = arith.constant dense<0.000000e+00> : vector<1x32xf32>
    %124 = tpu.matmul %121, %123, %cst_73 {dimension_numbers = #tpu.dot_dimension_numbers<[1], [0], [0], [1], [0, 0, 1, 1], [], []>} : vector<1x256xbf16>, vector<256x32xbf16>, vector<1x32xf32> -> vector<1x32xf32>
    %125 = arith.addf %120, %124 : vector<1x32xf32>
    %cst_74 = arith.constant 0.000000e+00 : f32
    %126 = vector.broadcast %cst_74 : f32 to vector<1x32xf32>
    %127 = arith.maximumf %125, %126 : vector<1x32xf32>
    %128 = vector.extract_strided_slice %43 {offsets = [0, 256], sizes = [16, 256], strides = [1, 1]} : vector<16x512xbf16> to vector<16x256xbf16>
    %c0_75 = arith.constant 0 : index
    %c0_76 = arith.constant 0 : index
    %129 = vector.load %arg7[%c0_75, %c0_76] : memref<1x32xf32, #tpu.memory_space<vmem>>, vector<1x32xf32>
    %130 = vector.extract_strided_slice %128 {offsets = [0, 0], sizes = [1, 256], strides = [1, 1]} : vector<16x256xbf16> to vector<1x256xbf16>
    %c0_77 = arith.constant 0 : index
    %c0_78 = arith.constant 0 : index
    %c0_79 = arith.constant 0 : index
    %131 = vector.load %arg6[%c0_77, %c0_78, %c0_79] : memref<16x256x32xbf16, #tpu.memory_space<vmem>>, vector<1x256x32xbf16>
    %132 = vector.shape_cast %131 : vector<1x256x32xbf16> to vector<256x32xbf16>
    %cst_80 = arith.constant dense<0.000000e+00> : vector<1x32xf32>
    %133 = tpu.matmul %130, %132, %cst_80 {dimension_numbers = #tpu.dot_dimension_numbers<[1], [0], [0], [1], [0, 0, 1, 1], [], []>} : vector<1x256xbf16>, vector<256x32xbf16>, vector<1x32xf32> -> vector<1x32xf32>
    %134 = arith.addf %129, %133 : vector<1x32xf32>
    %135 = vector.extract_strided_slice %128 {offsets = [1, 0], sizes = [1, 256], strides = [1, 1]} : vector<16x256xbf16> to vector<1x256xbf16>
    %c1_81 = arith.constant 1 : index
    %c0_82 = arith.constant 0 : index
    %c0_83 = arith.constant 0 : index
    %136 = vector.load %arg6[%c1_81, %c0_82, %c0_83] : memref<16x256x32xbf16, #tpu.memory_space<vmem>>, vector<1x256x32xbf16>
    %137 = vector.shape_cast %136 : vector<1x256x32xbf16> to vector<256x32xbf16>
    %cst_84 = arith.constant dense<0.000000e+00> : vector<1x32xf32>
    %138 = tpu.matmul %135, %137, %cst_84 {dimension_numbers = #tpu.dot_dimension_numbers<[1], [0], [0], [1], [0, 0, 1, 1], [], []>} : vector<1x256xbf16>, vector<256x32xbf16>, vector<1x32xf32> -> vector<1x32xf32>
    %139 = arith.addf %134, %138 : vector<1x32xf32>
    %140 = vector.extract_strided_slice %128 {offsets = [2, 0], sizes = [1, 256], strides = [1, 1]} : vector<16x256xbf16> to vector<1x256xbf16>
    %c2_85 = arith.constant 2 : index
    %c0_86 = arith.constant 0 : index
    %c0_87 = arith.constant 0 : index
    %141 = vector.load %arg6[%c2_85, %c0_86, %c0_87] : memref<16x256x32xbf16, #tpu.memory_space<vmem>>, vector<1x256x32xbf16>
    %142 = vector.shape_cast %141 : vector<1x256x32xbf16> to vector<256x32xbf16>
    %cst_88 = arith.constant dense<0.000000e+00> : vector<1x32xf32>
    %143 = tpu.matmul %140, %142, %cst_88 {dimension_numbers = #tpu.dot_dimension_numbers<[1], [0], [0], [1], [0, 0, 1, 1], [], []>} : vector<1x256xbf16>, vector<256x32xbf16>, vector<1x32xf32> -> vector<1x32xf32>
    %144 = arith.addf %139, %143 : vector<1x32xf32>
    %145 = vector.extract_strided_slice %128 {offsets = [3, 0], sizes = [1, 256], strides = [1, 1]} : vector<16x256xbf16> to vector<1x256xbf16>
    %c3_89 = arith.constant 3 : index
    %c0_90 = arith.constant 0 : index
    %c0_91 = arith.constant 0 : index
    %146 = vector.load %arg6[%c3_89, %c0_90, %c0_91] : memref<16x256x32xbf16, #tpu.memory_space<vmem>>, vector<1x256x32xbf16>
    %147 = vector.shape_cast %146 : vector<1x256x32xbf16> to vector<256x32xbf16>
    %cst_92 = arith.constant dense<0.000000e+00> : vector<1x32xf32>
    %148 = tpu.matmul %145, %147, %cst_92 {dimension_numbers = #tpu.dot_dimension_numbers<[1], [0], [0], [1], [0, 0, 1, 1], [], []>} : vector<1x256xbf16>, vector<256x32xbf16>, vector<1x32xf32> -> vector<1x32xf32>
    %149 = arith.addf %144, %148 : vector<1x32xf32>
    %150 = vector.extract_strided_slice %128 {offsets = [4, 0], sizes = [1, 256], strides = [1, 1]} : vector<16x256xbf16> to vector<1x256xbf16>
    %c4_93 = arith.constant 4 : index
    %c0_94 = arith.constant 0 : index
    %c0_95 = arith.constant 0 : index
    %151 = vector.load %arg6[%c4_93, %c0_94, %c0_95] : memref<16x256x32xbf16, #tpu.memory_space<vmem>>, vector<1x256x32xbf16>
    %152 = vector.shape_cast %151 : vector<1x256x32xbf16> to vector<256x32xbf16>
    %cst_96 = arith.constant dense<0.000000e+00> : vector<1x32xf32>
    %153 = tpu.matmul %150, %152, %cst_96 {dimension_numbers = #tpu.dot_dimension_numbers<[1], [0], [0], [1], [0, 0, 1, 1], [], []>} : vector<1x256xbf16>, vector<256x32xbf16>, vector<1x32xf32> -> vector<1x32xf32>
    %154 = arith.addf %149, %153 : vector<1x32xf32>
    %155 = vector.extract_strided_slice %128 {offsets = [5, 0], sizes = [1, 256], strides = [1, 1]} : vector<16x256xbf16> to vector<1x256xbf16>
    %c5_97 = arith.constant 5 : index
    %c0_98 = arith.constant 0 : index
    %c0_99 = arith.constant 0 : index
    %156 = vector.load %arg6[%c5_97, %c0_98, %c0_99] : memref<16x256x32xbf16, #tpu.memory_space<vmem>>, vector<1x256x32xbf16>
    %157 = vector.shape_cast %156 : vector<1x256x32xbf16> to vector<256x32xbf16>
    %cst_100 = arith.constant dense<0.000000e+00> : vector<1x32xf32>
    %158 = tpu.matmul %155, %157, %cst_100 {dimension_numbers = #tpu.dot_dimension_numbers<[1], [0], [0], [1], [0, 0, 1, 1], [], []>} : vector<1x256xbf16>, vector<256x32xbf16>, vector<1x32xf32> -> vector<1x32xf32>
    %159 = arith.addf %154, %158 : vector<1x32xf32>
    %160 = vector.extract_strided_slice %128 {offsets = [6, 0], sizes = [1, 256], strides = [1, 1]} : vector<16x256xbf16> to vector<1x256xbf16>
    %c6_101 = arith.constant 6 : index
    %c0_102 = arith.constant 0 : index
    %c0_103 = arith.constant 0 : index
    %161 = vector.load %arg6[%c6_101, %c0_102, %c0_103] : memref<16x256x32xbf16, #tpu.memory_space<vmem>>, vector<1x256x32xbf16>
    %162 = vector.shape_cast %161 : vector<1x256x32xbf16> to vector<256x32xbf16>
    %cst_104 = arith.constant dense<0.000000e+00> : vector<1x32xf32>
    %163 = tpu.matmul %160, %162, %cst_104 {dimension_numbers = #tpu.dot_dimension_numbers<[1], [0], [0], [1], [0, 0, 1, 1], [], []>} : vector<1x256xbf16>, vector<256x32xbf16>, vector<1x32xf32> -> vector<1x32xf32>
    %164 = arith.addf %159, %163 : vector<1x32xf32>
    %165 = vector.extract_strided_slice %128 {offsets = [7, 0], sizes = [1, 256], strides = [1, 1]} : vector<16x256xbf16> to vector<1x256xbf16>
    %c7_105 = arith.constant 7 : index
    %c0_106 = arith.constant 0 : index
    %c0_107 = arith.constant 0 : index
    %166 = vector.load %arg6[%c7_105, %c0_106, %c0_107] : memref<16x256x32xbf16, #tpu.memory_space<vmem>>, vector<1x256x32xbf16>
    %167 = vector.shape_cast %166 : vector<1x256x32xbf16> to vector<256x32xbf16>
    %cst_108 = arith.constant dense<0.000000e+00> : vector<1x32xf32>
    %168 = tpu.matmul %165, %167, %cst_108 {dimension_numbers = #tpu.dot_dimension_numbers<[1], [0], [0], [1], [0, 0, 1, 1], [], []>} : vector<1x256xbf16>, vector<256x32xbf16>, vector<1x32xf32> -> vector<1x32xf32>
    %169 = arith.addf %164, %168 : vector<1x32xf32>
    %170 = vector.extract_strided_slice %128 {offsets = [8, 0], sizes = [1, 256], strides = [1, 1]} : vector<16x256xbf16> to vector<1x256xbf16>
    %c8_109 = arith.constant 8 : index
    %c0_110 = arith.constant 0 : index
    %c0_111 = arith.constant 0 : index
    %171 = vector.load %arg6[%c8_109, %c0_110, %c0_111] : memref<16x256x32xbf16, #tpu.memory_space<vmem>>, vector<1x256x32xbf16>
    %172 = vector.shape_cast %171 : vector<1x256x32xbf16> to vector<256x32xbf16>
    %cst_112 = arith.constant dense<0.000000e+00> : vector<1x32xf32>
    %173 = tpu.matmul %170, %172, %cst_112 {dimension_numbers = #tpu.dot_dimension_numbers<[1], [0], [0], [1], [0, 0, 1, 1], [], []>} : vector<1x256xbf16>, vector<256x32xbf16>, vector<1x32xf32> -> vector<1x32xf32>
    %174 = arith.addf %169, %173 : vector<1x32xf32>
    %175 = vector.extract_strided_slice %128 {offsets = [9, 0], sizes = [1, 256], strides = [1, 1]} : vector<16x256xbf16> to vector<1x256xbf16>
    %c9_113 = arith.constant 9 : index
    %c0_114 = arith.constant 0 : index
    %c0_115 = arith.constant 0 : index
    %176 = vector.load %arg6[%c9_113, %c0_114, %c0_115] : memref<16x256x32xbf16, #tpu.memory_space<vmem>>, vector<1x256x32xbf16>
    %177 = vector.shape_cast %176 : vector<1x256x32xbf16> to vector<256x32xbf16>
    %cst_116 = arith.constant dense<0.000000e+00> : vector<1x32xf32>
    %178 = tpu.matmul %175, %177, %cst_116 {dimension_numbers = #tpu.dot_dimension_numbers<[1], [0], [0], [1], [0, 0, 1, 1], [], []>} : vector<1x256xbf16>, vector<256x32xbf16>, vector<1x32xf32> -> vector<1x32xf32>
    %179 = arith.addf %174, %178 : vector<1x32xf32>
    %180 = vector.extract_strided_slice %128 {offsets = [10, 0], sizes = [1, 256], strides = [1, 1]} : vector<16x256xbf16> to vector<1x256xbf16>
    %c10_117 = arith.constant 10 : index
    %c0_118 = arith.constant 0 : index
    %c0_119 = arith.constant 0 : index
    %181 = vector.load %arg6[%c10_117, %c0_118, %c0_119] : memref<16x256x32xbf16, #tpu.memory_space<vmem>>, vector<1x256x32xbf16>
    %182 = vector.shape_cast %181 : vector<1x256x32xbf16> to vector<256x32xbf16>
    %cst_120 = arith.constant dense<0.000000e+00> : vector<1x32xf32>
    %183 = tpu.matmul %180, %182, %cst_120 {dimension_numbers = #tpu.dot_dimension_numbers<[1], [0], [0], [1], [0, 0, 1, 1], [], []>} : vector<1x256xbf16>, vector<256x32xbf16>, vector<1x32xf32> -> vector<1x32xf32>
    %184 = arith.addf %179, %183 : vector<1x32xf32>
    %185 = vector.extract_strided_slice %128 {offsets = [11, 0], sizes = [1, 256], strides = [1, 1]} : vector<16x256xbf16> to vector<1x256xbf16>
    %c11_121 = arith.constant 11 : index
    %c0_122 = arith.constant 0 : index
    %c0_123 = arith.constant 0 : index
    %186 = vector.load %arg6[%c11_121, %c0_122, %c0_123] : memref<16x256x32xbf16, #tpu.memory_space<vmem>>, vector<1x256x32xbf16>
    %187 = vector.shape_cast %186 : vector<1x256x32xbf16> to vector<256x32xbf16>
    %cst_124 = arith.constant dense<0.000000e+00> : vector<1x32xf32>
    %188 = tpu.matmul %185, %187, %cst_124 {dimension_numbers = #tpu.dot_dimension_numbers<[1], [0], [0], [1], [0, 0, 1, 1], [], []>} : vector<1x256xbf16>, vector<256x32xbf16>, vector<1x32xf32> -> vector<1x32xf32>
    %189 = arith.addf %184, %188 : vector<1x32xf32>
    %190 = vector.extract_strided_slice %128 {offsets = [12, 0], sizes = [1, 256], strides = [1, 1]} : vector<16x256xbf16> to vector<1x256xbf16>
    %c12_125 = arith.constant 12 : index
    %c0_126 = arith.constant 0 : index
    %c0_127 = arith.constant 0 : index
    %191 = vector.load %arg6[%c12_125, %c0_126, %c0_127] : memref<16x256x32xbf16, #tpu.memory_space<vmem>>, vector<1x256x32xbf16>
    %192 = vector.shape_cast %191 : vector<1x256x32xbf16> to vector<256x32xbf16>
    %cst_128 = arith.constant dense<0.000000e+00> : vector<1x32xf32>
    %193 = tpu.matmul %190, %192, %cst_128 {dimension_numbers = #tpu.dot_dimension_numbers<[1], [0], [0], [1], [0, 0, 1, 1], [], []>} : vector<1x256xbf16>, vector<256x32xbf16>, vector<1x32xf32> -> vector<1x32xf32>
    %194 = arith.addf %189, %193 : vector<1x32xf32>
    %195 = vector.extract_strided_slice %128 {offsets = [13, 0], sizes = [1, 256], strides = [1, 1]} : vector<16x256xbf16> to vector<1x256xbf16>
    %c13_129 = arith.constant 13 : index
    %c0_130 = arith.constant 0 : index
    %c0_131 = arith.constant 0 : index
    %196 = vector.load %arg6[%c13_129, %c0_130, %c0_131] : memref<16x256x32xbf16, #tpu.memory_space<vmem>>, vector<1x256x32xbf16>
    %197 = vector.shape_cast %196 : vector<1x256x32xbf16> to vector<256x32xbf16>
    %cst_132 = arith.constant dense<0.000000e+00> : vector<1x32xf32>
    %198 = tpu.matmul %195, %197, %cst_132 {dimension_numbers = #tpu.dot_dimension_numbers<[1], [0], [0], [1], [0, 0, 1, 1], [], []>} : vector<1x256xbf16>, vector<256x32xbf16>, vector<1x32xf32> -> vector<1x32xf32>
    %199 = arith.addf %194, %198 : vector<1x32xf32>
    %200 = vector.extract_strided_slice %128 {offsets = [14, 0], sizes = [1, 256], strides = [1, 1]} : vector<16x256xbf16> to vector<1x256xbf16>
    %c14_133 = arith.constant 14 : index
    %c0_134 = arith.constant 0 : index
    %c0_135 = arith.constant 0 : index
    %201 = vector.load %arg6[%c14_133, %c0_134, %c0_135] : memref<16x256x32xbf16, #tpu.memory_space<vmem>>, vector<1x256x32xbf16>
    %202 = vector.shape_cast %201 : vector<1x256x32xbf16> to vector<256x32xbf16>
    %cst_136 = arith.constant dense<0.000000e+00> : vector<1x32xf32>
    %203 = tpu.matmul %200, %202, %cst_136 {dimension_numbers = #tpu.dot_dimension_numbers<[1], [0], [0], [1], [0, 0, 1, 1], [], []>} : vector<1x256xbf16>, vector<256x32xbf16>, vector<1x32xf32> -> vector<1x32xf32>
    %204 = arith.addf %199, %203 : vector<1x32xf32>
    %205 = vector.extract_strided_slice %128 {offsets = [15, 0], sizes = [1, 256], strides = [1, 1]} : vector<16x256xbf16> to vector<1x256xbf16>
    %c15_137 = arith.constant 15 : index
    %c0_138 = arith.constant 0 : index
    %c0_139 = arith.constant 0 : index
    %206 = vector.load %arg6[%c15_137, %c0_138, %c0_139] : memref<16x256x32xbf16, #tpu.memory_space<vmem>>, vector<1x256x32xbf16>
    %207 = vector.shape_cast %206 : vector<1x256x32xbf16> to vector<256x32xbf16>
    %cst_140 = arith.constant dense<0.000000e+00> : vector<1x32xf32>
    %208 = tpu.matmul %205, %207, %cst_140 {dimension_numbers = #tpu.dot_dimension_numbers<[1], [0], [0], [1], [0, 0, 1, 1], [], []>} : vector<1x256xbf16>, vector<256x32xbf16>, vector<1x32xf32> -> vector<1x32xf32>
    %209 = arith.addf %204, %208 : vector<1x32xf32>
    %cst_141 = arith.constant 0.000000e+00 : f32
    %210 = vector.broadcast %cst_141 : f32 to vector<1x32xf32>
    %211 = arith.maximumf %209, %210 : vector<1x32xf32>
    %212 = tpu.concatenate %127, %211 in 0 : vector<1x32xf32>, vector<1x32xf32> -> vector<2x32xf32>
    %213 = arith.truncf %212 : vector<2x32xf32> to vector<2x32xbf16>
    %c0_142 = arith.constant 0 : index
    %c0_143 = arith.constant 0 : index
    %214 = vector.load %arg8[%c0_142, %c0_143] : memref<32x32xbf16, #tpu.memory_space<vmem>>, vector<32x32xbf16>
    %cst_144 = arith.constant dense<0.000000e+00> : vector<2x32xf32>
    %215 = tpu.matmul %213, %214, %cst_144 {dimension_numbers = #tpu.dot_dimension_numbers<[1], [0], [0], [1], [0, 0, 1, 1], [], []>} : vector<2x32xbf16>, vector<32x32xbf16>, vector<2x32xf32> -> vector<2x32xf32>
    %c0_145 = arith.constant 0 : index
    %c0_146 = arith.constant 0 : index
    %216 = vector.load %arg9[%c0_145, %c0_146] : memref<1x32xf32, #tpu.memory_space<vmem>>, vector<1x32xf32>
    %217 = vector.broadcast %216 : vector<1x32xf32> to vector<2x32xf32>
    %218 = arith.addf %215, %217 : vector<2x32xf32>
    %cst_147 = arith.constant 0.000000e+00 : f32
    %219 = vector.broadcast %cst_147 : f32 to vector<2x32xf32>
    %220 = arith.maximumf %218, %219 : vector<2x32xf32>
    %c0_148 = arith.constant 0 : index
    %c0_149 = arith.constant 0 : index
    %221 = vector.load %arg2[%c0_148, %c0_149] : memref<2x32xf32, #tpu.memory_space<vmem>>, vector<2x32xf32>
    %c0_150 = arith.constant 0 : index
    %c0_151 = arith.constant 0 : index
    %222 = vector.load %arg3[%c0_150, %c0_151] : memref<2x1xf32, #tpu.memory_space<vmem>>, vector<2x1xf32>
    %223 = vector.broadcast %222 : vector<2x1xf32> to vector<2x32xf32>
    %224 = arith.mulf %221, %223 : vector<2x32xf32>
    %225 = arith.truncf %220 : vector<2x32xf32> to vector<2x32xbf16>
    %226 = arith.truncf %224 : vector<2x32xf32> to vector<2x32xbf16>
    %c0_152 = arith.constant 0 : index
    %c0_153 = arith.constant 0 : index
    %227 = vector.load %arg10[%c0_152, %c0_153] : memref<32x32xbf16, #tpu.memory_space<vmem>>, vector<32x32xbf16>
    %cst_154 = arith.constant dense<0.000000e+00> : vector<2x32xf32>
    %228 = tpu.matmul %225, %227, %cst_154 {dimension_numbers = #tpu.dot_dimension_numbers<[1], [0], [0], [1], [0, 0, 1, 1], [], []>} : vector<2x32xbf16>, vector<32x32xbf16>, vector<2x32xf32> -> vector<2x32xf32>
    %c0_155 = arith.constant 0 : index
    %c0_156 = arith.constant 0 : index
    %229 = vector.load %arg13[%c0_155, %c0_156] : memref<32x32xbf16, #tpu.memory_space<vmem>>, vector<32x32xbf16>
    %cst_157 = arith.constant dense<0.000000e+00> : vector<2x32xf32>
    %230 = tpu.matmul %226, %229, %cst_157 {dimension_numbers = #tpu.dot_dimension_numbers<[1], [0], [0], [1], [0, 0, 1, 1], [], []>} : vector<2x32xbf16>, vector<32x32xbf16>, vector<2x32xf32> -> vector<2x32xf32>
    %231 = arith.addf %228, %230 : vector<2x32xf32>
    %c0_158 = arith.constant 0 : index
    %c0_159 = arith.constant 0 : index
    %232 = vector.load %arg16[%c0_158, %c0_159] : memref<1x32xf32, #tpu.memory_space<vmem>>, vector<1x32xf32>
    %233 = vector.broadcast %232 : vector<1x32xf32> to vector<2x32xf32>
    %234 = arith.addf %231, %233 : vector<2x32xf32>
    %235 = arith.negf %234 : vector<2x32xf32>
    %236 = math.exp %235 : vector<2x32xf32>
    %cst_160 = arith.constant 1.000000e+00 : f32
    %237 = vector.broadcast %cst_160 : f32 to vector<2x32xf32>
    %238 = arith.addf %237, %236 : vector<2x32xf32>
    %239 = arith.divf %237, %238 : vector<2x32xf32>
    %c0_161 = arith.constant 0 : index
    %c0_162 = arith.constant 0 : index
    %240 = vector.load %arg11[%c0_161, %c0_162] : memref<32x32xbf16, #tpu.memory_space<vmem>>, vector<32x32xbf16>
    %cst_163 = arith.constant dense<0.000000e+00> : vector<2x32xf32>
    %241 = tpu.matmul %225, %240, %cst_163 {dimension_numbers = #tpu.dot_dimension_numbers<[1], [0], [0], [1], [0, 0, 1, 1], [], []>} : vector<2x32xbf16>, vector<32x32xbf16>, vector<2x32xf32> -> vector<2x32xf32>
    %c0_164 = arith.constant 0 : index
    %c0_165 = arith.constant 0 : index
    %242 = vector.load %arg14[%c0_164, %c0_165] : memref<32x32xbf16, #tpu.memory_space<vmem>>, vector<32x32xbf16>
    %cst_166 = arith.constant dense<0.000000e+00> : vector<2x32xf32>
    %243 = tpu.matmul %226, %242, %cst_166 {dimension_numbers = #tpu.dot_dimension_numbers<[1], [0], [0], [1], [0, 0, 1, 1], [], []>} : vector<2x32xbf16>, vector<32x32xbf16>, vector<2x32xf32> -> vector<2x32xf32>
    %244 = arith.addf %241, %243 : vector<2x32xf32>
    %c0_167 = arith.constant 0 : index
    %c0_168 = arith.constant 0 : index
    %245 = vector.load %arg17[%c0_167, %c0_168] : memref<1x32xf32, #tpu.memory_space<vmem>>, vector<1x32xf32>
    %246 = vector.broadcast %245 : vector<1x32xf32> to vector<2x32xf32>
    %247 = arith.addf %244, %246 : vector<2x32xf32>
    %248 = arith.negf %247 : vector<2x32xf32>
    %249 = math.exp %248 : vector<2x32xf32>
    %cst_169 = arith.constant 1.000000e+00 : f32
    %250 = vector.broadcast %cst_169 : f32 to vector<2x32xf32>
    %251 = arith.addf %250, %249 : vector<2x32xf32>
    %252 = arith.divf %250, %251 : vector<2x32xf32>
    %c0_170 = arith.constant 0 : index
    %c0_171 = arith.constant 0 : index
    %253 = vector.load %arg12[%c0_170, %c0_171] : memref<32x32xbf16, #tpu.memory_space<vmem>>, vector<32x32xbf16>
    %cst_172 = arith.constant dense<0.000000e+00> : vector<2x32xf32>
    %254 = tpu.matmul %225, %253, %cst_172 {dimension_numbers = #tpu.dot_dimension_numbers<[1], [0], [0], [1], [0, 0, 1, 1], [], []>} : vector<2x32xbf16>, vector<32x32xbf16>, vector<2x32xf32> -> vector<2x32xf32>
    %c0_173 = arith.constant 0 : index
    %c0_174 = arith.constant 0 : index
    %255 = vector.load %arg18[%c0_173, %c0_174] : memref<1x32xf32, #tpu.memory_space<vmem>>, vector<1x32xf32>
    %256 = vector.broadcast %255 : vector<1x32xf32> to vector<2x32xf32>
    %257 = arith.addf %254, %256 : vector<2x32xf32>
    %c0_175 = arith.constant 0 : index
    %c0_176 = arith.constant 0 : index
    %258 = vector.load %arg15[%c0_175, %c0_176] : memref<32x32xbf16, #tpu.memory_space<vmem>>, vector<32x32xbf16>
    %cst_177 = arith.constant dense<0.000000e+00> : vector<2x32xf32>
    %259 = tpu.matmul %226, %258, %cst_177 {dimension_numbers = #tpu.dot_dimension_numbers<[1], [0], [0], [1], [0, 0, 1, 1], [], []>} : vector<2x32xbf16>, vector<32x32xbf16>, vector<2x32xf32> -> vector<2x32xf32>
    %c0_178 = arith.constant 0 : index
    %c0_179 = arith.constant 0 : index
    %260 = vector.load %arg19[%c0_178, %c0_179] : memref<1x32xf32, #tpu.memory_space<vmem>>, vector<1x32xf32>
    %261 = vector.broadcast %260 : vector<1x32xf32> to vector<2x32xf32>
    %262 = arith.addf %259, %261 : vector<2x32xf32>
    %263 = arith.mulf %239, %262 : vector<2x32xf32>
    %264 = arith.addf %257, %263 : vector<2x32xf32>
    %265 = math.tanh %264 : vector<2x32xf32>
    %cst_180 = arith.constant 1.000000e+00 : f32
    %266 = vector.broadcast %cst_180 : f32 to vector<2x32xf32>
    %267 = arith.subf %266, %252 : vector<2x32xf32>
    %268 = arith.mulf %267, %265 : vector<2x32xf32>
    %269 = arith.mulf %252, %224 : vector<2x32xf32>
    %270 = arith.addf %268, %269 : vector<2x32xf32>
    %c0_181 = arith.constant 0 : index
    %c0_182 = arith.constant 0 : index
    %271 = vector.load %arg24[%c0_181, %c0_182] : memref<2x32xf32, #tpu.memory_space<vmem>>, vector<2x32xf32>
    tpu.vector_store %arg24[%c0_181, %c0_182], %270 {strides = array<i32>} : memref<2x32xf32, #tpu.memory_space<vmem>>, vector<2x32xf32>,
    %cst_183 = arith.constant dense<0.000000e+00> : vector<2xf32>
    %272 = vector.multi_reduction <add>, %270, %cst_183 [1] : vector<2x32xf32> to vector<2xf32>
    %273 = vector.shape_cast %272 : vector<2xf32> to vector<2x1xf32>
    %cst_184 = arith.constant 3.200000e+01 : f32
    %274 = vector.broadcast %cst_184 : f32 to vector<2x1xf32>
    %275 = arith.divf %273, %274 : vector<2x1xf32>
    %276 = vector.broadcast %275 : vector<2x1xf32> to vector<2x32xf32>
    %277 = arith.subf %270, %276 : vector<2x32xf32>
    %278 = arith.mulf %277, %277 : vector<2x32xf32>
    %cst_185 = arith.constant dense<0.000000e+00> : vector<2xf32>
    %279 = vector.multi_reduction <add>, %278, %cst_185 [1] : vector<2x32xf32> to vector<2xf32>
    %280 = vector.shape_cast %279 : vector<2xf32> to vector<2x1xf32>
    %cst_186 = arith.constant 3.200000e+01 : f32
    %281 = vector.broadcast %cst_186 : f32 to vector<2x1xf32>
    %282 = arith.divf %280, %281 : vector<2x1xf32>
    %cst_187 = arith.constant 9.99999974E-6 : f32
    %283 = vector.broadcast %cst_187 : f32 to vector<2x1xf32>
    %284 = arith.addf %282, %283 : vector<2x1xf32>
    %285 = math.rsqrt %284 : vector<2x1xf32>
    %286 = vector.broadcast %285 : vector<2x1xf32> to vector<2x32xf32>
    %287 = arith.mulf %277, %286 : vector<2x32xf32>
    %c0_188 = arith.constant 0 : index
    %c0_189 = arith.constant 0 : index
    %288 = vector.load %arg20[%c0_188, %c0_189] : memref<1x32xf32, #tpu.memory_space<vmem>>, vector<1x32xf32>
    %289 = vector.broadcast %288 : vector<1x32xf32> to vector<2x32xf32>
    %290 = arith.mulf %287, %289 : vector<2x32xf32>
    %c0_190 = arith.constant 0 : index
    %c0_191 = arith.constant 0 : index
    %291 = vector.load %arg21[%c0_190, %c0_191] : memref<1x32xf32, #tpu.memory_space<vmem>>, vector<1x32xf32>
    %292 = vector.broadcast %291 : vector<1x32xf32> to vector<2x32xf32>
    %293 = arith.addf %290, %292 : vector<2x32xf32>
    %294 = vector.extract_strided_slice %293 {offsets = [0, 0], sizes = [1, 32], strides = [1, 1]} : vector<2x32xf32> to vector<1x32xf32>
    %c0_192 = arith.constant 0 : index
    %c0_193 = arith.constant 0 : index
    %295 = vector.load %arg22[%c0_192, %c0_193] : memref<1x32xf32, #tpu.memory_space<vmem>>, vector<1x32xf32>
    %296 = arith.mulf %294, %295 : vector<1x32xf32>
    %cst_194 = arith.constant dense<0.000000e+00> : vector<1xf32>
    %297 = vector.multi_reduction <add>, %296, %cst_194 [1] : vector<1x32xf32> to vector<1xf32>
    %298 = vector.shape_cast %297 : vector<1xf32> to vector<1x1xf32>
    %c0_195 = arith.constant 0 : index
    %c0_196 = arith.constant 0 : index
    %299 = vector.load %arg23[%c0_195, %c0_196] : memref<1x1xf32, #tpu.memory_space<vmem>>, vector<1x1xf32>
    %300 = arith.addf %298, %299 : vector<1x1xf32>
    %c0_197 = arith.constant 0 : index
    %c0_198 = arith.constant 0 : index
    %301 = vector.load %arg25[%c0_197, %c0_198] : memref<1x1xf32, #tpu.memory_space<vmem>>, vector<1x1xf32>
    tpu.vector_store %arg25[%c0_197, %c0_198], %300 {strides = array<i32>} : memref<1x1xf32, #tpu.memory_space<vmem>>, vector<1x1xf32>,
    return
  }
  func.func @transform_0(%arg0: i32) -> (i32, i32) {
    %c0_i32 = arith.constant 0 : i32
    %c0_i32_0 = arith.constant 0 : i32
    %c0_i32_1 = arith.constant 0 : i32
    return %c0_i32, %c0_i32_0 : i32, i32
  }
  func.func @transform_1(%arg0: i32) -> (i32, i32) {
    %c0_i32 = arith.constant 0 : i32
    %c0_i32_0 = arith.constant 0 : i32
    %c0_i32_1 = arith.constant 0 : i32
    return %c0_i32, %c0_i32_0 : i32, i32
  }
  func.func @transform_2(%arg0: i32) -> (i32, i32) {
    %c0_i32 = arith.constant 0 : i32
    %c0_i32_0 = arith.constant 0 : i32
    %c0_i32_1 = arith.constant 0 : i32
    return %c0_i32, %c0_i32_0 : i32, i32
  }
  func.func @transform_3(%arg0: i32) -> (i32, i32) {
    %c0_i32 = arith.constant 0 : i32
    %c0_i32_0 = arith.constant 0 : i32
    %c0_i32_1 = arith.constant 0 : i32
    return %c0_i32, %c0_i32_0 : i32, i32
  }
  func.func @transform_4(%arg0: i32) -> (i32, i32) {
    %c0_i32 = arith.constant 0 : i32
    %c0_i32_0 = arith.constant 0 : i32
    %c0_i32_1 = arith.constant 0 : i32
    return %c0_i32, %c0_i32_0 : i32, i32
  }
  func.func @transform_5(%arg0: i32) -> (i32, i32, i32) {
    %c0_i32 = arith.constant 0 : i32
    %c0_i32_0 = arith.constant 0 : i32
    %c0_i32_1 = arith.constant 0 : i32
    %c0_i32_2 = arith.constant 0 : i32
    return %c0_i32, %c0_i32_0, %c0_i32_1 : i32, i32, i32
  }
  func.func @transform_6(%arg0: i32) -> (i32, i32) {
    %c0_i32 = arith.constant 0 : i32
    %c0_i32_0 = arith.constant 0 : i32
    %c0_i32_1 = arith.constant 0 : i32
    return %c0_i32, %c0_i32_0 : i32, i32
  }
  func.func @transform_7(%arg0: i32) -> (i32, i32) {
    %c0_i32 = arith.constant 0 : i32
    %c0_i32_0 = arith.constant 0 : i32
    %c0_i32_1 = arith.constant 0 : i32
    return %c0_i32, %c0_i32_0 : i32, i32
  }
  func.func @transform_8(%arg0: i32) -> (i32, i32) {
    %c0_i32 = arith.constant 0 : i32
    %c0_i32_0 = arith.constant 0 : i32
    %c0_i32_1 = arith.constant 0 : i32
    return %c0_i32, %c0_i32_0 : i32, i32
  }
  func.func @transform_9(%arg0: i32) -> (i32, i32) {
    %c0_i32 = arith.constant 0 : i32
    %c0_i32_0 = arith.constant 0 : i32
    %c0_i32_1 = arith.constant 0 : i32
    return %c0_i32, %c0_i32_0 : i32, i32
  }
  func.func @transform_10(%arg0: i32) -> (i32, i32) {
    %c0_i32 = arith.constant 0 : i32
    %c0_i32_0 = arith.constant 0 : i32
    %c0_i32_1 = arith.constant 0 : i32
    return %c0_i32, %c0_i32_0 : i32, i32
  }
  func.func @transform_11(%arg0: i32) -> (i32, i32) {
    %c0_i32 = arith.constant 0 : i32
    %c0_i32_0 = arith.constant 0 : i32
    %c0_i32_1 = arith.constant 0 : i32
    return %c0_i32, %c0_i32_0 : i32, i32
  }
  func.func @transform_12(%arg0: i32) -> (i32, i32) {
    %c0_i32 = arith.constant 0 : i32
    %c0_i32_0 = arith.constant 0 : i32
    %c0_i32_1 = arith.constant 0 : i32
    return %c0_i32, %c0_i32_0 : i32, i32
  }
  func.func @transform_13(%arg0: i32) -> (i32, i32) {
    %c0_i32 = arith.constant 0 : i32
    %c0_i32_0 = arith.constant 0 : i32
    %c0_i32_1 = arith.constant 0 : i32
    return %c0_i32, %c0_i32_0 : i32, i32
  }
  func.func @transform_14(%arg0: i32) -> (i32, i32) {
    %c0_i32 = arith.constant 0 : i32
    %c0_i32_0 = arith.constant 0 : i32
    %c0_i32_1 = arith.constant 0 : i32
    return %c0_i32, %c0_i32_0 : i32, i32
  }
  func.func @transform_15(%arg0: i32) -> (i32, i32) {
    %c0_i32 = arith.constant 0 : i32
    %c0_i32_0 = arith.constant 0 : i32
    %c0_i32_1 = arith.constant 0 : i32
    return %c0_i32, %c0_i32_0 : i32, i32
  }
  func.func @transform_16(%arg0: i32) -> (i32, i32) {
    %c0_i32 = arith.constant 0 : i32
    %c0_i32_0 = arith.constant 0 : i32
    %c0_i32_1 = arith.constant 0 : i32
    return %c0_i32, %c0_i32_0 : i32, i32
  }
  func.func @transform_17(%arg0: i32) -> (i32, i32) {
    %c0_i32 = arith.constant 0 : i32
    %c0_i32_0 = arith.constant 0 : i32
    %c0_i32_1 = arith.constant 0 : i32
    return %c0_i32, %c0_i32_0 : i32, i32
  }
  func.func @transform_18(%arg0: i32) -> (i32, i32) {
    %c0_i32 = arith.constant 0 : i32
    %c0_i32_0 = arith.constant 0 : i32
    %c0_i32_1 = arith.constant 0 : i32
    return %c0_i32, %c0_i32_0 : i32, i32
  }
  func.func @transform_19(%arg0: i32) -> (i32, i32) {
    %c0_i32 = arith.constant 0 : i32
    %c0_i32_0 = arith.constant 0 : i32
    %c0_i32_1 = arith.constant 0 : i32
    return %c0_i32, %c0_i32_0 : i32, i32
  }
  func.func @transform_20(%arg0: i32) -> (i32, i32) {
    %c0_i32 = arith.constant 0 : i32
    %c0_i32_0 = arith.constant 0 : i32
    %c0_i32_1 = arith.constant 0 : i32
    return %c0_i32, %c0_i32_0 : i32, i32
  }
  func.func @transform_21(%arg0: i32) -> (i32, i32) {
    %c0_i32 = arith.constant 0 : i32
    %c0_i32_0 = arith.constant 0 : i32
    %c0_i32_1 = arith.constant 0 : i32
    return %c0_i32, %c0_i32_0 : i32, i32
  }
  func.func @transform_22(%arg0: i32) -> (i32, i32) {
    %c0_i32 = arith.constant 0 : i32
    %c0_i32_0 = arith.constant 0 : i32
    %c0_i32_1 = arith.constant 0 : i32
    return %c0_i32, %c0_i32_0 : i32, i32
  }
  func.func @transform_23(%arg0: i32) -> (i32, i32) {
    %c0_i32 = arith.constant 0 : i32
    %c0_i32_0 = arith.constant 0 : i32
    %c0_i32_1 = arith.constant 0 : i32
    return %c0_i32, %c0_i32_0 : i32, i32
  }
  func.func @transform_24(%arg0: i32) -> (i32, i32) {
    %c0_i32 = arith.constant 0 : i32
    %c0_i32_0 = arith.constant 0 : i32
    %c0_i32_1 = arith.constant 0 : i32
    return %c0_i32, %c0_i32_0 : i32, i32
  }
}

</mosaic_0001>

<llo_original>
// kernel: r_critic_forward.1
$region0: #{r_critic_forward.1}
  #allocation0 [shape = 'u32[]', space=smem, size = 0x4, offset = 0x4, fixed_abs, tag = 'smem constant byte address 0x4 - core index']
  #allocation1 [shape = 'u32[144,128]{1,0:T(1,128)}', space=vmem, size = 0x12000, scoped, tag = 'internal scratch']
  #allocation2 [shape = 'f32[1,1]{1,0:T(1,128)S(1)}', space=vmem, size = 0x200, scoped, tag = 'scoped memory for r_critic_forward.1']
  %s0 = inlined_call_operand.vmem [shape: f32[4,640], index: 0, kind: input, shape index: {}]
  %s1 = inlined_call_operand.vmem [shape: f32[2,32], index: 1, kind: input, shape index: {}]
  %s2 = inlined_call_operand.vmem [shape: f32[2,1], index: 2, kind: input, shape index: {}]
  %s3 = inlined_call_operand.vmem [shape: f32[144,4], index: 3, kind: input, shape index: {}]
  %s4 = inlined_call_operand.vmem [shape: f32[16,1], index: 4, kind: input, shape index: {}]
  %s5 = inlined_call_operand.vmem [shape: bf16[16,256,32], index: 5, kind: input, shape index: {}]
  %s6 = inlined_call_operand.vmem [shape: f32[1,32], index: 6, kind: input, shape index: {}]
  %s7 = inlined_call_operand.vmem [shape: bf16[32,32], index: 7, kind: input, shape index: {}]
  %s8 = inlined_call_operand.vmem [shape: f32[1,32], index: 8, kind: input, shape index: {}]
  %s9 = inlined_call_operand.vmem [shape: bf16[32,32], index: 9, kind: input, shape index: {}]
  %s10 = inlined_call_operand.vmem [shape: bf16[32,32], index: 10, kind: input, shape index: {}]
  %s11 = inlined_call_operand.vmem [shape: bf16[32,32], index: 11, kind: input, shape index: {}]
  %s12 = inlined_call_operand.vmem [shape: bf16[32,32], index: 12, kind: input, shape index: {}]
  %s13 = inlined_call_operand.vmem [shape: bf16[32,32], index: 13, kind: input, shape index: {}]
  %s14 = inlined_call_operand.vmem [shape: bf16[32,32], index: 14, kind: input, shape index: {}]
  %s15 = inlined_call_operand.vmem [shape: f32[1,32], index: 15, kind: input, shape index: {}]
  %s16 = inlined_call_operand.vmem [shape: f32[1,32], index: 16, kind: input, shape index: {}]
  %s17 = inlined_call_operand.vmem [shape: f32[1,32], index: 17, kind: input, shape index: {}]
  %s18 = inlined_call_operand.vmem [shape: f32[1,32], index: 18, kind: input, shape index: {}]
  %s19 = inlined_call_operand.vmem [shape: f32[1,32], index: 19, kind: input, shape index: {}]
  %s20 = inlined_call_operand.vmem [shape: f32[1,32], index: 20, kind: input, shape index: {}]
  %s21 = inlined_call_operand.vmem [shape: f32[1,32], index: 21, kind: input, shape index: {}]
  %s22 = inlined_call_operand.<no memory space> [shape: f32[1,1], index: 22, kind: input, shape index: {}]
  %s23 = inlined_call_operand.hbm [shape: f32[2,32], index: 23, kind: output, shape index: {0}]
  %s24 = inlined_call_operand.hbm [shape: f32[1,1], index: 24, kind: output, shape index: {1}]
  %25 = xla_tuple %s23, %s24
  %s26 = sld [smem:[#allocation0]]
  $region110: #{r_critic_forward.1} parent=0
    _
  %s28 = ssub.s32 1, %s26
  %s29 = scalar_select 0, %s28, %s26
  %v30 = vstv %s22
  %31 = vst [vmem:[#allocation2] sm:$0x1] %v30
  $region1: #{r_critic_forward.1} parent=0
    #allocation3 [shape = 'u8[1024]{0}', space=vmem, size = 0x400, scoped, tag = 'output window, operand 0, single buffered']
    #allocation4 [shape = 's32[1]{0}', space=sflag, size = 0x4, scoped, tag = 'scoped memory for r_critic_forward.1']
    #allocation5 [shape = 'u8[512]{0}', space=vmem, size = 0x400, scoped, tag = 'output window, operand 1, single buffered']
    #allocation6 [shape = 's32[1]{0}', space=sflag, size = 0x4, scoped, tag = 'scoped memory for r_critic_forward.1']
    %32 = vsyncpa [#allocation4], 0
    %33 = vsyncpa [#allocation6], 0
    // Predicated region
    $region2: #{r_critic_forward.1} parent=1 // pred_check
      _
    $region3: #{r_critic_forward.1} parent=1 // pred_check_branch
      %35 = sbr.rel (0) target = $region5
    $region4: #{r_critic_forward.1} parent=1 // pred_region
      _
    $region5: #{r_critic_forward.1} parent=1 // pred_fallthru
      _
    // Predicated region
    $region6: #{r_critic_forward.1} parent=1 // pred_check
      _
    $region7: #{r_critic_forward.1} parent=1 // pred_check_branch
      %37 = sbr.rel (0) target = $region9
    $region8: #{r_critic_forward.1} parent=1 // pred_region
      _
    $region9: #{r_critic_forward.1} parent=1 // pred_fallthru
      _
    // Predicated region
    $region10: #{r_critic_forward.1} parent=1 // pred_check
      _
    $region11: #{r_critic_forward.1} parent=1 // pred_check_branch
      %39 = sbr.rel (0) target = $region13
    $region12: #{r_critic_forward.1} parent=1 // pred_region
      _
    $region13: #{r_critic_forward.1} parent=1 // pred_fallthru
      _
    // Predicated region
    $region14: #{r_critic_forward.1} parent=1 // pred_check
      _
    $region15: #{r_critic_forward.1} parent=1 // pred_check_branch
      %41 = sbr.rel (0) target = $region17
    $region16: #{r_critic_forward.1} parent=1 // pred_region
      _
    $region17: #{r_critic_forward.1} parent=1 // pred_fallthru
      _
    // Predicated region
    $region18: #{r_critic_forward.1} parent=1 // pred_check
      _
    $region19: #{r_critic_forward.1} parent=1 // pred_check_branch
      %43 = sbr.rel (0) target = $region21
    $region20: #{r_critic_forward.1} parent=1 // pred_region
      _
    $region21: #{r_critic_forward.1} parent=1 // pred_fallthru
      _
    // Predicated region
    $region22: #{r_critic_forward.1} parent=1 // pred_check
      _
    $region23: #{r_critic_forward.1} parent=1 // pred_check_branch
      %45 = sbr.rel (0) target = $region25
    $region24: #{r_critic_forward.1} parent=1 // pred_region
      _
    $region25: #{r_critic_forward.1} parent=1 // pred_fallthru
      _
    // Predicated region
    $region26: #{r_critic_forward.1} parent=1 // pred_check
      _
    $region27: #{r_critic_forward.1} parent=1 // pred_check_branch
      %47 = sbr.rel (0) target = $region29
    $region28: #{r_critic_forward.1} parent=1 // pred_region
      _
    $region29: #{r_critic_forward.1} parent=1 // pred_fallthru
      _
    // Predicated region
    $region30: #{r_critic_forward.1} parent=1 // pred_check
      _
    $region31: #{r_critic_forward.1} parent=1 // pred_check_branch
      %49 = sbr.rel (0) target = $region33
    $region32: #{r_critic_forward.1} parent=1 // pred_region
      _
    $region33: #{r_critic_forward.1} parent=1 // pred_fallthru
      _
    // Predicated region
    $region34: #{r_critic_forward.1} parent=1 // pred_check
      _
    $region35: #{r_critic_forward.1} parent=1 // pred_check_branch
      %51 = sbr.rel (0) target = $region37
    $region36: #{r_critic_forward.1} parent=1 // pred_region
      _
    $region37: #{r_critic_forward.1} parent=1 // pred_fallthru
      _
    // Predicated region
    $region38: #{r_critic_forward.1} parent=1 // pred_check
      _
    $region39: #{r_critic_forward.1} parent=1 // pred_check_branch
      %53 = sbr.rel (0) target = $region41
    $region40: #{r_critic_forward.1} parent=1 // pred_region
      _
    $region41: #{r_critic_forward.1} parent=1 // pred_fallthru
      _
    // Predicated region
    $region42: #{r_critic_forward.1} parent=1 // pred_check
      _
    $region43: #{r_critic_forward.1} parent=1 // pred_check_branch
      %55 = sbr.rel (0) target = $region45
    $region44: #{r_critic_forward.1} parent=1 // pred_region
      _
    $region45: #{r_critic_forward.1} parent=1 // pred_fallthru
      _
    // Predicated region
    $region46: #{r_critic_forward.1} parent=1 // pred_check
      _
    $region47: #{r_critic_forward.1} parent=1 // pred_check_branch
      %57 = sbr.rel (0) target = $region49
    $region48: #{r_critic_forward.1} parent=1 // pred_region
      _
    $region49: #{r_critic_forward.1} parent=1 // pred_fallthru
      _
    // Predicated region
    $region50: #{r_critic_forward.1} parent=1 // pred_check
      _
    $region51: #{r_critic_forward.1} parent=1 // pred_check_branch
      %59 = sbr.rel (0) target = $region53
    $region52: #{r_critic_forward.1} parent=1 // pred_region
      _
    $region53: #{r_critic_forward.1} parent=1 // pred_fallthru
      _
    // Predicated region
    $region54: #{r_critic_forward.1} parent=1 // pred_check
      _
    $region55: #{r_critic_forward.1} parent=1 // pred_check_branch
      %61 = sbr.rel (0) target = $region57
    $region56: #{r_critic_forward.1} parent=1 // pred_region
      _
    $region57: #{r_critic_forward.1} parent=1 // pred_fallthru
      _
    // Predicated region
    $region58: #{r_critic_forward.1} parent=1 // pred_check
      _
    $region59: #{r_critic_forward.1} parent=1 // pred_check_branch
      %63 = sbr.rel (0) target = $region61
    $region60: #{r_critic_forward.1} parent=1 // pred_region
      _
    $region61: #{r_critic_forward.1} parent=1 // pred_fallthru
      _
    // Predicated region
    $region62: #{r_critic_forward.1} parent=1 // pred_check
      _
    $region63: #{r_critic_forward.1} parent=1 // pred_check_branch
      %65 = sbr.rel (0) target = $region65
    $region64: #{r_critic_forward.1} parent=1 // pred_region
      _
    $region65: #{r_critic_forward.1} parent=1 // pred_fallthru
      _
    // Predicated region
    $region66: #{r_critic_forward.1} parent=1 // pred_check
      _
    $region67: #{r_critic_forward.1} parent=1 // pred_check_branch
      %67 = sbr.rel (0) target = $region69
    $region68: #{r_critic_forward.1} parent=1 // pred_region
      _
    $region69: #{r_critic_forward.1} parent=1 // pred_fallthru
      _
    // Predicated region
    $region70: #{r_critic_forward.1} parent=1 // pred_check
      _
    $region71: #{r_critic_forward.1} parent=1 // pred_check_branch
      %69 = sbr.rel (0) target = $region73
    $region72: #{r_critic_forward.1} parent=1 // pred_region
      _
    $region73: #{r_critic_forward.1} parent=1 // pred_fallthru
      _
    // Predicated region
    $region74: #{r_critic_forward.1} parent=1 // pred_check
      _
    $region75: #{r_critic_forward.1} parent=1 // pred_check_branch
      %71 = sbr.rel (0) target = $region77
    $region76: #{r_critic_forward.1} parent=1 // pred_region
      _
    $region77: #{r_critic_forward.1} parent=1 // pred_fallthru
      _
    // Predicated region
    $region78: #{r_critic_forward.1} parent=1 // pred_check
      _
    $region79: #{r_critic_forward.1} parent=1 // pred_check_branch
      %73 = sbr.rel (0) target = $region81
    $region80: #{r_critic_forward.1} parent=1 // pred_region
      _
    $region81: #{r_critic_forward.1} parent=1 // pred_fallthru
      _
    // Predicated region
    $region82: #{r_critic_forward.1} parent=1 // pred_check
      _
    $region83: #{r_critic_forward.1} parent=1 // pred_check_branch
      %75 = sbr.rel (0) target = $region85
    $region84: #{r_critic_forward.1} parent=1 // pred_region
      _
    $region85: #{r_critic_forward.1} parent=1 // pred_fallthru
      _
    // Predicated region
    $region86: #{r_critic_forward.1} parent=1 // pred_check
      _
    $region87: #{r_critic_forward.1} parent=1 // pred_check_branch
      %77 = sbr.rel (0) target = $region89
    $region88: #{r_critic_forward.1} parent=1 // pred_region
      _
    $region89: #{r_critic_forward.1} parent=1 // pred_fallthru
      _
    // Predicated region
    $region90: #{r_critic_forward.1} parent=1 // pred_check
      _
    $region91: #{r_critic_forward.1} parent=1 // pred_check_branch
      %79 = sbr.rel (0) target = $region93
    $region92: #{r_critic_forward.1} parent=1 // pred_region
      _
    $region93: #{r_critic_forward.1} parent=1 // pred_fallthru
      _
    %v81 = vld [vmem:[%s0] sm:$0xff]
    %v82 = vld [vmem:[%s0 + $0x8] sm:$0xff]
    %v83 = vld [vmem:[%s0 + $0x10] sm:$0xf]
    %v84 = vld [vmem:[%s3] sm:$0xff]
    %v85 = vld [vmem:[%s3 + $0x8] sm:$0xff]
    %v86 = vld [vmem:[%s3 + $0x10] sm:$0xff]
    %v87 = vld [vmem:[%s3 + $0x18] sm:$0xff]
    %v91 = vcombine.high %v81, %v81
    %v92 = vcombine.high %v82, %v82
    %93 = vrot.lane.b32.xlu0 %v81, 127
    %v94 = vpop.permute.xlu0 %93
    %95 = vrot.lane.b32.xlu0 %v91, 127
    %v96 = vpop.permute.xlu0 %95
    %97 = vrot.lane.b32.xlu0 %v82, 127
    %v98 = vpop.permute.xlu0 %97
    %99 = vrot.lane.b32.xlu0 %v92, 127
    %v100 = vpop.permute.xlu0 %99
    %101 = vrot.lane.b32.xlu0 %v83, 127
    %v102 = vpop.permute.xlu0 %101
    %vm103 = vcmask 1039360
    %v104 = vsel %vm103, %v94, %v96
    %v105 = vsel %vm103, %v96, %v98
    %v106 = vsel %vm103, %v98, %v100
    %v107 = vsel %vm103, %v100, %v102
    %vm108 = vcmask 31744
    %v110 = vsel %vm108, %v86, 0
    %v113 = vsel %vm108, %v87, 0
    %vm115 = vcmask 1043456
    %v116 = vsel %vm115, %v104, 0
    %v118 = vsel %vm115, %v105, 0
    %v120 = vsel %vm115, %v106, 0
    %v122 = vsel %vm115, %v107, 0
    %124 = vmatprep.subr.mxu0 %v118
    %125 = vmatpush1.msra.mxu0 %v116
    %126 = vmatprep.subr.mxu0 0.0
    %127 = vmatpush1.msra.mxu0 0.0
    %128 = vmatprep.subr.mxu0 0.0
    %129 = vmatpush1.msra.mxu0 0.0
    %130 = vmatprep.subr.mxu0 0.0
    %131 = vmatpush1.msra.mxu0 0.0
    %132 = vmatprep.subr.mxu0 0.0
    %133 = vmatpush1.msra.mxu0 0.0
    %134 = vmatprep.subr.mxu0 0.0
    %135 = vmatpush1.msra.mxu0 0.0
    %136 = vmatprep.subr.mxu0 0.0
    %137 = vmatpush1.msra.mxu0 0.0
    %138 = vmatprep.subr.mxu0 0.0
    %139 = vmatpush1.msra.mxu0 0.0
    %140 = vmatprep.subr.mxu0 0.0
    %141 = vmatpush1.msra.mxu0 0.0
    %142 = vmatprep.subr.mxu0 0.0
    %143 = vmatpush1.msra.mxu0 0.0
    %144 = vmatprep.subr.mxu0 0.0
    %145 = vmatpush1.msra.mxu0 0.0
    %146 = vmatprep.subr.mxu0 0.0
    %147 = vmatpush1.msra.mxu0 0.0
    %148 = vmatprep.subr.mxu0 0.0
    %149 = vmatpush1.msra.mxu0 0.0
    %150 = vmatprep.subr.mxu0 0.0
    %151 = vmatpush1.msra.mxu0 0.0
    %152 = vmatprep.subr.mxu0 0.0
    %153 = vmatpush1.msra.mxu0 0.0
    %154 = vmatprep.subr.mxu0 0.0
    %155 = vmatpush1.msra.mxu0 0.0
    %156 = vmatprep.subr.mxu0 0.0
    %157 = vmatpush1.msra.mxu0 0.0
    %158 = vmatprep.subr.mxu0 0.0
    %159 = vmatpush1.msra.mxu0 0.0
    %160 = vmatprep.subr.mxu0 0.0
    %161 = vmatpush1.msra.mxu0 0.0
    %162 = vmatprep.subr.mxu0 0.0
    %163 = vmatpush1.msra.mxu0 0.0
    %164 = vmatprep.subr.mxu0 0.0
    %165 = vmatpush1.msra.mxu0 0.0
    %166 = vmatprep.subr.mxu0 0.0
    %167 = vmatpush1.msra.mxu0 0.0
    %168 = vmatprep.subr.mxu0 0.0
    %169 = vmatpush1.msra.mxu0 0.0
    %170 = vmatprep.subr.mxu0 0.0
    %171 = vmatpush1.msra.mxu0 0.0
    %172 = vmatprep.subr.mxu0 0.0
    %173 = vmatpush1.msra.mxu0 0.0
    %174 = vmatprep.subr.mxu0 0.0
    %175 = vmatpush1.msra.mxu0 0.0
    %176 = vmatprep.subr.mxu0 0.0
    %177 = vmatpush1.msra.mxu0 0.0
    %178 = vmatprep.subr.mxu0 0.0
    %179 = vmatpush1.msra.mxu0 0.0
    %180 = vmatprep.subr.mxu0 0.0
    %181 = vmatpush1.msra.mxu0 0.0
    %182 = vmatprep.subr.mxu0 0.0
    %183 = vmatpush1.msra.mxu0 0.0
    %184 = vmatprep.subr.mxu0 0.0
    %185 = vmatpush1.msra.mxu0 0.0
    %186 = vmatprep.subr.mxu0 0.0
    %187 = vmatpush1.msra.mxu0 0.0
    %188 = vmatprep.mubr.f32.mxu0 0.0
    %189 = vmatmul.mubr.f32.gmra.mrb[0].mxu0 %v110
    %v190 = vpop.f32.mrb[0].mxu0
    %v191 = vadd.f32 0.0, %v190
    %v192 = vpop.f32.mrb[0].mxu0
    %v193 = vadd.f32 0.0, %v192
    %194 = vmatprep.mubr.f32.mxu0 0.0
    %195 = vmatmul.mubr.f32.gmra.mrb[0].mxu0 %v113
    %v196 = vpop.f32.mrb[0].mxu0
    %v197 = vadd.f32 0.0, %v196
    %v198 = vpop.f32.mrb[0].mxu0
    %v199 = vadd.f32 0.0, %v198
    %200 = vdwg.mxu0
    %201 = vmatprep.subr.mxu0 %v122
    %202 = vmatpush1.msra.mxu0 %v120
    %203 = vmatprep.subr.mxu0 0.0
    %204 = vmatpush1.msra.mxu0 0.0
    %205 = vmatprep.subr.mxu0 0.0
    %206 = vmatpush1.msra.mxu0 0.0
    %207 = vmatprep.subr.mxu0 0.0
    %208 = vmatpush1.msra.mxu0 0.0
    %209 = vmatprep.subr.mxu0 0.0
    %210 = vmatpush1.msra.mxu0 0.0
    %211 = vmatprep.subr.mxu0 0.0
    %212 = vmatpush1.msra.mxu0 0.0
    %213 = vmatprep.subr.mxu0 0.0
    %214 = vmatpush1.msra.mxu0 0.0
    %215 = vmatprep.subr.mxu0 0.0
    %216 = vmatpush1.msra.mxu0 0.0
    %217 = vmatprep.subr.mxu0 0.0
    %218 = vmatpush1.msra.mxu0 0.0
    %219 = vmatprep.subr.mxu0 0.0
    %220 = vmatpush1.msra.mxu0 0.0
    %221 = vmatprep.subr.mxu0 0.0
    %222 = vmatpush1.msra.mxu0 0.0
    %223 = vmatprep.subr.mxu0 0.0
    %224 = vmatpush1.msra.mxu0 0.0
    %225 = vmatprep.subr.mxu0 0.0
    %226 = vmatpush1.msra.mxu0 0.0
    %227 = vmatprep.subr.mxu0 0.0
    %228 = vmatpush1.msra.mxu0 0.0
    %229 = vmatprep.subr.mxu0 0.0
    %230 = vmatpush1.msra.mxu0 0.0
    %231 = vmatprep.subr.mxu0 0.0
    %232 = vmatpush1.msra.mxu0 0.0
    %233 = vmatprep.subr.mxu0 0.0
    %234 = vmatpush1.msra.mxu0 0.0
    %235 = vmatprep.subr.mxu0 0.0
    %236 = vmatpush1.msra.mxu0 0.0
    %237 = vmatprep.subr.mxu0 0.0
    %238 = vmatpush1.msra.mxu0 0.0
    %239 = vmatprep.subr.mxu0 0.0
    %240 = vmatpush1.msra.mxu0 0.0
    %241 = vmatprep.subr.mxu0 0.0
    %242 = vmatpush1.msra.mxu0 0.0
    %243 = vmatprep.subr.mxu0 0.0
    %244 = vmatpush1.msra.mxu0 0.0
    %245 = vmatprep.subr.mxu0 0.0
    %246 = vmatpush1.msra.mxu0 0.0
    %247 = vmatprep.subr.mxu0 0.0
    %248 = vmatpush1.msra.mxu0 0.0
    %249 = vmatprep.subr.mxu0 0.0
    %250 = vmatpush1.msra.mxu0 0.0
    %251 = vmatprep.subr.mxu0 0.0
    %252 = vmatpush1.msra.mxu0 0.0
    %253 = vmatprep.subr.mxu0 0.0
    %254 = vmatpush1.msra.mxu0 0.0
    %255 = vmatprep.subr.mxu0 0.0
    %256 = vmatpush1.msra.mxu0 0.0
    %257 = vmatprep.subr.mxu0 0.0
    %258 = vmatpush1.msra.mxu0 0.0
    %259 = vmatprep.subr.mxu0 0.0
    %260 = vmatpush1.msra.mxu0 0.0
    %261 = vmatprep.subr.mxu0 0.0
    %262 = vmatpush1.msra.mxu0 0.0
    %263 = vmatprep.subr.mxu0 0.0
    %264 = vmatpush1.msra.mxu0 0.0
    %265 = vmatprep.mubr.f32.mxu0 0.0
    %266 = vmatmul.mubr.f32.gmra.mrb[0].mxu0 %v110
    %v267 = vpop.f32.mrb[0].mxu0
    %v268 = vadd.f32 0.0, %v267
    %v269 = vpop.f32.mrb[0].mxu0
    %v270 = vadd.f32 0.0, %v269
    %271 = vmatprep.mubr.f32.mxu0 0.0
    %272 = vmatmul.mubr.f32.gmra.mrb[0].mxu0 %v113
    %v273 = vpop.f32.mrb[0].mxu0
    %v274 = vadd.f32 0.0, %v273
    %v275 = vpop.f32.mrb[0].mxu0
    %v276 = vadd.f32 0.0, %v275
    %277 = vdwg.mxu0
    %v279 = vsel %vm108, %v84, 0
    %v282 = vsel %vm108, %v85, 0
    %v284 = vsel %vm115, %v81, 0
    %v286 = vsel %vm115, %v91, 0
    %v288 = vsel %vm115, %v82, 0
    %v290 = vsel %vm115, %v92, 0
    %292 = vmatprep.subr.mxu0 %v286
    %293 = vmatpush1.msra.mxu0 %v284
    %294 = vmatprep.subr.mxu0 0.0
    %295 = vmatpush1.msra.mxu0 0.0
    %296 = vmatprep.subr.mxu0 0.0
    %297 = vmatpush1.msra.mxu0 0.0
    %298 = vmatprep.subr.mxu0 0.0
    %299 = vmatpush1.msra.mxu0 0.0
    %300 = vmatprep.subr.mxu0 0.0
    %301 = vmatpush1.msra.mxu0 0.0
    %302 = vmatprep.subr.mxu0 0.0
    %303 = vmatpush1.msra.mxu0 0.0
    %304 = vmatprep.subr.mxu0 0.0
    %305 = vmatpush1.msra.mxu0 0.0
    %306 = vmatprep.subr.mxu0 0.0
    %307 = vmatpush1.msra.mxu0 0.0
    %308 = vmatprep.subr.mxu0 0.0
    %309 = vmatpush1.msra.mxu0 0.0
    %310 = vmatprep.subr.mxu0 0.0
    %311 = vmatpush1.msra.mxu0 0.0
    %312 = vmatprep.subr.mxu0 0.0
    %313 = vmatpush1.msra.mxu0 0.0
    %314 = vmatprep.subr.mxu0 0.0
    %315 = vmatpush1.msra.mxu0 0.0
    %316 = vmatprep.subr.mxu0 0.0
    %317 = vmatpush1.msra.mxu0 0.0
    %318 = vmatprep.subr.mxu0 0.0
    %319 = vmatpush1.msra.mxu0 0.0
    %320 = vmatprep.subr.mxu0 0.0
    %321 = vmatpush1.msra.mxu0 0.0
    %322 = vmatprep.subr.mxu0 0.0
    %323 = vmatpush1.msra.mxu0 0.0
    %324 = vmatprep.subr.mxu0 0.0
    %325 = vmatpush1.msra.mxu0 0.0
    %326 = vmatprep.subr.mxu0 0.0
    %327 = vmatpush1.msra.mxu0 0.0
    %328 = vmatprep.subr.mxu0 0.0
    %329 = vmatpush1.msra.mxu0 0.0
    %330 = vmatprep.subr.mxu0 0.0
    %331 = vmatpush1.msra.mxu0 0.0
    %332 = vmatprep.subr.mxu0 0.0
    %333 = vmatpush1.msra.mxu0 0.0
    %334 = vmatprep.subr.mxu0 0.0
    %335 = vmatpush1.msra.mxu0 0.0
    %336 = vmatprep.subr.mxu0 0.0
    %337 = vmatpush1.msra.mxu0 0.0
    %338 = vmatprep.subr.mxu0 0.0
    %339 = vmatpush1.msra.mxu0 0.0
    %340 = vmatprep.subr.mxu0 0.0
    %341 = vmatpush1.msra.mxu0 0.0
    %342 = vmatprep.subr.mxu0 0.0
    %343 = vmatpush1.msra.mxu0 0.0
    %344 = vmatprep.subr.mxu0 0.0
    %345 = vmatpush1.msra.mxu0 0.0
    %346 = vmatprep.subr.mxu0 0.0
    %347 = vmatpush1.msra.mxu0 0.0
    %348 = vmatprep.subr.mxu0 0.0
    %349 = vmatpush1.msra.mxu0 0.0
    %350 = vmatprep.subr.mxu0 0.0
    %351 = vmatpush1.msra.mxu0 0.0
    %352 = vmatprep.subr.mxu0 0.0
    %353 = vmatpush1.msra.mxu0 0.0
    %354 = vmatprep.subr.mxu0 0.0
    %355 = vmatpush1.msra.mxu0 0.0
    %356 = vmatprep.mubr.f32.mxu0 0.0
    %357 = vmatmul.mubr.f32.gmra.mrb[0].mxu0 %v279
    %v358 = vpop.f32.mrb[0].mxu0
    %v359 = vadd.f32 %v191, %v358
    %v360 = vpop.f32.mrb[0].mxu0
    %v361 = vadd.f32 %v193, %v360
    %362 = vmatprep.mubr.f32.mxu0 0.0
    %363 = vmatmul.mubr.f32.gmra.mrb[0].mxu0 %v282
    %v364 = vpop.f32.mrb[0].mxu0
    %v365 = vadd.f32 %v197, %v364
    %v366 = vpop.f32.mrb[0].mxu0
    %v367 = vadd.f32 %v199, %v366
    %368 = vdwg.mxu0
    %369 = vmatprep.subr.mxu0 %v290
    %370 = vmatpush1.msra.mxu0 %v288
    %371 = vmatprep.subr.mxu0 0.0
    %372 = vmatpush1.msra.mxu0 0.0
    %373 = vmatprep.subr.mxu0 0.0
    %374 = vmatpush1.msra.mxu0 0.0
    %375 = vmatprep.subr.mxu0 0.0
    %376 = vmatpush1.msra.mxu0 0.0
    %377 = vmatprep.subr.mxu0 0.0
    %378 = vmatpush1.msra.mxu0 0.0
    %379 = vmatprep.subr.mxu0 0.0
    %380 = vmatpush1.msra.mxu0 0.0
    %381 = vmatprep.subr.mxu0 0.0
    %382 = vmatpush1.msra.mxu0 0.0
    %383 = vmatprep.subr.mxu0 0.0
    %384 = vmatpush1.msra.mxu0 0.0
    %385 = vmatprep.subr.mxu0 0.0
    %386 = vmatpush1.msra.mxu0 0.0
    %387 = vmatprep.subr.mxu0 0.0
    %388 = vmatpush1.msra.mxu0 0.0
    %389 = vmatprep.subr.mxu0 0.0
    %390 = vmatpush1.msra.mxu0 0.0
    %391 = vmatprep.subr.mxu0 0.0
    %392 = vmatpush1.msra.mxu0 0.0
    %393 = vmatprep.subr.mxu0 0.0
    %394 = vmatpush1.msra.mxu0 0.0
    %395 = vmatprep.subr.mxu0 0.0
    %396 = vmatpush1.msra.mxu0 0.0
    %397 = vmatprep.subr.mxu0 0.0
    %398 = vmatpush1.msra.mxu0 0.0
    %399 = vmatprep.subr.mxu0 0.0
    %400 = vmatpush1.msra.mxu0 0.0
    %401 = vmatprep.subr.mxu0 0.0
    %402 = vmatpush1.msra.mxu0 0.0
    %403 = vmatprep.subr.mxu0 0.0
    %404 = vmatpush1.msra.mxu0 0.0
    %405 = vmatprep.subr.mxu0 0.0
    %406 = vmatpush1.msra.mxu0 0.0
    %407 = vmatprep.subr.mxu0 0.0
    %408 = vmatpush1.msra.mxu0 0.0
    %409 = vmatprep.subr.mxu0 0.0
    %410 = vmatpush1.msra.mxu0 0.0
    %411 = vmatprep.subr.mxu0 0.0
    %412 = vmatpush1.msra.mxu0 0.0
    %413 = vmatprep.subr.mxu0 0.0
    %414 = vmatpush1.msra.mxu0 0.0
    %415 = vmatprep.subr.mxu0 0.0
    %416 = vmatpush1.msra.mxu0 0.0
    %417 = vmatprep.subr.mxu0 0.0
    %418 = vmatpush1.msra.mxu0 0.0
    %419 = vmatprep.subr.mxu0 0.0
    %420 = vmatpush1.msra.mxu0 0.0
    %421 = vmatprep.subr.mxu0 0.0
    %422 = vmatpush1.msra.mxu0 0.0
    %423 = vmatprep.subr.mxu0 0.0
    %424 = vmatpush1.msra.mxu0 0.0
    %425 = vmatprep.subr.mxu0 0.0
    %426 = vmatpush1.msra.mxu0 0.0
    %427 = vmatprep.subr.mxu0 0.0
    %428 = vmatpush1.msra.mxu0 0.0
    %429 = vmatprep.subr.mxu0 0.0
    %430 = vmatpush1.msra.mxu0 0.0
    %431 = vmatprep.subr.mxu0 0.0
    %432 = vmatpush1.msra.mxu0 0.0
    %433 = vmatprep.mubr.f32.mxu0 0.0
    %434 = vmatmul.mubr.f32.gmra.mrb[0].mxu0 %v279
    %v435 = vpop.f32.mrb[0].mxu0
    %v436 = vadd.f32 %v268, %v435
    %v437 = vpop.f32.mrb[0].mxu0
    %v438 = vadd.f32 %v270, %v437
    %439 = vmatprep.mubr.f32.mxu0 0.0
    %440 = vmatmul.mubr.f32.gmra.mrb[0].mxu0 %v282
    %v441 = vpop.f32.mrb[0].mxu0
    %v442 = vadd.f32 %v274, %v441
    %v443 = vpop.f32.mrb[0].mxu0
    %v444 = vadd.f32 %v276, %v443
    %445 = vdwg.mxu0
    %v446 = vld [vmem:[%s3 + $0x20] sm:$0xff]
    %v447 = vld [vmem:[%s3 + $0x28] sm:$0xff]
    %448 = vrot.lane.b32.xlu0 %v81, 126
    %v449 = vpop.permute.xlu0 %448
    %450 = vrot.lane.b32.xlu0 %v91, 126
    %v451 = vpop.permute.xlu0 %450
    %452 = vrot.lane.b32.xlu0 %v82, 126
    %v453 = vpop.permute.xlu0 %452
    %454 = vrot.lane.b32.xlu0 %v92, 126
    %v455 = vpop.permute.xlu0 %454
    %456 = vrot.lane.b32.xlu0 %v83, 126
    %v457 = vpop.permute.xlu0 %456
    %vm458 = vcmask 1031168
    %v459 = vsel %vm458, %v449, %v451
    %v460 = vsel %vm458, %v451, %v453
    %v461 = vsel %vm458, %v453, %v455
    %v462 = vsel %vm458, %v455, %v457
    %v464 = vsel %vm108, %v446, 0
    %v467 = vsel %vm108, %v447, 0
    %v469 = vsel %vm115, %v459, 0
    %v471 = vsel %vm115, %v460, 0
    %v473 = vsel %vm115, %v461, 0
    %v475 = vsel %vm115, %v462, 0
    %477 = vmatprep.subr.mxu0 %v471
    %478 = vmatpush1.msra.mxu0 %v469
    %479 = vmatprep.subr.mxu0 0.0
    %480 = vmatpush1.msra.mxu0 0.0
    %481 = vmatprep.subr.mxu0 0.0
    %482 = vmatpush1.msra.mxu0 0.0
    %483 = vmatprep.subr.mxu0 0.0
    %484 = vmatpush1.msra.mxu0 0.0
    %485 = vmatprep.subr.mxu0 0.0
    %486 = vmatpush1.msra.mxu0 0.0
    %487 = vmatprep.subr.mxu0 0.0
    %488 = vmatpush1.msra.mxu0 0.0
    %489 = vmatprep.subr.mxu0 0.0
    %490 = vmatpush1.msra.mxu0 0.0
    %491 = vmatprep.subr.mxu0 0.0
    %492 = vmatpush1.msra.mxu0 0.0
    %493 = vmatprep.subr.mxu0 0.0
    %494 = vmatpush1.msra.mxu0 0.0
    %495 = vmatprep.subr.mxu0 0.0
    %496 = vmatpush1.msra.mxu0 0.0
    %497 = vmatprep.subr.mxu0 0.0
    %498 = vmatpush1.msra.mxu0 0.0
    %499 = vmatprep.subr.mxu0 0.0
    %500 = vmatpush1.msra.mxu0 0.0
    %501 = vmatprep.subr.mxu0 0.0
    %502 = vmatpush1.msra.mxu0 0.0
    %503 = vmatprep.subr.mxu0 0.0
    %504 = vmatpush1.msra.mxu0 0.0
    %505 = vmatprep.subr.mxu0 0.0
    %506 = vmatpush1.msra.mxu0 0.0
    %507 = vmatprep.subr.mxu0 0.0
    %508 = vmatpush1.msra.mxu0 0.0
    %509 = vmatprep.subr.mxu0 0.0
    %510 = vmatpush1.msra.mxu0 0.0
    %511 = vmatprep.subr.mxu0 0.0
    %512 = vmatpush1.msra.mxu0 0.0
    %513 = vmatprep.subr.mxu0 0.0
    %514 = vmatpush1.msra.mxu0 0.0
    %515 = vmatprep.subr.mxu0 0.0
    %516 = vmatpush1.msra.mxu0 0.0
    %517 = vmatprep.subr.mxu0 0.0
    %518 = vmatpush1.msra.mxu0 0.0
    %519 = vmatprep.subr.mxu0 0.0
    %520 = vmatpush1.msra.mxu0 0.0
    %521 = vmatprep.subr.mxu0 0.0
    %522 = vmatpush1.msra.mxu0 0.0
    %523 = vmatprep.subr.mxu0 0.0
    %524 = vmatpush1.msra.mxu0 0.0
    %525 = vmatprep.subr.mxu0 0.0
    %526 = vmatpush1.msra.mxu0 0.0
    %527 = vmatprep.subr.mxu0 0.0
    %528 = vmatpush1.msra.mxu0 0.0
    %529 = vmatprep.subr.mxu0 0.0
    %530 = vmatpush1.msra.mxu0 0.0
    %531 = vmatprep.subr.mxu0 0.0
    %532 = vmatpush1.msra.mxu0 0.0
    %533 = vmatprep.subr.mxu0 0.0
    %534 = vmatpush1.msra.mxu0 0.0
    %535 = vmatprep.subr.mxu0 0.0
    %536 = vmatpush1.msra.mxu0 0.0
    %537 = vmatprep.subr.mxu0 0.0
    %538 = vmatpush1.msra.mxu0 0.0
    %539 = vmatprep.subr.mxu0 0.0
    %540 = vmatpush1.msra.mxu0 0.0
    %541 = vmatprep.mubr.f32.mxu0 0.0
    %542 = vmatmul.mubr.f32.gmra.mrb[0].mxu0 %v464
    %v543 = vpop.f32.mrb[0].mxu0
    %v544 = vadd.f32 0.0, %v543
    %v545 = vpop.f32.mrb[0].mxu0
    %v546 = vadd.f32 0.0, %v545
    %547 = vmatprep.mubr.f32.mxu0 0.0
    %548 = vmatmul.mubr.f32.gmra.mrb[0].mxu0 %v467
    %v549 = vpop.f32.mrb[0].mxu0
    %v550 = vadd.f32 0.0, %v549
    %v551 = vpop.f32.mrb[0].mxu0
    %v552 = vadd.f32 0.0, %v551
    %553 = vdwg.mxu0
    %554 = vmatprep.subr.mxu0 %v475
    %555 = vmatpush1.msra.mxu0 %v473
    %556 = vmatprep.subr.mxu0 0.0
    %557 = vmatpush1.msra.mxu0 0.0
    %558 = vmatprep.subr.mxu0 0.0
    %559 = vmatpush1.msra.mxu0 0.0
    %560 = vmatprep.subr.mxu0 0.0
    %561 = vmatpush1.msra.mxu0 0.0
    %562 = vmatprep.subr.mxu0 0.0
    %563 = vmatpush1.msra.mxu0 0.0
    %564 = vmatprep.subr.mxu0 0.0
    %565 = vmatpush1.msra.mxu0 0.0
    %566 = vmatprep.subr.mxu0 0.0
    %567 = vmatpush1.msra.mxu0 0.0
    %568 = vmatprep.subr.mxu0 0.0
    %569 = vmatpush1.msra.mxu0 0.0
    %570 = vmatprep.subr.mxu0 0.0
    %571 = vmatpush1.msra.mxu0 0.0
    %572 = vmatprep.subr.mxu0 0.0
    %573 = vmatpush1.msra.mxu0 0.0
    %574 = vmatprep.subr.mxu0 0.0
    %575 = vmatpush1.msra.mxu0 0.0
    %576 = vmatprep.subr.mxu0 0.0
    %577 = vmatpush1.msra.mxu0 0.0
    %578 = vmatprep.subr.mxu0 0.0
    %579 = vmatpush1.msra.mxu0 0.0
    %580 = vmatprep.subr.mxu0 0.0
    %581 = vmatpush1.msra.mxu0 0.0
    %582 = vmatprep.subr.mxu0 0.0
    %583 = vmatpush1.msra.mxu0 0.0
    %584 = vmatprep.subr.mxu0 0.0
    %585 = vmatpush1.msra.mxu0 0.0
    %586 = vmatprep.subr.mxu0 0.0
    %587 = vmatpush1.msra.mxu0 0.0
    %588 = vmatprep.subr.mxu0 0.0
    %589 = vmatpush1.msra.mxu0 0.0
    %590 = vmatprep.subr.mxu0 0.0
    %591 = vmatpush1.msra.mxu0 0.0
    %592 = vmatprep.subr.mxu0 0.0
    %593 = vmatpush1.msra.mxu0 0.0
    %594 = vmatprep.subr.mxu0 0.0
    %595 = vmatpush1.msra.mxu0 0.0
    %596 = vmatprep.subr.mxu0 0.0
    %597 = vmatpush1.msra.mxu0 0.0
    %598 = vmatprep.subr.mxu0 0.0
    %599 = vmatpush1.msra.mxu0 0.0
    %600 = vmatprep.subr.mxu0 0.0
    %601 = vmatpush1.msra.mxu0 0.0
    %602 = vmatprep.subr.mxu0 0.0
    %603 = vmatpush1.msra.mxu0 0.0
    %604 = vmatprep.subr.mxu0 0.0
    %605 = vmatpush1.msra.mxu0 0.0
    %606 = vmatprep.subr.mxu0 0.0
    %607 = vmatpush1.msra.mxu0 0.0
    %608 = vmatprep.subr.mxu0 0.0
    %609 = vmatpush1.msra.mxu0 0.0
    %610 = vmatprep.subr.mxu0 0.0
    %611 = vmatpush1.msra.mxu0 0.0
    %612 = vmatprep.subr.mxu0 0.0
    %613 = vmatpush1.msra.mxu0 0.0
    %614 = vmatprep.subr.mxu0 0.0
    %615 = vmatpush1.msra.mxu0 0.0
    %616 = vmatprep.subr.mxu0 0.0
    %617 = vmatpush1.msra.mxu0 0.0
    %618 = vmatprep.mubr.f32.mxu0 0.0
    %619 = vmatmul.mubr.f32.gmra.mrb[0].mxu0 %v464
    %v620 = vpop.f32.mrb[0].mxu0
    %v621 = vadd.f32 0.0, %v620
    %v622 = vpop.f32.mrb[0].mxu0
    %v623 = vadd.f32 0.0, %v622
    %624 = vmatprep.mubr.f32.mxu0 0.0
    %625 = vmatmul.mubr.f32.gmra.mrb[0].mxu0 %v467
    %v626 = vpop.f32.mrb[0].mxu0
    %v627 = vadd.f32 0.0, %v626
    %v628 = vpop.f32.mrb[0].mxu0
    %v629 = vadd.f32 0.0, %v628
    %630 = vdwg.mxu0
    %v631 = vadd.f32 %v359, %v544
    %v632 = vadd.f32 %v361, %v546
    %v633 = vadd.f32 %v436, %v621
    %v634 = vadd.f32 %v438, %v623
    %v635 = vadd.f32 %v365, %v550
    %v636 = vadd.f32 %v367, %v552
    %v637 = vadd.f32 %v442, %v627
    %v638 = vadd.f32 %v444, %v629
    %v639 = vld [vmem:[%s3 + $0x30] sm:$0xff]
    %v640 = vld [vmem:[%s3 + $0x38] sm:$0xff]
    %641 = vrot.lane.b32.xlu0 %v81, 112
    %v642 = vpop.permute.xlu0 %641
    %643 = vrot.lane.b32.xlu0 %v91, 112
    %v644 = vpop.permute.xlu0 %643
    %645 = vrot.lane.b32.xlu0 %v82, 112
    %v646 = vpop.permute.xlu0 %645
    %647 = vrot.lane.b32.xlu0 %v92, 112
    %v648 = vpop.permute.xlu0 %647
    %649 = vrot.lane.b32.xlu0 %v83, 112
    %v650 = vpop.permute.xlu0 %649
    %vm651 = vcmask 916480
    %v652 = vsel %vm651, %v642, %v644
    %v653 = vsel %vm651, %v644, %v646
    %v654 = vsel %vm651, %v646, %v648
    %v655 = vsel %vm651, %v648, %v650
    %v657 = vsel %vm108, %v639, 0
    %v660 = vsel %vm108, %v640, 0
    %v662 = vsel %vm115, %v652, 0
    %v664 = vsel %vm115, %v653, 0
    %v666 = vsel %vm115, %v654, 0
    %v668 = vsel %vm115, %v655, 0
    %670 = vmatprep.subr.mxu0 %v664
    %671 = vmatpush1.msra.mxu0 %v662
    %672 = vmatprep.subr.mxu0 0.0
    %673 = vmatpush1.msra.mxu0 0.0
    %674 = vmatprep.subr.mxu0 0.0
    %675 = vmatpush1.msra.mxu0 0.0
    %676 = vmatprep.subr.mxu0 0.0
    %677 = vmatpush1.msra.mxu0 0.0
    %678 = vmatprep.subr.mxu0 0.0
    %679 = vmatpush1.msra.mxu0 0.0
    %680 = vmatprep.subr.mxu0 0.0
    %681 = vmatpush1.msra.mxu0 0.0
    %682 = vmatprep.subr.mxu0 0.0
    %683 = vmatpush1.msra.mxu0 0.0
    %684 = vmatprep.subr.mxu0 0.0
    %685 = vmatpush1.msra.mxu0 0.0
    %686 = vmatprep.subr.mxu0 0.0
    %687 = vmatpush1.msra.mxu0 0.0
    %688 = vmatprep.subr.mxu0 0.0
    %689 = vmatpush1.msra.mxu0 0.0
    %690 = vmatprep.subr.mxu0 0.0
    %691 = vmatpush1.msra.mxu0 0.0
    %692 = vmatprep.subr.mxu0 0.0
    %693 = vmatpush1.msra.mxu0 0.0
    %694 = vmatprep.subr.mxu0 0.0
    %695 = vmatpush1.msra.mxu0 0.0
    %696 = vmatprep.subr.mxu0 0.0
    %697 = vmatpush1.msra.mxu0 0.0
    %698 = vmatprep.subr.mxu0 0.0
    %699 = vmatpush1.msra.mxu0 0.0
    %700 = vmatprep.subr.mxu0 0.0
    %701 = vmatpush1.msra.mxu0 0.0
    %702 = vmatprep.subr.mxu0 0.0
    %703 = vmatpush1.msra.mxu0 0.0
    %704 = vmatprep.subr.mxu0 0.0
    %705 = vmatpush1.msra.mxu0 0.0
    %706 = vmatprep.subr.mxu0 0.0
    %707 = vmatpush1.msra.mxu0 0.0
    %708 = vmatprep.subr.mxu0 0.0
    %709 = vmatpush1.msra.mxu0 0.0
    %710 = vmatprep.subr.mxu0 0.0
    %711 = vmatpush1.msra.mxu0 0.0
    %712 = vmatprep.subr.mxu0 0.0
    %713 = vmatpush1.msra.mxu0 0.0
    %714 = vmatprep.subr.mxu0 0.0
    %715 = vmatpush1.msra.mxu0 0.0
    %716 = vmatprep.subr.mxu0 0.0
    %717 = vmatpush1.msra.mxu0 0.0
    %718 = vmatprep.subr.mxu0 0.0
    %719 = vmatpush1.msra.mxu0 0.0
    %720 = vmatprep.subr.mxu0 0.0
    %721 = vmatpush1.msra.mxu0 0.0
    %722 = vmatprep.subr.mxu0 0.0
    %723 = vmatpush1.msra.mxu0 0.0
    %724 = vmatprep.subr.mxu0 0.0
    %725 = vmatpush1.msra.mxu0 0.0
    %726 = vmatprep.subr.mxu0 0.0
    %727 = vmatpush1.msra.mxu0 0.0
    %728 = vmatprep.subr.mxu0 0.0
    %729 = vmatpush1.msra.mxu0 0.0
    %730 = vmatprep.subr.mxu0 0.0
    %731 = vmatpush1.msra.mxu0 0.0
    %732 = vmatprep.subr.mxu0 0.0
    %733 = vmatpush1.msra.mxu0 0.0
    %734 = vmatprep.mubr.f32.mxu0 0.0
    %735 = vmatmul.mubr.f32.gmra.mrb[0].mxu0 %v657
    %v736 = vpop.f32.mrb[0].mxu0
    %v737 = vadd.f32 0.0, %v736
    %v738 = vpop.f32.mrb[0].mxu0
    %v739 = vadd.f32 0.0, %v738
    %740 = vmatprep.mubr.f32.mxu0 0.0
    %741 = vmatmul.mubr.f32.gmra.mrb[0].mxu0 %v660
    %v742 = vpop.f32.mrb[0].mxu0
    %v743 = vadd.f32 0.0, %v742
    %v744 = vpop.f32.mrb[0].mxu0
    %v745 = vadd.f32 0.0, %v744
    %746 = vdwg.mxu0
    %747 = vmatprep.subr.mxu0 %v668
    %748 = vmatpush1.msra.mxu0 %v666
    %749 = vmatprep.subr.mxu0 0.0
    %750 = vmatpush1.msra.mxu0 0.0
    %751 = vmatprep.subr.mxu0 0.0
    %752 = vmatpush1.msra.mxu0 0.0
    %753 = vmatprep.subr.mxu0 0.0
    %754 = vmatpush1.msra.mxu0 0.0
    %755 = vmatprep.subr.mxu0 0.0
    %756 = vmatpush1.msra.mxu0 0.0
    %757 = vmatprep.subr.mxu0 0.0
    %758 = vmatpush1.msra.mxu0 0.0
    %759 = vmatprep.subr.mxu0 0.0
    %760 = vmatpush1.msra.mxu0 0.0
    %761 = vmatprep.subr.mxu0 0.0
    %762 = vmatpush1.msra.mxu0 0.0
    %763 = vmatprep.subr.mxu0 0.0
    %764 = vmatpush1.msra.mxu0 0.0
    %765 = vmatprep.subr.mxu0 0.0
    %766 = vmatpush1.msra.mxu0 0.0
    %767 = vmatprep.subr.mxu0 0.0
    %768 = vmatpush1.msra.mxu0 0.0
    %769 = vmatprep.subr.mxu0 0.0
    %770 = vmatpush1.msra.mxu0 0.0
    %771 = vmatprep.subr.mxu0 0.0
    %772 = vmatpush1.msra.mxu0 0.0
    %773 = vmatprep.subr.mxu0 0.0
    %774 = vmatpush1.msra.mxu0 0.0
    %775 = vmatprep.subr.mxu0 0.0
    %776 = vmatpush1.msra.mxu0 0.0
    %777 = vmatprep.subr.mxu0 0.0
    %778 = vmatpush1.msra.mxu0 0.0
    %779 = vmatprep.subr.mxu0 0.0
    %780 = vmatpush1.msra.mxu0 0.0
    %781 = vmatprep.subr.mxu0 0.0
    %782 = vmatpush1.msra.mxu0 0.0
    %783 = vmatprep.subr.mxu0 0.0
    %784 = vmatpush1.msra.mxu0 0.0
    %785 = vmatprep.subr.mxu0 0.0
    %786 = vmatpush1.msra.mxu0 0.0
    %787 = vmatprep.subr.mxu0 0.0
    %788 = vmatpush1.msra.mxu0 0.0
    %789 = vmatprep.subr.mxu0 0.0
    %790 = vmatpush1.msra.mxu0 0.0
    %791 = vmatprep.subr.mxu0 0.0
    %792 = vmatpush1.msra.mxu0 0.0
    %793 = vmatprep.subr.mxu0 0.0
    %794 = vmatpush1.msra.mxu0 0.0
    %795 = vmatprep.subr.mxu0 0.0
    %796 = vmatpush1.msra.mxu0 0.0
    %797 = vmatprep.subr.mxu0 0.0
    %798 = vmatpush1.msra.mxu0 0.0
    %799 = vmatprep.subr.mxu0 0.0
    %800 = vmatpush1.msra.mxu0 0.0
    %801 = vmatprep.subr.mxu0 0.0
    %802 = vmatpush1.msra.mxu0 0.0
    %803 = vmatprep.subr.mxu0 0.0
    %804 = vmatpush1.msra.mxu0 0.0
    %805 = vmatprep.subr.mxu0 0.0
    %806 = vmatpush1.msra.mxu0 0.0
    %807 = vmatprep.subr.mxu0 0.0
    %808 = vmatpush1.msra.mxu0 0.0
    %809 = vmatprep.subr.mxu0 0.0
    %810 = vmatpush1.msra.mxu0 0.0
    %811 = vmatprep.mubr.f32.mxu0 0.0
    %812 = vmatmul.mubr.f32.gmra.mrb[0].mxu0 %v657
    %v813 = vpop.f32.mrb[0].mxu0
    %v814 = vadd.f32 0.0, %v813
    %v815 = vpop.f32.mrb[0].mxu0
    %v816 = vadd.f32 0.0, %v815
    %817 = vmatprep.mubr.f32.mxu0 0.0
    %818 = vmatmul.mubr.f32.gmra.mrb[0].mxu0 %v660
    %v819 = vpop.f32.mrb[0].mxu0
    %v820 = vadd.f32 0.0, %v819
    %v821 = vpop.f32.mrb[0].mxu0
    %v822 = vadd.f32 0.0, %v821
    %823 = vdwg.mxu0
    %v824 = vadd.f32 %v631, %v737
    %v825 = vadd.f32 %v632, %v739
    %v826 = vadd.f32 %v633, %v814
    %v827 = vadd.f32 %v634, %v816
    %v828 = vadd.f32 %v635, %v743
    %v829 = vadd.f32 %v636, %v745
    %v830 = vadd.f32 %v637, %v820
    %v831 = vadd.f32 %v638, %v822
    %v832 = vld [vmem:[%s3 + $0x40] sm:$0xff]
    %v833 = vld [vmem:[%s3 + $0x48] sm:$0xff]
    %834 = vrot.lane.b32.xlu0 %v81, 111
    %v835 = vpop.permute.xlu0 %834
    %836 = vrot.lane.b32.xlu0 %v91, 111
    %v837 = vpop.permute.xlu0 %836
    %838 = vrot.lane.b32.xlu0 %v82, 111
    %v839 = vpop.permute.xlu0 %838
    %840 = vrot.lane.b32.xlu0 %v92, 111
    %v841 = vpop.permute.xlu0 %840
    %842 = vrot.lane.b32.xlu0 %v83, 111
    %v843 = vpop.permute.xlu0 %842
    %vm844 = vcmask 908288
    %v845 = vsel %vm844, %v835, %v837
    %v846 = vsel %vm844, %v837, %v839
    %v847 = vsel %vm844, %v839, %v841
    %v848 = vsel %vm844, %v841, %v843
    %v850 = vsel %vm108, %v832, 0
    %v853 = vsel %vm108, %v833, 0
    %v855 = vsel %vm115, %v845, 0
    %v857 = vsel %vm115, %v846, 0
    %v859 = vsel %vm115, %v847, 0
    %v861 = vsel %vm115, %v848, 0
    %863 = vmatprep.subr.mxu0 %v857
    %864 = vmatpush1.msra.mxu0 %v855
    %865 = vmatprep.subr.mxu0 0.0
    %866 = vmatpush1.msra.mxu0 0.0
    %867 = vmatprep.subr.mxu0 0.0
    %868 = vmatpush1.msra.mxu0 0.0
    %869 = vmatprep.subr.mxu0 0.0
    %870 = vmatpush1.msra.mxu0 0.0
    %871 = vmatprep.subr.mxu0 0.0
    %872 = vmatpush1.msra.mxu0 0.0
    %873 = vmatprep.subr.mxu0 0.0
    %874 = vmatpush1.msra.mxu0 0.0
    %875 = vmatprep.subr.mxu0 0.0
    %876 = vmatpush1.msra.mxu0 0.0
    %877 = vmatprep.subr.mxu0 0.0
    %878 = vmatpush1.msra.mxu0 0.0
    %879 = vmatprep.subr.mxu0 0.0
    %880 = vmatpush1.msra.mxu0 0.0
    %881 = vmatprep.subr.mxu0 0.0
    %882 = vmatpush1.msra.mxu0 0.0
    %883 = vmatprep.subr.mxu0 0.0
    %884 = vmatpush1.msra.mxu0 0.0
    %885 = vmatprep.subr.mxu0 0.0
    %886 = vmatpush1.msra.mxu0 0.0
    %887 = vmatprep.subr.mxu0 0.0
    %888 = vmatpush1.msra.mxu0 0.0
    %889 = vmatprep.subr.mxu0 0.0
    %890 = vmatpush1.msra.mxu0 0.0
    %891 = vmatprep.subr.mxu0 0.0
    %892 = vmatpush1.msra.mxu0 0.0
    %893 = vmatprep.subr.mxu0 0.0
    %894 = vmatpush1.msra.mxu0 0.0
    %895 = vmatprep.subr.mxu0 0.0
    %896 = vmatpush1.msra.mxu0 0.0
    %897 = vmatprep.subr.mxu0 0.0
    %898 = vmatpush1.msra.mxu0 0.0
    %899 = vmatprep.subr.mxu0 0.0
    %900 = vmatpush1.msra.mxu0 0.0
    %901 = vmatprep.subr.mxu0 0.0
    %902 = vmatpush1.msra.mxu0 0.0
    %903 = vmatprep.subr.mxu0 0.0
    %904 = vmatpush1.msra.mxu0 0.0
    %905 = vmatprep.subr.mxu0 0.0
    %906 = vmatpush1.msra.mxu0 0.0
    %907 = vmatprep.subr.mxu0 0.0
    %908 = vmatpush1.msra.mxu0 0.0
    %909 = vmatprep.subr.mxu0 0.0
    %910 = vmatpush1.msra.mxu0 0.0
    %911 = vmatprep.subr.mxu0 0.0
    %912 = vmatpush1.msra.mxu0 0.0
    %913 = vmatprep.subr.mxu0 0.0
    %914 = vmatpush1.msra.mxu0 0.0
    %915 = vmatprep.subr.mxu0 0.0
    %916 = vmatpush1.msra.mxu0 0.0
    %917 = vmatprep.subr.mxu0 0.0
    %918 = vmatpush1.msra.mxu0 0.0
    %919 = vmatprep.subr.mxu0 0.0
    %920 = vmatpush1.msra.mxu0 0.0
    %921 = vmatprep.subr.mxu0 0.0
    %922 = vmatpush1.msra.mxu0 0.0
    %923 = vmatprep.subr.mxu0 0.0
    %924 = vmatpush1.msra.mxu0 0.0
    %925 = vmatprep.subr.mxu0 0.0
    %926 = vmatpush1.msra.mxu0 0.0
    %927 = vmatprep.mubr.f32.mxu0 0.0
    %928 = vmatmul.mubr.f32.gmra.mrb[0].mxu0 %v850
    %v929 = vpop.f32.mrb[0].mxu0
    %v930 = vadd.f32 0.0, %v929
    %v931 = vpop.f32.mrb[0].mxu0
    %v932 = vadd.f32 0.0, %v931
    %933 = vmatprep.mubr.f32.mxu0 0.0
    %934 = vmatmul.mubr.f32.gmra.mrb[0].mxu0 %v853
    %v935 = vpop.f32.mrb[0].mxu0
    %v936 = vadd.f32 0.0, %v935
    %v937 = vpop.f32.mrb[0].mxu0
    %v938 = vadd.f32 0.0, %v937
    %939 = vdwg.mxu0
    %940 = vmatprep.subr.mxu0 %v861
    %941 = vmatpush1.msra.mxu0 %v859
    %942 = vmatprep.subr.mxu0 0.0
    %943 = vmatpush1.msra.mxu0 0.0
    %944 = vmatprep.subr.mxu0 0.0
    %945 = vmatpush1.msra.mxu0 0.0
    %946 = vmatprep.subr.mxu0 0.0
    %947 = vmatpush1.msra.mxu0 0.0
    %948 = vmatprep.subr.mxu0 0.0
    %949 = vmatpush1.msra.mxu0 0.0
    %950 = vmatprep.subr.mxu0 0.0
    %951 = vmatpush1.msra.mxu0 0.0
    %952 = vmatprep.subr.mxu0 0.0
    %953 = vmatpush1.msra.mxu0 0.0
    %954 = vmatprep.subr.mxu0 0.0
    %955 = vmatpush1.msra.mxu0 0.0
    %956 = vmatprep.subr.mxu0 0.0
    %957 = vmatpush1.msra.mxu0 0.0
    %958 = vmatprep.subr.mxu0 0.0
    %959 = vmatpush1.msra.mxu0 0.0
    %960 = vmatprep.subr.mxu0 0.0
    %961 = vmatpush1.msra.mxu0 0.0
    %962 = vmatprep.subr.mxu0 0.0
    %963 = vmatpush1.msra.mxu0 0.0
    %964 = vmatprep.subr.mxu0 0.0
    %965 = vmatpush1.msra.mxu0 0.0
    %966 = vmatprep.subr.mxu0 0.0
    %967 = vmatpush1.msra.mxu0 0.0
    %968 = vmatprep.subr.mxu0 0.0
    %969 = vmatpush1.msra.mxu0 0.0
    %970 = vmatprep.subr.mxu0 0.0
    %971 = vmatpush1.msra.mxu0 0.0
    %972 = vmatprep.subr.mxu0 0.0
    %973 = vmatpush1.msra.mxu0 0.0
    %974 = vmatprep.subr.mxu0 0.0
    %975 = vmatpush1.msra.mxu0 0.0
    %976 = vmatprep.subr.mxu0 0.0
    %977 = vmatpush1.msra.mxu0 0.0
    %978 = vmatprep.subr.mxu0 0.0
    %979 = vmatpush1.msra.mxu0 0.0
    %980 = vmatprep.subr.mxu0 0.0
    %981 = vmatpush1.msra.mxu0 0.0
    %982 = vmatprep.subr.mxu0 0.0
    %983 = vmatpush1.msra.mxu0 0.0
    %984 = vmatprep.subr.mxu0 0.0
    %985 = vmatpush1.msra.mxu0 0.0
    %986 = vmatprep.subr.mxu0 0.0
    %987 = vmatpush1.msra.mxu0 0.0
    %988 = vmatprep.subr.mxu0 0.0
    %989 = vmatpush1.msra.mxu0 0.0
    %990 = vmatprep.subr.mxu0 0.0
    %991 = vmatpush1.msra.mxu0 0.0
    %992 = vmatprep.subr.mxu0 0.0
    %993 = vmatpush1.msra.mxu0 0.0
    %994 = vmatprep.subr.mxu0 0.0
    %995 = vmatpush1.msra.mxu0 0.0
    %996 = vmatprep.subr.mxu0 0.0
    %997 = vmatpush1.msra.mxu0 0.0
    %998 = vmatprep.subr.mxu0 0.0
    %999 = vmatpush1.msra.mxu0 0.0
    %1000 = vmatprep.subr.mxu0 0.0
    %1001 = vmatpush1.msra.mxu0 0.0
    %1002 = vmatprep.subr.mxu0 0.0
    %1003 = vmatpush1.msra.mxu0 0.0
    %1004 = vmatprep.mubr.f32.mxu0 0.0
    %1005 = vmatmul.mubr.f32.gmra.mrb[0].mxu0 %v850
    %v1006 = vpop.f32.mrb[0].mxu0
    %v1007 = vadd.f32 0.0, %v1006
    %v1008 = vpop.f32.mrb[0].mxu0
    %v1009 = vadd.f32 0.0, %v1008
    %1010 = vmatprep.mubr.f32.mxu0 0.0
    %1011 = vmatmul.mubr.f32.gmra.mrb[0].mxu0 %v853
    %v1012 = vpop.f32.mrb[0].mxu0
    %v1013 = vadd.f32 0.0, %v1012
    %v1014 = vpop.f32.mrb[0].mxu0
    %v1015 = vadd.f32 0.0, %v1014
    %1016 = vdwg.mxu0
    %v1017 = vadd.f32 %v824, %v930
    %v1018 = vadd.f32 %v825, %v932
    %v1019 = vadd.f32 %v826, %v1007
    %v1020 = vadd.f32 %v827, %v1009
    %v1021 = vadd.f32 %v828, %v936
    %v1022 = vadd.f32 %v829, %v938
    %v1023 = vadd.f32 %v830, %v1013
    %v1024 = vadd.f32 %v831, %v1015
    %v1025 = vld [vmem:[%s3 + $0x50] sm:$0xff]
    %v1026 = vld [vmem:[%s3 + $0x58] sm:$0xff]
    %1027 = vrot.lane.b32.xlu0 %v81, 110
    %v1028 = vpop.permute.xlu0 %1027
    %1029 = vrot.lane.b32.xlu0 %v91, 110
    %v1030 = vpop.permute.xlu0 %1029
    %1031 = vrot.lane.b32.xlu0 %v82, 110
    %v1032 = vpop.permute.xlu0 %1031
    %1033 = vrot.lane.b32.xlu0 %v92, 110
    %v1034 = vpop.permute.xlu0 %1033
    %1035 = vrot.lane.b32.xlu0 %v83, 110
    %v1036 = vpop.permute.xlu0 %1035
    %vm1037 = vcmask 900096
    %v1038 = vsel %vm1037, %v1028, %v1030
    %v1039 = vsel %vm1037, %v1030, %v1032
    %v1040 = vsel %vm1037, %v1032, %v1034
    %v1041 = vsel %vm1037, %v1034, %v1036
    %v1043 = vsel %vm108, %v1025, 0
    %v1046 = vsel %vm108, %v1026, 0
    %v1048 = vsel %vm115, %v1038, 0
    %v1050 = vsel %vm115, %v1039, 0
    %v1052 = vsel %vm115, %v1040, 0
    %v1054 = vsel %vm115, %v1041, 0
    %1056 = vmatprep.subr.mxu0 %v1050
    %1057 = vmatpush1.msra.mxu0 %v1048
    %1058 = vmatprep.subr.mxu0 0.0
    %1059 = vmatpush1.msra.mxu0 0.0
    %1060 = vmatprep.subr.mxu0 0.0
    %1061 = vmatpush1.msra.mxu0 0.0
    %1062 = vmatprep.subr.mxu0 0.0
    %1063 = vmatpush1.msra.mxu0 0.0
    %1064 = vmatprep.subr.mxu0 0.0
    %1065 = vmatpush1.msra.mxu0 0.0
    %1066 = vmatprep.subr.mxu0 0.0
    %1067 = vmatpush1.msra.mxu0 0.0
    %1068 = vmatprep.subr.mxu0 0.0
    %1069 = vmatpush1.msra.mxu0 0.0
    %1070 = vmatprep.subr.mxu0 0.0
    %1071 = vmatpush1.msra.mxu0 0.0
    %1072 = vmatprep.subr.mxu0 0.0
    %1073 = vmatpush1.msra.mxu0 0.0
    %1074 = vmatprep.subr.mxu0 0.0
    %1075 = vmatpush1.msra.mxu0 0.0
    %1076 = vmatprep.subr.mxu0 0.0
    %1077 = vmatpush1.msra.mxu0 0.0
    %1078 = vmatprep.subr.mxu0 0.0
    %1079 = vmatpush1.msra.mxu0 0.0
    %1080 = vmatprep.subr.mxu0 0.0
    %1081 = vmatpush1.msra.mxu0 0.0
    %1082 = vmatprep.subr.mxu0 0.0
    %1083 = vmatpush1.msra.mxu0 0.0
    %1084 = vmatprep.subr.mxu0 0.0
    %1085 = vmatpush1.msra.mxu0 0.0
    %1086 = vmatprep.subr.mxu0 0.0
    %1087 = vmatpush1.msra.mxu0 0.0
    %1088 = vmatprep.subr.mxu0 0.0
    %1089 = vmatpush1.msra.mxu0 0.0
    %1090 = vmatprep.subr.mxu0 0.0
    %1091 = vmatpush1.msra.mxu0 0.0
    %1092 = vmatprep.subr.mxu0 0.0
    %1093 = vmatpush1.msra.mxu0 0.0
    %1094 = vmatprep.subr.mxu0 0.0
    %1095 = vmatpush1.msra.mxu0 0.0
    %1096 = vmatprep.subr.mxu0 0.0
    %1097 = vmatpush1.msra.mxu0 0.0
    %1098 = vmatprep.subr.mxu0 0.0
    %1099 = vmatpush1.msra.mxu0 0.0
    %1100 = vmatprep.subr.mxu0 0.0
    %1101 = vmatpush1.msra.mxu0 0.0
    %1102 = vmatprep.subr.mxu0 0.0
    %1103 = vmatpush1.msra.mxu0 0.0
    %1104 = vmatprep.subr.mxu0 0.0
    %1105 = vmatpush1.msra.mxu0 0.0
    %1106 = vmatprep.subr.mxu0 0.0
    %1107 = vmatpush1.msra.mxu0 0.0
    %1108 = vmatprep.subr.mxu0 0.0
    %1109 = vmatpush1.msra.mxu0 0.0
    %1110 = vmatprep.subr.mxu0 0.0
    %1111 = vmatpush1.msra.mxu0 0.0
    %1112 = vmatprep.subr.mxu0 0.0
    %1113 = vmatpush1.msra.mxu0 0.0
    %1114 = vmatprep.subr.mxu0 0.0
    %1115 = vmatpush1.msra.mxu0 0.0
    %1116 = vmatprep.subr.mxu0 0.0
    %1117 = vmatpush1.msra.mxu0 0.0
    %1118 = vmatprep.subr.mxu0 0.0
    %1119 = vmatpush1.msra.mxu0 0.0
    %1120 = vmatprep.mubr.f32.mxu0 0.0
    %1121 = vmatmul.mubr.f32.gmra.mrb[0].mxu0 %v1043
    %v1122 = vpop.f32.mrb[0].mxu0
    %v1123 = vadd.f32 0.0, %v1122
    %v1124 = vpop.f32.mrb[0].mxu0
    %v1125 = vadd.f32 0.0, %v1124
    %1126 = vmatprep.mubr.f32.mxu0 0.0
    %1127 = vmatmul.mubr.f32.gmra.mrb[0].mxu0 %v1046
    %v1128 = vpop.f32.mrb[0].mxu0
    %v1129 = vadd.f32 0.0, %v1128
    %v1130 = vpop.f32.mrb[0].mxu0
    %v1131 = vadd.f32 0.0, %v1130
    %1132 = vdwg.mxu0
    %1133 = vmatprep.subr.mxu0 %v1054
    %1134 = vmatpush1.msra.mxu0 %v1052
    %1135 = vmatprep.subr.mxu0 0.0
    %1136 = vmatpush1.msra.mxu0 0.0
    %1137 = vmatprep.subr.mxu0 0.0
    %1138 = vmatpush1.msra.mxu0 0.0
    %1139 = vmatprep.subr.mxu0 0.0
    %1140 = vmatpush1.msra.mxu0 0.0
    %1141 = vmatprep.subr.mxu0 0.0
    %1142 = vmatpush1.msra.mxu0 0.0
    %1143 = vmatprep.subr.mxu0 0.0
    %1144 = vmatpush1.msra.mxu0 0.0
    %1145 = vmatprep.subr.mxu0 0.0
    %1146 = vmatpush1.msra.mxu0 0.0
    %1147 = vmatprep.subr.mxu0 0.0
    %1148 = vmatpush1.msra.mxu0 0.0
    %1149 = vmatprep.subr.mxu0 0.0
    %1150 = vmatpush1.msra.mxu0 0.0
    %1151 = vmatprep.subr.mxu0 0.0
    %1152 = vmatpush1.msra.mxu0 0.0
    %1153 = vmatprep.subr.mxu0 0.0
    %1154 = vmatpush1.msra.mxu0 0.0
    %1155 = vmatprep.subr.mxu0 0.0
    %1156 = vmatpush1.msra.mxu0 0.0
    %1157 = vmatprep.subr.mxu0 0.0
    %1158 = vmatpush1.msra.mxu0 0.0
    %1159 = vmatprep.subr.mxu0 0.0
    %1160 = vmatpush1.msra.mxu0 0.0
    %1161 = vmatprep.subr.mxu0 0.0
    %1162 = vmatpush1.msra.mxu0 0.0
    %1163 = vmatprep.subr.mxu0 0.0
    %1164 = vmatpush1.msra.mxu0 0.0
    %1165 = vmatprep.subr.mxu0 0.0
    %1166 = vmatpush1.msra.mxu0 0.0
    %1167 = vmatprep.subr.mxu0 0.0
    %1168 = vmatpush1.msra.mxu0 0.0
    %1169 = vmatprep.subr.mxu0 0.0
    %1170 = vmatpush1.msra.mxu0 0.0
    %1171 = vmatprep.subr.mxu0 0.0
    %1172 = vmatpush1.msra.mxu0 0.0
    %1173 = vmatprep.subr.mxu0 0.0
    %1174 = vmatpush1.msra.mxu0 0.0
    %1175 = vmatprep.subr.mxu0 0.0
    %1176 = vmatpush1.msra.mxu0 0.0
    %1177 = vmatprep.subr.mxu0 0.0
    %1178 = vmatpush1.msra.mxu0 0.0
    %1179 = vmatprep.subr.mxu0 0.0
    %1180 = vmatpush1.msra.mxu0 0.0
    %1181 = vmatprep.subr.mxu0 0.0
    %1182 = vmatpush1.msra.mxu0 0.0
    %1183 = vmatprep.subr.mxu0 0.0
    %1184 = vmatpush1.msra.mxu0 0.0
    %1185 = vmatprep.subr.mxu0 0.0
    %1186 = vmatpush1.msra.mxu0 0.0
    %1187 = vmatprep.subr.mxu0 0.0
    %1188 = vmatpush1.msra.mxu0 0.0
    %1189 = vmatprep.subr.mxu0 0.0
    %1190 = vmatpush1.msra.mxu0 0.0
    %1191 = vmatprep.subr.mxu0 0.0
    %1192 = vmatpush1.msra.mxu0 0.0
    %1193 = vmatprep.subr.mxu0 0.0
    %1194 = vmatpush1.msra.mxu0 0.0
    %1195 = vmatprep.subr.mxu0 0.0
    %1196 = vmatpush1.msra.mxu0 0.0
    %1197 = vmatprep.mubr.f32.mxu0 0.0
    %1198 = vmatmul.mubr.f32.gmra.mrb[0].mxu0 %v1043
    %v1199 = vpop.f32.mrb[0].mxu0
    %v1200 = vadd.f32 0.0, %v1199
    %v1201 = vpop.f32.mrb[0].mxu0
    %v1202 = vadd.f32 0.0, %v1201
    %1203 = vmatprep.mubr.f32.mxu0 0.0
    %1204 = vmatmul.mubr.f32.gmra.mrb[0].mxu0 %v1046
    %v1205 = vpop.f32.mrb[0].mxu0
    %v1206 = vadd.f32 0.0, %v1205
    %v1207 = vpop.f32.mrb[0].mxu0
    %v1208 = vadd.f32 0.0, %v1207
    %1209 = vdwg.mxu0
    %v1210 = vadd.f32 %v1017, %v1123
    %v1211 = vadd.f32 %v1018, %v1125
    %v1212 = vadd.f32 %v1019, %v1200
    %v1213 = vadd.f32 %v1020, %v1202
    %v1214 = vadd.f32 %v1021, %v1129
    %v1215 = vadd.f32 %v1022, %v1131
    %v1216 = vadd.f32 %v1023, %v1206
    %v1217 = vadd.f32 %v1024, %v1208
    %v1218 = vld [vmem:[%s3 + $0x60] sm:$0xff]
    %v1219 = vld [vmem:[%s3 + $0x68] sm:$0xff]
    %1220 = vrot.lane.b32.xlu0 %v81, 96
    %v1221 = vpop.permute.xlu0 %1220
    %1222 = vrot.lane.b32.xlu0 %v91, 96
    %v1223 = vpop.permute.xlu0 %1222
    %1224 = vrot.lane.b32.xlu0 %v82, 96
    %v1225 = vpop.permute.xlu0 %1224
    %1226 = vrot.lane.b32.xlu0 %v92, 96
    %v1227 = vpop.permute.xlu0 %1226
    %1228 = vrot.lane.b32.xlu0 %v83, 96
    %v1229 = vpop.permute.xlu0 %1228
    %vm1230 = vcmask 785408
    %v1231 = vsel %vm1230, %v1221, %v1223
    %v1232 = vsel %vm1230, %v1223, %v1225
    %v1233 = vsel %vm1230, %v1225, %v1227
    %v1234 = vsel %vm1230, %v1227, %v1229
    %v1236 = vsel %vm108, %v1218, 0
    %v1239 = vsel %vm108, %v1219, 0
    %v1241 = vsel %vm115, %v1231, 0
    %v1243 = vsel %vm115, %v1232, 0
    %v1245 = vsel %vm115, %v1233, 0
    %v1247 = vsel %vm115, %v1234, 0
    %1249 = vmatprep.subr.mxu0 %v1243
    %1250 = vmatpush1.msra.mxu0 %v1241
    %1251 = vmatprep.subr.mxu0 0.0
    %1252 = vmatpush1.msra.mxu0 0.0
    %1253 = vmatprep.subr.mxu0 0.0
    %1254 = vmatpush1.msra.mxu0 0.0
    %1255 = vmatprep.subr.mxu0 0.0
    %1256 = vmatpush1.msra.mxu0 0.0
    %1257 = vmatprep.subr.mxu0 0.0
    %1258 = vmatpush1.msra.mxu0 0.0
    %1259 = vmatprep.subr.mxu0 0.0
    %1260 = vmatpush1.msra.mxu0 0.0
    %1261 = vmatprep.subr.mxu0 0.0
    %1262 = vmatpush1.msra.mxu0 0.0
    %1263 = vmatprep.subr.mxu0 0.0
    %1264 = vmatpush1.msra.mxu0 0.0
    %1265 = vmatprep.subr.mxu0 0.0
    %1266 = vmatpush1.msra.mxu0 0.0
    %1267 = vmatprep.subr.mxu0 0.0
    %1268 = vmatpush1.msra.mxu0 0.0
    %1269 = vmatprep.subr.mxu0 0.0
    %1270 = vmatpush1.msra.mxu0 0.0
    %1271 = vmatprep.subr.mxu0 0.0
    %1272 = vmatpush1.msra.mxu0 0.0
    %1273 = vmatprep.subr.mxu0 0.0
    %1274 = vmatpush1.msra.mxu0 0.0
    %1275 = vmatprep.subr.mxu0 0.0
    %1276 = vmatpush1.msra.mxu0 0.0
    %1277 = vmatprep.subr.mxu0 0.0
    %1278 = vmatpush1.msra.mxu0 0.0
    %1279 = vmatprep.subr.mxu0 0.0
    %1280 = vmatpush1.msra.mxu0 0.0
    %1281 = vmatprep.subr.mxu0 0.0
    %1282 = vmatpush1.msra.mxu0 0.0
    %1283 = vmatprep.subr.mxu0 0.0
    %1284 = vmatpush1.msra.mxu0 0.0
    %1285 = vmatprep.subr.mxu0 0.0
    %1286 = vmatpush1.msra.mxu0 0.0
    %1287 = vmatprep.subr.mxu0 0.0
    %1288 = vmatpush1.msra.mxu0 0.0
    %1289 = vmatprep.subr.mxu0 0.0
    %1290 = vmatpush1.msra.mxu0 0.0
    %1291 = vmatprep.subr.mxu0 0.0
    %1292 = vmatpush1.msra.mxu0 0.0
    %1293 = vmatprep.subr.mxu0 0.0
    %1294 = vmatpush1.msra.mxu0 0.0
    %1295 = vmatprep.subr.mxu0 0.0
    %1296 = vmatpush1.msra.mxu0 0.0
    %1297 = vmatprep.subr.mxu0 0.0
    %1298 = vmatpush1.msra.mxu0 0.0
    %1299 = vmatprep.subr.mxu0 0.0
    %1300 = vmatpush1.msra.mxu0 0.0
    %1301 = vmatprep.subr.mxu0 0.0
    %1302 = vmatpush1.msra.mxu0 0.0
    %1303 = vmatprep.subr.mxu0 0.0
    %1304 = vmatpush1.msra.mxu0 0.0
    %1305 = vmatprep.subr.mxu0 0.0
    %1306 = vmatpush1.msra.mxu0 0.0
    %1307 = vmatprep.subr.mxu0 0.0
    %1308 = vmatpush1.msra.mxu0 0.0
    %1309 = vmatprep.subr.mxu0 0.0
    %1310 = vmatpush1.msra.mxu0 0.0
    %1311 = vmatprep.subr.mxu0 0.0
    %1312 = vmatpush1.msra.mxu0 0.0
    %1313 = vmatprep.mubr.f32.mxu0 0.0
    %1314 = vmatmul.mubr.f32.gmra.mrb[0].mxu0 %v1236
    %v1315 = vpop.f32.mrb[0].mxu0
    %v1316 = vadd.f32 0.0, %v1315
    %v1317 = vpop.f32.mrb[0].mxu0
    %v1318 = vadd.f32 0.0, %v1317
    %1319 = vmatprep.mubr.f32.mxu0 0.0
    %1320 = vmatmul.mubr.f32.gmra.mrb[0].mxu0 %v1239
    %v1321 = vpop.f32.mrb[0].mxu0
    %v1322 = vadd.f32 0.0, %v1321
    %v1323 = vpop.f32.mrb[0].mxu0
    %v1324 = vadd.f32 0.0, %v1323
    %1325 = vdwg.mxu0
    %1326 = vmatprep.subr.mxu0 %v1247
    %1327 = vmatpush1.msra.mxu0 %v1245
    %1328 = vmatprep.subr.mxu0 0.0
    %1329 = vmatpush1.msra.mxu0 0.0
    %1330 = vmatprep.subr.mxu0 0.0
    %1331 = vmatpush1.msra.mxu0 0.0
    %1332 = vmatprep.subr.mxu0 0.0
    %1333 = vmatpush1.msra.mxu0 0.0
    %1334 = vmatprep.subr.mxu0 0.0
    %1335 = vmatpush1.msra.mxu0 0.0
    %1336 = vmatprep.subr.mxu0 0.0
    %1337 = vmatpush1.msra.mxu0 0.0
    %1338 = vmatprep.subr.mxu0 0.0
    %1339 = vmatpush1.msra.mxu0 0.0
    %1340 = vmatprep.subr.mxu0 0.0
    %1341 = vmatpush1.msra.mxu0 0.0
    %1342 = vmatprep.subr.mxu0 0.0
    %1343 = vmatpush1.msra.mxu0 0.0
    %1344 = vmatprep.subr.mxu0 0.0
    %1345 = vmatpush1.msra.mxu0 0.0
    %1346 = vmatprep.subr.mxu0 0.0
    %1347 = vmatpush1.msra.mxu0 0.0
    %1348 = vmatprep.subr.mxu0 0.0
    %1349 = vmatpush1.msra.mxu0 0.0
    %1350 = vmatprep.subr.mxu0 0.0
    %1351 = vmatpush1.msra.mxu0 0.0
    %1352 = vmatprep.subr.mxu0 0.0
    %1353 = vmatpush1.msra.mxu0 0.0
    %1354 = vmatprep.subr.mxu0 0.0
    %1355 = vmatpush1.msra.mxu0 0.0
    %1356 = vmatprep.subr.mxu0 0.0
    %1357 = vmatpush1.msra.mxu0 0.0
    %1358 = vmatprep.subr.mxu0 0.0
    %1359 = vmatpush1.msra.mxu0 0.0
    %1360 = vmatprep.subr.mxu0 0.0
    %1361 = vmatpush1.msra.mxu0 0.0
    %1362 = vmatprep.subr.mxu0 0.0
    %1363 = vmatpush1.msra.mxu0 0.0
    %1364 = vmatprep.subr.mxu0 0.0
    %1365 = vmatpush1.msra.mxu0 0.0
    %1366 = vmatprep.subr.mxu0 0.0
    %1367 = vmatpush1.msra.mxu0 0.0
    %1368 = vmatprep.subr.mxu0 0.0
    %1369 = vmatpush1.msra.mxu0 0.0
    %1370 = vmatprep.subr.mxu0 0.0
    %1371 = vmatpush1.msra.mxu0 0.0
    %1372 = vmatprep.subr.mxu0 0.0
    %1373 = vmatpush1.msra.mxu0 0.0
    %1374 = vmatprep.subr.mxu0 0.0
    %1375 = vmatpush1.msra.mxu0 0.0
    %1376 = vmatprep.subr.mxu0 0.0
    %1377 = vmatpush1.msra.mxu0 0.0
    %1378 = vmatprep.subr.mxu0 0.0
    %1379 = vmatpush1.msra.mxu0 0.0
    %1380 = vmatprep.subr.mxu0 0.0
    %1381 = vmatpush1.msra.mxu0 0.0
    %1382 = vmatprep.subr.mxu0 0.0
    %1383 = vmatpush1.msra.mxu0 0.0
    %1384 = vmatprep.subr.mxu0 0.0
    %1385 = vmatpush1.msra.mxu0 0.0
    %1386 = vmatprep.subr.mxu0 0.0
    %1387 = vmatpush1.msra.mxu0 0.0
    %1388 = vmatprep.subr.mxu0 0.0
    %1389 = vmatpush1.msra.mxu0 0.0
    %1390 = vmatprep.mubr.f32.mxu0 0.0
    %1391 = vmatmul.mubr.f32.gmra.mrb[0].mxu0 %v1236
    %v1392 = vpop.f32.mrb[0].mxu0
    %v1393 = vadd.f32 0.0, %v1392
    %v1394 = vpop.f32.mrb[0].mxu0
    %v1395 = vadd.f32 0.0, %v1394
    %1396 = vmatprep.mubr.f32.mxu0 0.0
    %1397 = vmatmul.mubr.f32.gmra.mrb[0].mxu0 %v1239
    %v1398 = vpop.f32.mrb[0].mxu0
    %v1399 = vadd.f32 0.0, %v1398
    %v1400 = vpop.f32.mrb[0].mxu0
    %v1401 = vadd.f32 0.0, %v1400
    %1402 = vdwg.mxu0
    %v1403 = vadd.f32 %v1210, %v1316
    %v1404 = vadd.f32 %v1211, %v1318
    %v1405 = vadd.f32 %v1212, %v1393
    %v1406 = vadd.f32 %v1213, %v1395
    %v1407 = vadd.f32 %v1214, %v1322
    %v1408 = vadd.f32 %v1215, %v1324
    %v1409 = vadd.f32 %v1216, %v1399
    %v1410 = vadd.f32 %v1217, %v1401
    %v1411 = vld [vmem:[%s3 + $0x70] sm:$0xff]
    %v1412 = vld [vmem:[%s3 + $0x78] sm:$0xff]
    %1413 = vrot.lane.b32.xlu0 %v81, 95
    %v1414 = vpop.permute.xlu0 %1413
    %1415 = vrot.lane.b32.xlu0 %v91, 95
    %v1416 = vpop.permute.xlu0 %1415
    %1417 = vrot.lane.b32.xlu0 %v82, 95
    %v1418 = vpop.permute.xlu0 %1417
    %1419 = vrot.lane.b32.xlu0 %v92, 95
    %v1420 = vpop.permute.xlu0 %1419
    %1421 = vrot.lane.b32.xlu0 %v83, 95
    %v1422 = vpop.permute.xlu0 %1421
    %vm1423 = vcmask 777216
    %v1424 = vsel %vm1423, %v1414, %v1416
    %v1425 = vsel %vm1423, %v1416, %v1418
    %v1426 = vsel %vm1423, %v1418, %v1420
    %v1427 = vsel %vm1423, %v1420, %v1422
    %v1429 = vsel %vm108, %v1411, 0
    %v1432 = vsel %vm108, %v1412, 0
    %v1434 = vsel %vm115, %v1424, 0
    %v1436 = vsel %vm115, %v1425, 0
    %v1438 = vsel %vm115, %v1426, 0
    %v1440 = vsel %vm115, %v1427, 0
    %1442 = vmatprep.subr.mxu0 %v1436
    %1443 = vmatpush1.msra.mxu0 %v1434
    %1444 = vmatprep.subr.mxu0 0.0
    %1445 = vmatpush1.msra.mxu0 0.0
    %1446 = vmatprep.subr.mxu0 0.0
    %1447 = vmatpush1.msra.mxu0 0.0
    %1448 = vmatprep.subr.mxu0 0.0
    %1449 = vmatpush1.msra.mxu0 0.0
    %1450 = vmatprep.subr.mxu0 0.0
    %1451 = vmatpush1.msra.mxu0 0.0
    %1452 = vmatprep.subr.mxu0 0.0
    %1453 = vmatpush1.msra.mxu0 0.0
    %1454 = vmatprep.subr.mxu0 0.0
    %1455 = vmatpush1.msra.mxu0 0.0
    %1456 = vmatprep.subr.mxu0 0.0
    %1457 = vmatpush1.msra.mxu0 0.0
    %1458 = vmatprep.subr.mxu0 0.0
    %1459 = vmatpush1.msra.mxu0 0.0
    %1460 = vmatprep.subr.mxu0 0.0
    %1461 = vmatpush1.msra.mxu0 0.0
    %1462 = vmatprep.subr.mxu0 0.0
    %1463 = vmatpush1.msra.mxu0 0.0
    %1464 = vmatprep.subr.mxu0 0.0
    %1465 = vmatpush1.msra.mxu0 0.0
    %1466 = vmatprep.subr.mxu0 0.0
    %1467 = vmatpush1.msra.mxu0 0.0
    %1468 = vmatprep.subr.mxu0 0.0
    %1469 = vmatpush1.msra.mxu0 0.0
    %1470 = vmatprep.subr.mxu0 0.0
    %1471 = vmatpush1.msra.mxu0 0.0
    %1472 = vmatprep.subr.mxu0 0.0
    %1473 = vmatpush1.msra.mxu0 0.0
    %1474 = vmatprep.subr.mxu0 0.0
    %1475 = vmatpush1.msra.mxu0 0.0
    %1476 = vmatprep.subr.mxu0 0.0
    %1477 = vmatpush1.msra.mxu0 0.0
    %1478 = vmatprep.subr.mxu0 0.0
    %1479 = vmatpush1.msra.mxu0 0.0
    %1480 = vmatprep.subr.mxu0 0.0
    %1481 = vmatpush1.msra.mxu0 0.0
    %1482 = vmatprep.subr.mxu0 0.0
    %1483 = vmatpush1.msra.mxu0 0.0
    %1484 = vmatprep.subr.mxu0 0.0
    %1485 = vmatpush1.msra.mxu0 0.0
    %1486 = vmatprep.subr.mxu0 0.0
    %1487 = vmatpush1.msra.mxu0 0.0
    %1488 = vmatprep.subr.mxu0 0.0
    %1489 = vmatpush1.msra.mxu0 0.0
    %1490 = vmatprep.subr.mxu0 0.0
    %1491 = vmatpush1.msra.mxu0 0.0
    %1492 = vmatprep.subr.mxu0 0.0
    %1493 = vmatpush1.msra.mxu0 0.0
    %1494 = vmatprep.subr.mxu0 0.0
    %1495 = vmatpush1.msra.mxu0 0.0
    %1496 = vmatprep.subr.mxu0 0.0
    %1497 = vmatpush1.msra.mxu0 0.0
    %1498 = vmatprep.subr.mxu0 0.0
    %1499 = vmatpush1.msra.mxu0 0.0
    %1500 = vmatprep.subr.mxu0 0.0
    %1501 = vmatpush1.msra.mxu0 0.0
    %1502 = vmatprep.subr.mxu0 0.0
    %1503 = vmatpush1.msra.mxu0 0.0
    %1504 = vmatprep.subr.mxu0 0.0
    %1505 = vmatpush1.msra.mxu0 0.0
    %1506 = vmatprep.mubr.f32.mxu0 0.0
    %1507 = vmatmul.mubr.f32.gmra.mrb[0].mxu0 %v1429
    %v1508 = vpop.f32.mrb[0].mxu0
    %v1509 = vadd.f32 0.0, %v1508
    %v1510 = vpop.f32.mrb[0].mxu0
    %v1511 = vadd.f32 0.0, %v1510
    %1512 = vmatprep.mubr.f32.mxu0 0.0
    %1513 = vmatmul.mubr.f32.gmra.mrb[0].mxu0 %v1432
    %v1514 = vpop.f32.mrb[0].mxu0
    %v1515 = vadd.f32 0.0, %v1514
    %v1516 = vpop.f32.mrb[0].mxu0
    %v1517 = vadd.f32 0.0, %v1516
    %1518 = vdwg.mxu0
    %1519 = vmatprep.subr.mxu0 %v1440
    %1520 = vmatpush1.msra.mxu0 %v1438
    %1521 = vmatprep.subr.mxu0 0.0
    %1522 = vmatpush1.msra.mxu0 0.0
    %1523 = vmatprep.subr.mxu0 0.0
    %1524 = vmatpush1.msra.mxu0 0.0
    %1525 = vmatprep.subr.mxu0 0.0
    %1526 = vmatpush1.msra.mxu0 0.0
    %1527 = vmatprep.subr.mxu0 0.0
    %1528 = vmatpush1.msra.mxu0 0.0
    %1529 = vmatprep.subr.mxu0 0.0
    %1530 = vmatpush1.msra.mxu0 0.0
    %1531 = vmatprep.subr.mxu0 0.0
    %1532 = vmatpush1.msra.mxu0 0.0
    %1533 = vmatprep.subr.mxu0 0.0
    %1534 = vmatpush1.msra.mxu0 0.0
    %1535 = vmatprep.subr.mxu0 0.0
    %1536 = vmatpush1.msra.mxu0 0.0
    %1537 = vmatprep.subr.mxu0 0.0
    %1538 = vmatpush1.msra.mxu0 0.0
    %1539 = vmatprep.subr.mxu0 0.0
    %1540 = vmatpush1.msra.mxu0 0.0
    %1541 = vmatprep.subr.mxu0 0.0
    %1542 = vmatpush1.msra.mxu0 0.0
    %1543 = vmatprep.subr.mxu0 0.0
    %1544 = vmatpush1.msra.mxu0 0.0
    %1545 = vmatprep.subr.mxu0 0.0
    %1546 = vmatpush1.msra.mxu0 0.0
    %1547 = vmatprep.subr.mxu0 0.0
    %1548 = vmatpush1.msra.mxu0 0.0
    %1549 = vmatprep.subr.mxu0 0.0
    %1550 = vmatpush1.msra.mxu0 0.0
    %1551 = vmatprep.subr.mxu0 0.0
    %1552 = vmatpush1.msra.mxu0 0.0
    %1553 = vmatprep.subr.mxu0 0.0
    %1554 = vmatpush1.msra.mxu0 0.0
    %1555 = vmatprep.subr.mxu0 0.0
    %1556 = vmatpush1.msra.mxu0 0.0
    %1557 = vmatprep.subr.mxu0 0.0
    %1558 = vmatpush1.msra.mxu0 0.0
    %1559 = vmatprep.subr.mxu0 0.0
    %1560 = vmatpush1.msra.mxu0 0.0
    %1561 = vmatprep.subr.mxu0 0.0
    %1562 = vmatpush1.msra.mxu0 0.0
    %1563 = vmatprep.subr.mxu0 0.0
    %1564 = vmatpush1.msra.mxu0 0.0
    %1565 = vmatprep.subr.mxu0 0.0
    %1566 = vmatpush1.msra.mxu0 0.0
    %1567 = vmatprep.subr.mxu0 0.0
    %1568 = vmatpush1.msra.mxu0 0.0
    %1569 = vmatprep.subr.mxu0 0.0
    %1570 = vmatpush1.msra.mxu0 0.0
    %1571 = vmatprep.subr.mxu0 0.0
    %1572 = vmatpush1.msra.mxu0 0.0
    %1573 = vmatprep.subr.mxu0 0.0
    %1574 = vmatpush1.msra.mxu0 0.0
    %1575 = vmatprep.subr.mxu0 0.0
    %1576 = vmatpush1.msra.mxu0 0.0
    %1577 = vmatprep.subr.mxu0 0.0
    %1578 = vmatpush1.msra.mxu0 0.0
    %1579 = vmatprep.subr.mxu0 0.0
    %1580 = vmatpush1.msra.mxu0 0.0
    %1581 = vmatprep.subr.mxu0 0.0
    %1582 = vmatpush1.msra.mxu0 0.0
    %1583 = vmatprep.mubr.f32.mxu0 0.0
    %1584 = vmatmul.mubr.f32.gmra.mrb[0].mxu0 %v1429
    %v1585 = vpop.f32.mrb[0].mxu0
    %v1586 = vadd.f32 0.0, %v1585
    %v1587 = vpop.f32.mrb[0].mxu0
    %v1588 = vadd.f32 0.0, %v1587
    %1589 = vmatprep.mubr.f32.mxu0 0.0
    %1590 = vmatmul.mubr.f32.gmra.mrb[0].mxu0 %v1432
    %v1591 = vpop.f32.mrb[0].mxu0
    %v1592 = vadd.f32 0.0, %v1591
    %v1593 = vpop.f32.mrb[0].mxu0
    %v1594 = vadd.f32 0.0, %v1593
    %1595 = vdwg.mxu0
    %v1596 = vadd.f32 %v1403, %v1509
    %v1597 = vadd.f32 %v1404, %v1511
    %v1598 = vadd.f32 %v1405, %v1586
    %v1599 = vadd.f32 %v1406, %v1588
    %v1600 = vadd.f32 %v1407, %v1515
    %v1601 = vadd.f32 %v1408, %v1517
    %v1602 = vadd.f32 %v1409, %v1592
    %v1603 = vadd.f32 %v1410, %v1594
    %v1604 = vld [vmem:[%s3 + $0x80] sm:$0xff]
    %v1605 = vld [vmem:[%s3 + $0x88] sm:$0xff]
    %1606 = vrot.lane.b32.xlu0 %v81, 94
    %v1607 = vpop.permute.xlu0 %1606
    %1608 = vrot.lane.b32.xlu0 %v91, 94
    %v1609 = vpop.permute.xlu0 %1608
    %1610 = vrot.lane.b32.xlu0 %v82, 94
    %v1611 = vpop.permute.xlu0 %1610
    %1612 = vrot.lane.b32.xlu0 %v92, 94
    %v1613 = vpop.permute.xlu0 %1612
    %1614 = vrot.lane.b32.xlu0 %v83, 94
    %v1615 = vpop.permute.xlu0 %1614
    %vm1616 = vcmask 769024
    %v1617 = vsel %vm1616, %v1607, %v1609
    %v1618 = vsel %vm1616, %v1609, %v1611
    %v1619 = vsel %vm1616, %v1611, %v1613
    %v1620 = vsel %vm1616, %v1613, %v1615
    %v1622 = vsel %vm108, %v1604, 0
    %v1625 = vsel %vm108, %v1605, 0
    %v1627 = vsel %vm115, %v1617, 0
    %v1629 = vsel %vm115, %v1618, 0
    %v1631 = vsel %vm115, %v1619, 0
    %v1633 = vsel %vm115, %v1620, 0
    %1635 = vmatprep.subr.mxu0 %v1629
    %1636 = vmatpush1.msra.mxu0 %v1627
    %1637 = vmatprep.subr.mxu0 0.0
    %1638 = vmatpush1.msra.mxu0 0.0
    %1639 = vmatprep.subr.mxu0 0.0
    %1640 = vmatpush1.msra.mxu0 0.0
    %1641 = vmatprep.subr.mxu0 0.0
    %1642 = vmatpush1.msra.mxu0 0.0
    %1643 = vmatprep.subr.mxu0 0.0
    %1644 = vmatpush1.msra.mxu0 0.0
    %1645 = vmatprep.subr.mxu0 0.0
    %1646 = vmatpush1.msra.mxu0 0.0
    %1647 = vmatprep.subr.mxu0 0.0
    %1648 = vmatpush1.msra.mxu0 0.0
    %1649 = vmatprep.subr.mxu0 0.0
    %1650 = vmatpush1.msra.mxu0 0.0
    %1651 = vmatprep.subr.mxu0 0.0
    %1652 = vmatpush1.msra.mxu0 0.0
    %1653 = vmatprep.subr.mxu0 0.0
    %1654 = vmatpush1.msra.mxu0 0.0
    %1655 = vmatprep.subr.mxu0 0.0
    %1656 = vmatpush1.msra.mxu0 0.0
    %1657 = vmatprep.subr.mxu0 0.0
    %1658 = vmatpush1.msra.mxu0 0.0
    %1659 = vmatprep.subr.mxu0 0.0
    %1660 = vmatpush1.msra.mxu0 0.0
    %1661 = vmatprep.subr.mxu0 0.0
    %1662 = vmatpush1.msra.mxu0 0.0
    %1663 = vmatprep.subr.mxu0 0.0
    %1664 = vmatpush1.msra.mxu0 0.0
    %1665 = vmatprep.subr.mxu0 0.0
    %1666 = vmatpush1.msra.mxu0 0.0
    %1667 = vmatprep.subr.mxu0 0.0
    %1668 = vmatpush1.msra.mxu0 0.0
    %1669 = vmatprep.subr.mxu0 0.0
    %1670 = vmatpush1.msra.mxu0 0.0
    %1671 = vmatprep.subr.mxu0 0.0
    %1672 = vmatpush1.msra.mxu0 0.0
    %1673 = vmatprep.subr.mxu0 0.0
    %1674 = vmatpush1.msra.mxu0 0.0
    %1675 = vmatprep.subr.mxu0 0.0
    %1676 = vmatpush1.msra.mxu0 0.0
    %1677 = vmatprep.subr.mxu0 0.0
    %1678 = vmatpush1.msra.mxu0 0.0
    %1679 = vmatprep.subr.mxu0 0.0
    %1680 = vmatpush1.msra.mxu0 0.0
    %1681 = vmatprep.subr.mxu0 0.0
    %1682 = vmatpush1.msra.mxu0 0.0
    %1683 = vmatprep.subr.mxu0 0.0
    %1684 = vmatpush1.msra.mxu0 0.0
    %1685 = vmatprep.subr.mxu0 0.0
    %1686 = vmatpush1.msra.mxu0 0.0
    %1687 = vmatprep.subr.mxu0 0.0
    %1688 = vmatpush1.msra.mxu0 0.0
    %1689 = vmatprep.subr.mxu0 0.0
    %1690 = vmatpush1.msra.mxu0 0.0
    %1691 = vmatprep.subr.mxu0 0.0
    %1692 = vmatpush1.msra.mxu0 0.0
    %1693 = vmatprep.subr.mxu0 0.0
    %1694 = vmatpush1.msra.mxu0 0.0
    %1695 = vmatprep.subr.mxu0 0.0
    %1696 = vmatpush1.msra.mxu0 0.0
    %1697 = vmatprep.subr.mxu0 0.0
    %1698 = vmatpush1.msra.mxu0 0.0
    %1699 = vmatprep.mubr.f32.mxu0 0.0
    %1700 = vmatmul.mubr.f32.gmra.mrb[0].mxu0 %v1622
    %v1701 = vpop.f32.mrb[0].mxu0
    %v1702 = vadd.f32 0.0, %v1701
    %v1703 = vpop.f32.mrb[0].mxu0
    %v1704 = vadd.f32 0.0, %v1703
    %1705 = vmatprep.mubr.f32.mxu0 0.0
    %1706 = vmatmul.mubr.f32.gmra.mrb[0].mxu0 %v1625
    %v1707 = vpop.f32.mrb[0].mxu0
    %v1708 = vadd.f32 0.0, %v1707
    %v1709 = vpop.f32.mrb[0].mxu0
    %v1710 = vadd.f32 0.0, %v1709
    %1711 = vdwg.mxu0
    %1712 = vmatprep.subr.mxu0 %v1633
    %1713 = vmatpush1.msra.mxu0 %v1631
    %1714 = vmatprep.subr.mxu0 0.0
    %1715 = vmatpush1.msra.mxu0 0.0
    %1716 = vmatprep.subr.mxu0 0.0
    %1717 = vmatpush1.msra.mxu0 0.0
    %1718 = vmatprep.subr.mxu0 0.0
    %1719 = vmatpush1.msra.mxu0 0.0
    %1720 = vmatprep.subr.mxu0 0.0
    %1721 = vmatpush1.msra.mxu0 0.0
    %1722 = vmatprep.subr.mxu0 0.0
    %1723 = vmatpush1.msra.mxu0 0.0
    %1724 = vmatprep.subr.mxu0 0.0
    %1725 = vmatpush1.msra.mxu0 0.0
    %1726 = vmatprep.subr.mxu0 0.0
    %1727 = vmatpush1.msra.mxu0 0.0
    %1728 = vmatprep.subr.mxu0 0.0
    %1729 = vmatpush1.msra.mxu0 0.0
    %1730 = vmatprep.subr.mxu0 0.0
    %1731 = vmatpush1.msra.mxu0 0.0
    %1732 = vmatprep.subr.mxu0 0.0
    %1733 = vmatpush1.msra.mxu0 0.0
    %1734 = vmatprep.subr.mxu0 0.0
    %1735 = vmatpush1.msra.mxu0 0.0
    %1736 = vmatprep.subr.mxu0 0.0
    %1737 = vmatpush1.msra.mxu0 0.0
    %1738 = vmatprep.subr.mxu0 0.0
    %1739 = vmatpush1.msra.mxu0 0.0
    %1740 = vmatprep.subr.mxu0 0.0
    %1741 = vmatpush1.msra.mxu0 0.0
    %1742 = vmatprep.subr.mxu0 0.0
    %1743 = vmatpush1.msra.mxu0 0.0
    %1744 = vmatprep.subr.mxu0 0.0
    %1745 = vmatpush1.msra.mxu0 0.0
    %1746 = vmatprep.subr.mxu0 0.0
    %1747 = vmatpush1.msra.mxu0 0.0
    %1748 = vmatprep.subr.mxu0 0.0
    %1749 = vmatpush1.msra.mxu0 0.0
    %1750 = vmatprep.subr.mxu0 0.0
    %1751 = vmatpush1.msra.mxu0 0.0
    %1752 = vmatprep.subr.mxu0 0.0
    %1753 = vmatpush1.msra.mxu0 0.0
    %1754 = vmatprep.subr.mxu0 0.0
    %1755 = vmatpush1.msra.mxu0 0.0
    %1756 = vmatprep.subr.mxu0 0.0
    %1757 = vmatpush1.msra.mxu0 0.0
    %1758 = vmatprep.subr.mxu0 0.0
    %1759 = vmatpush1.msra.mxu0 0.0
    %1760 = vmatprep.subr.mxu0 0.0
    %1761 = vmatpush1.msra.mxu0 0.0
    %1762 = vmatprep.subr.mxu0 0.0
    %1763 = vmatpush1.msra.mxu0 0.0
    %1764 = vmatprep.subr.mxu0 0.0
    %1765 = vmatpush1.msra.mxu0 0.0
    %1766 = vmatprep.subr.mxu0 0.0
    %1767 = vmatpush1.msra.mxu0 0.0
    %1768 = vmatprep.subr.mxu0 0.0
    %1769 = vmatpush1.msra.mxu0 0.0
    %1770 = vmatprep.subr.mxu0 0.0
    %1771 = vmatpush1.msra.mxu0 0.0
    %1772 = vmatprep.subr.mxu0 0.0
    %1773 = vmatpush1.msra.mxu0 0.0
    %1774 = vmatprep.subr.mxu0 0.0
    %1775 = vmatpush1.msra.mxu0 0.0
    %1776 = vmatprep.mubr.f32.mxu0 0.0
    %1777 = vmatmul.mubr.f32.gmra.mrb[0].mxu0 %v1622
    %v1778 = vpop.f32.mrb[0].mxu0
    %v1779 = vadd.f32 0.0, %v1778
    %v1780 = vpop.f32.mrb[0].mxu0
    %v1781 = vadd.f32 0.0, %v1780
    %1782 = vmatprep.mubr.f32.mxu0 0.0
    %1783 = vmatmul.mubr.f32.gmra.mrb[0].mxu0 %v1625
    %v1784 = vpop.f32.mrb[0].mxu0
    %v1785 = vadd.f32 0.0, %v1784
    %v1786 = vpop.f32.mrb[0].mxu0
    %v1787 = vadd.f32 0.0, %v1786
    %1788 = vdwg.mxu0
    %v1789 = vadd.f32 %v1596, %v1702
    %v1790 = vadd.f32 %v1597, %v1704
    %v1791 = vadd.f32 %v1598, %v1779
    %v1792 = vadd.f32 %v1599, %v1781
    %v1793 = vadd.f32 %v1600, %v1708
    %v1794 = vadd.f32 %v1601, %v1710
    %v1795 = vadd.f32 %v1602, %v1785
    %v1796 = vadd.f32 %v1603, %v1787
    %v1797 = vld [vmem:[%s4] sm:$0xff]
    %v1798 = vld [vmem:[%s4 + $0x8] sm:$0xff]
    %1800 = vset.pattern.permute.xlu0 0
    %1801 = vperm.xlu0 %1800, %v1797
    %v1802 = vpop.permute.xlu0 %1801
    %1805 = vset.pattern.permute.xlu0 0
    %1806 = vperm.xlu0 %1805, %v1798
    %v1807 = vpop.permute.xlu0 %1806
    %v1809 = vadd.f32 %v1789, %v1802
    %v1810 = vadd.f32 %v1790, %v1802
    %v1811 = vadd.f32 %v1791, %v1802
    %v1812 = vadd.f32 %v1792, %v1802
    %v1813 = vadd.f32 %v1793, %v1807
    %v1814 = vadd.f32 %v1794, %v1807
    %v1815 = vadd.f32 %v1795, %v1807
    %v1816 = vadd.f32 %v1796, %v1807
    %v1817 = vmax.f32 %v1809, 0.0
    %v1818 = vmax.f32 %v1810, 0.0
    %v1819 = vmax.f32 %v1811, 0.0
    %v1820 = vmax.f32 %v1812, 0.0
    %v1821 = vmax.f32 %v1813, 0.0
    %v1822 = vmax.f32 %v1814, 0.0
    %v1823 = vmax.f32 %v1815, 0.0
    %v1824 = vmax.f32 %v1816, 0.0
    %v1825 = vpack.c.bf16 %v1821, %v1817
    %v1826 = vpack.c.bf16 %v1822, %v1818
    %v1827 = vpack.c.bf16 %v1823, %v1819
    %v1828 = vpack.c.bf16 %v1824, %v1820
    %v1829 = vld [vmem:[%s6] sm:$0x1]
    %v1830 = vld [vmem:[%s5] sm:$0xf]
    %v1831 = vld [vmem:[%s5 + $0x4] sm:$0xf]
    %v1832 = vld [vmem:[%s5 + $0x8] sm:$0xf]
    %v1833 = vld [vmem:[%s5 + $0xc] sm:$0xf]
    %v1834 = vld [vmem:[%s5 + $0x10] sm:$0xf]
    %v1835 = vld [vmem:[%s5 + $0x14] sm:$0xf]
    %v1836 = vld [vmem:[%s5 + $0x18] sm:$0xf]
    %v1837 = vld [vmem:[%s5 + $0x1c] sm:$0xf]
    %v1838 = vld [vmem:[%s5 + $0x20] sm:$0xf]
    %v1839 = vld [vmem:[%s5 + $0x24] sm:$0xf]
    %v1840 = vld [vmem:[%s5 + $0x28] sm:$0xf]
    %v1841 = vld [vmem:[%s5 + $0x2c] sm:$0xf]
    %v1842 = vld [vmem:[%s5 + $0x30] sm:$0xf]
    %v1843 = vld [vmem:[%s5 + $0x34] sm:$0xf]
    %v1844 = vld [vmem:[%s5 + $0x38] sm:$0xf]
    %v1845 = vld [vmem:[%s5 + $0x3c] sm:$0xf]
    %v1846 = vld [vmem:[%s5 + $0x40] sm:$0xf]
    %v1847 = vld [vmem:[%s5 + $0x44] sm:$0xf]
    %v1848 = vld [vmem:[%s5 + $0x48] sm:$0xf]
    %v1849 = vld [vmem:[%s5 + $0x4c] sm:$0xf]
    %v1850 = vld [vmem:[%s5 + $0x50] sm:$0xf]
    %v1851 = vld [vmem:[%s5 + $0x54] sm:$0xf]
    %v1852 = vld [vmem:[%s5 + $0x58] sm:$0xf]
    %v1853 = vld [vmem:[%s5 + $0x5c] sm:$0xf]
    %v1854 = vld [vmem:[%s5 + $0x60] sm:$0xf]
    %v1855 = vld [vmem:[%s5 + $0x64] sm:$0xf]
    %v1856 = vld [vmem:[%s5 + $0x68] sm:$0xf]
    %v1857 = vld [vmem:[%s5 + $0x6c] sm:$0xf]
    %v1858 = vld [vmem:[%s5 + $0x70] sm:$0xf]
    %v1859 = vld [vmem:[%s5 + $0x74] sm:$0xf]
    %v1860 = vld [vmem:[%s5 + $0x78] sm:$0xf]
    %v1861 = vld [vmem:[%s5 + $0x7c] sm:$0xf]
    %v1894 = vunpack.c.l.b16 %v1830
    %v1895 = vunpack.c.l.b16 %v1831
    %v1896 = vunpack.c.l.b16 %v1832
    %v1897 = vunpack.c.l.b16 %v1833
    %v1898 = vunpack.c.l.b16 %v1834
    %v1899 = vunpack.c.l.b16 %v1835
    %v1900 = vunpack.c.l.b16 %v1836
    %v1901 = vunpack.c.l.b16 %v1837
    %v1902 = vunpack.c.l.b16 %v1838
    %v1903 = vunpack.c.l.b16 %v1839
    %v1904 = vunpack.c.l.b16 %v1840
    %v1905 = vunpack.c.l.b16 %v1841
    %v1906 = vunpack.c.l.b16 %v1842
    %v1907 = vunpack.c.l.b16 %v1843
    %v1908 = vunpack.c.l.b16 %v1844
    %v1909 = vunpack.c.l.b16 %v1845
    %v1910 = vunpack.c.l.b16 %v1846
    %v1911 = vunpack.c.l.b16 %v1847
    %v1912 = vunpack.c.l.b16 %v1848
    %v1913 = vunpack.c.l.b16 %v1849
    %v1914 = vunpack.c.l.b16 %v1850
    %v1915 = vunpack.c.l.b16 %v1851
    %v1916 = vunpack.c.l.b16 %v1852
    %v1917 = vunpack.c.l.b16 %v1853
    %v1918 = vunpack.c.l.b16 %v1854
    %v1919 = vunpack.c.l.b16 %v1855
    %v1920 = vunpack.c.l.b16 %v1856
    %v1921 = vunpack.c.l.b16 %v1857
    %v1922 = vunpack.c.l.b16 %v1858
    %v1923 = vunpack.c.l.b16 %v1859
    %v1924 = vunpack.c.l.b16 %v1860
    %v1925 = vunpack.c.l.b16 %v1861
    %v1926 = vpack.c.b16 %v1895, %v1894
    %v1927 = vpack.c.b16 %v1897, %v1896
    %v1928 = vpack.c.b16 %v1899, %v1898
    %v1929 = vpack.c.b16 %v1901, %v1900
    %v1930 = vpack.c.b16 %v1903, %v1902
    %v1931 = vpack.c.b16 %v1905, %v1904
    %v1932 = vpack.c.b16 %v1907, %v1906
    %v1933 = vpack.c.b16 %v1909, %v1908
    %v1934 = vpack.c.b16 %v1911, %v1910
    %v1935 = vpack.c.b16 %v1913, %v1912
    %v1936 = vpack.c.b16 %v1915, %v1914
    %v1937 = vpack.c.b16 %v1917, %v1916
    %v1938 = vpack.c.b16 %v1919, %v1918
    %v1939 = vpack.c.b16 %v1921, %v1920
    %v1940 = vpack.c.b16 %v1923, %v1922
    %v1941 = vpack.c.b16 %v1925, %v1924
    %1958 = vmatprep.subr.bf16.mxu0 0
    %1959 = vmatpush1.bf16.msra.mxu0 %v1926
    %1960 = vmatprep.subr.bf16.mxu0 0
    %1961 = vmatpush1.bf16.msra.mxu0 %v1927
    %1962 = vmatprep.subr.bf16.mxu0 0
    %1963 = vmatpush1.bf16.msra.mxu0 %v1928
    %1964 = vmatprep.subr.bf16.mxu0 0
    %1965 = vmatpush1.bf16.msra.mxu0 %v1929
    %1966 = vmatprep.subr.bf16.mxu0 0
    %1967 = vmatpush1.bf16.msra.mxu0 %v1930
    %1968 = vmatprep.subr.bf16.mxu0 0
    %1969 = vmatpush1.bf16.msra.mxu0 %v1931
    %1970 = vmatprep.subr.bf16.mxu0 0
    %1971 = vmatpush1.bf16.msra.mxu0 %v1932
    %1972 = vmatprep.subr.bf16.mxu0 0
    %1973 = vmatpush1.bf16.msra.mxu0 %v1933
    %1974 = vmatprep.subr.bf16.mxu0 0
    %1975 = vmatpush1.bf16.msra.mxu0 %v1934
    %1976 = vmatprep.subr.bf16.mxu0 0
    %1977 = vmatpush1.bf16.msra.mxu0 %v1935
    %1978 = vmatprep.subr.bf16.mxu0 0
    %1979 = vmatpush1.bf16.msra.mxu0 %v1936
    %1980 = vmatprep.subr.bf16.mxu0 0
    %1981 = vmatpush1.bf16.msra.mxu0 %v1937
    %1982 = vmatprep.subr.bf16.mxu0 0
    %1983 = vmatpush1.bf16.msra.mxu0 %v1938
    %1984 = vmatprep.subr.bf16.mxu0 0
    %1985 = vmatpush1.bf16.msra.mxu0 %v1939
    %1986 = vmatprep.subr.bf16.mxu0 0
    %1987 = vmatpush1.bf16.msra.mxu0 %v1940
    %1988 = vmatprep.subr.bf16.mxu0 0
    %1989 = vmatpush1.bf16.msra.mxu0 %v1941
    %1990 = vmatprep.mubr.bf16.mxu0 %v1826
    %1991 = vmatmul.mubr.bf16.gmra.mrb[0].mxu0 %v1825
    %v1992 = vpop.f32.mrb[0].mxu0
    %v1993 = vadd.f32 0.0, %v1992
    %v1994 = vpop.f32.mrb[0].mxu0
    %v1995 = vpop.f32.mrb[0].mxu0
    %v1996 = vpop.f32.mrb[0].mxu0
    %1997 = vdwg.mxu0
    %v1998 = vadd.f32 %v1829, %v1993
    %s1999 = scalar_lea.vmem %s5, 128
    %v2000 = vld [vmem:[%s1999] sm:$0xf]
    %v2001 = vld [vmem:[%s1999 + $0x4] sm:$0xf]
    %v2002 = vld [vmem:[%s1999 + $0x8] sm:$0xf]
    %v2003 = vld [vmem:[%s1999 + $0xc] sm:$0xf]
    %v2004 = vld [vmem:[%s1999 + $0x10] sm:$0xf]
    %v2005 = vld [vmem:[%s1999 + $0x14] sm:$0xf]
    %v2006 = vld [vmem:[%s1999 + $0x18] sm:$0xf]
    %v2007 = vld [vmem:[%s1999 + $0x1c] sm:$0xf]
    %v2008 = vld [vmem:[%s1999 + $0x20] sm:$0xf]
    %v2009 = vld [vmem:[%s1999 + $0x24] sm:$0xf]
    %v2010 = vld [vmem:[%s1999 + $0x28] sm:$0xf]
    %v2011 = vld [vmem:[%s1999 + $0x2c] sm:$0xf]
    %v2012 = vld [vmem:[%s1999 + $0x30] sm:$0xf]
    %v2013 = vld [vmem:[%s1999 + $0x34] sm:$0xf]
    %v2014 = vld [vmem:[%s1999 + $0x38] sm:$0xf]
    %v2015 = vld [vmem:[%s1999 + $0x3c] sm:$0xf]
    %v2016 = vld [vmem:[%s1999 + $0x40] sm:$0xf]
    %v2017 = vld [vmem:[%s1999 + $0x44] sm:$0xf]
    %v2018 = vld [vmem:[%s1999 + $0x48] sm:$0xf]
    %v2019 = vld [vmem:[%s1999 + $0x4c] sm:$0xf]
    %v2020 = vld [vmem:[%s1999 + $0x50] sm:$0xf]
    %v2021 = vld [vmem:[%s1999 + $0x54] sm:$0xf]
    %v2022 = vld [vmem:[%s1999 + $0x58] sm:$0xf]
    %v2023 = vld [vmem:[%s1999 + $0x5c] sm:$0xf]
    %v2024 = vld [vmem:[%s1999 + $0x60] sm:$0xf]
    %v2025 = vld [vmem:[%s1999 + $0x64] sm:$0xf]
    %v2026 = vld [vmem:[%s1999 + $0x68] sm:$0xf]
    %v2027 = vld [vmem:[%s1999 + $0x6c] sm:$0xf]
    %v2028 = vld [vmem:[%s1999 + $0x70] sm:$0xf]
    %v2029 = vld [vmem:[%s1999 + $0x74] sm:$0xf]
    %v2030 = vld [vmem:[%s1999 + $0x78] sm:$0xf]
    %v2031 = vld [vmem:[%s1999 + $0x7c] sm:$0xf]
    %v2033 = vshrl.u32 %v1825, 16
    %v2036 = vshrl.u32 %v1826, 16
    %v2072 = vunpack.c.l.b16 %v2000
    %v2073 = vunpack.c.l.b16 %v2001
    %v2074 = vunpack.c.l.b16 %v2002
    %v2075 = vunpack.c.l.b16 %v2003
    %v2076 = vunpack.c.l.b16 %v2004
    %v2077 = vunpack.c.l.b16 %v2005
    %v2078 = vunpack.c.l.b16 %v2006
    %v2079 = vunpack.c.l.b16 %v2007
    %v2080 = vunpack.c.l.b16 %v2008
    %v2081 = vunpack.c.l.b16 %v2009
    %v2082 = vunpack.c.l.b16 %v2010
    %v2083 = vunpack.c.l.b16 %v2011
    %v2084 = vunpack.c.l.b16 %v2012
    %v2085 = vunpack.c.l.b16 %v2013
    %v2086 = vunpack.c.l.b16 %v2014
    %v2087 = vunpack.c.l.b16 %v2015
    %v2088 = vunpack.c.l.b16 %v2016
    %v2089 = vunpack.c.l.b16 %v2017
    %v2090 = vunpack.c.l.b16 %v2018
    %v2091 = vunpack.c.l.b16 %v2019
    %v2092 = vunpack.c.l.b16 %v2020
    %v2093 = vunpack.c.l.b16 %v2021
    %v2094 = vunpack.c.l.b16 %v2022
    %v2095 = vunpack.c.l.b16 %v2023
    %v2096 = vunpack.c.l.b16 %v2024
    %v2097 = vunpack.c.l.b16 %v2025
    %v2098 = vunpack.c.l.b16 %v2026
    %v2099 = vunpack.c.l.b16 %v2027
    %v2100 = vunpack.c.l.b16 %v2028
    %v2101 = vunpack.c.l.b16 %v2029
    %v2102 = vunpack.c.l.b16 %v2030
    %v2103 = vunpack.c.l.b16 %v2031
    %v2104 = vpack.c.b16 %v2073, %v2072
    %v2105 = vpack.c.b16 %v2075, %v2074
    %v2106 = vpack.c.b16 %v2077, %v2076
    %v2107 = vpack.c.b16 %v2079, %v2078
    %v2108 = vpack.c.b16 %v2081, %v2080
    %v2109 = vpack.c.b16 %v2083, %v2082
    %v2110 = vpack.c.b16 %v2085, %v2084
    %v2111 = vpack.c.b16 %v2087, %v2086
    %v2112 = vpack.c.b16 %v2089, %v2088
    %v2113 = vpack.c.b16 %v2091, %v2090
    %v2114 = vpack.c.b16 %v2093, %v2092
    %v2115 = vpack.c.b16 %v2095, %v2094
    %v2116 = vpack.c.b16 %v2097, %v2096
    %v2117 = vpack.c.b16 %v2099, %v2098
    %v2118 = vpack.c.b16 %v2101, %v2100
    %v2119 = vpack.c.b16 %v2103, %v2102
    %2136 = vmatprep.subr.bf16.mxu0 0
    %2137 = vmatpush1.bf16.msra.mxu0 %v2104
    %2138 = vmatprep.subr.bf16.mxu0 0
    %2139 = vmatpush1.bf16.msra.mxu0 %v2105
    %2140 = vmatprep.subr.bf16.mxu0 0
    %2141 = vmatpush1.bf16.msra.mxu0 %v2106
    %2142 = vmatprep.subr.bf16.mxu0 0
    %2143 = vmatpush1.bf16.msra.mxu0 %v2107
    %2144 = vmatprep.subr.bf16.mxu0 0
    %2145 = vmatpush1.bf16.msra.mxu0 %v2108
    %2146 = vmatprep.subr.bf16.mxu0 0
    %2147 = vmatpush1.bf16.msra.mxu0 %v2109
    %2148 = vmatprep.subr.bf16.mxu0 0
    %2149 = vmatpush1.bf16.msra.mxu0 %v2110
    %2150 = vmatprep.subr.bf16.mxu0 0
    %2151 = vmatpush1.bf16.msra.mxu0 %v2111
    %2152 = vmatprep.subr.bf16.mxu0 0
    %2153 = vmatpush1.bf16.msra.mxu0 %v2112
    %2154 = vmatprep.subr.bf16.mxu0 0
    %2155 = vmatpush1.bf16.msra.mxu0 %v2113
    %2156 = vmatprep.subr.bf16.mxu0 0
    %2157 = vmatpush1.bf16.msra.mxu0 %v2114
    %2158 = vmatprep.subr.bf16.mxu0 0
    %2159 = vmatpush1.bf16.msra.mxu0 %v2115
    %2160 = vmatprep.subr.bf16.mxu0 0
    %2161 = vmatpush1.bf16.msra.mxu0 %v2116
    %2162 = vmatprep.subr.bf16.mxu0 0
    %2163 = vmatpush1.bf16.msra.mxu0 %v2117
    %2164 = vmatprep.subr.bf16.mxu0 0
    %2165 = vmatpush1.bf16.msra.mxu0 %v2118
    %2166 = vmatprep.subr.bf16.mxu0 0
    %2167 = vmatpush1.bf16.msra.mxu0 %v2119
    %2168 = vmatprep.mubr.bf16.mxu0 %v2036
    %2169 = vmatmul.mubr.bf16.gmra.mrb[0].mxu0 %v2033
    %v2170 = vpop.f32.mrb[0].mxu0
    %v2171 = vadd.f32 0.0, %v2170
    %v2172 = vpop.f32.mrb[0].mxu0
    %v2173 = vpop.f32.mrb[0].mxu0
    %v2174 = vpop.f32.mrb[0].mxu0
    %2175 = vdwg.mxu0
    %v2176 = vadd.f32 %v1998, %v2171
    %s2177 = scalar_lea.vmem %s5, 256
    %v2178 = vld [vmem:[%s2177] sm:$0xf]
    %v2179 = vld [vmem:[%s2177 + $0x4] sm:$0xf]
    %v2180 = vld [vmem:[%s2177 + $0x8] sm:$0xf]
    %v2181 = vld [vmem:[%s2177 + $0xc] sm:$0xf]
    %v2182 = vld [vmem:[%s2177 + $0x10] sm:$0xf]
    %v2183 = vld [vmem:[%s2177 + $0x14] sm:$0xf]
    %v2184 = vld [vmem:[%s2177 + $0x18] sm:$0xf]
    %v2185 = vld [vmem:[%s2177 + $0x1c] sm:$0xf]
    %v2186 = vld [vmem:[%s2177 + $0x20] sm:$0xf]
    %v2187 = vld [vmem:[%s2177 + $0x24] sm:$0xf]
    %v2188 = vld [vmem:[%s2177 + $0x28] sm:$0xf]
    %v2189 = vld [vmem:[%s2177 + $0x2c] sm:$0xf]
    %v2190 = vld [vmem:[%s2177 + $0x30] sm:$0xf]
    %v2191 = vld [vmem:[%s2177 + $0x34] sm:$0xf]
    %v2192 = vld [vmem:[%s2177 + $0x38] sm:$0xf]
    %v2193 = vld [vmem:[%s2177 + $0x3c] sm:$0xf]
    %v2194 = vld [vmem:[%s2177 + $0x40] sm:$0xf]
    %v2195 = vld [vmem:[%s2177 + $0x44] sm:$0xf]
    %v2196 = vld [vmem:[%s2177 + $0x48] sm:$0xf]
    %v2197 = vld [vmem:[%s2177 + $0x4c] sm:$0xf]
    %v2198 = vld [vmem:[%s2177 + $0x50] sm:$0xf]
    %v2199 = vld [vmem:[%s2177 + $0x54] sm:$0xf]
    %v2200 = vld [vmem:[%s2177 + $0x58] sm:$0xf]
    %v2201 = vld [vmem:[%s2177 + $0x5c] sm:$0xf]
    %v2202 = vld [vmem:[%s2177 + $0x60] sm:$0xf]
    %v2203 = vld [vmem:[%s2177 + $0x64] sm:$0xf]
    %v2204 = vld [vmem:[%s2177 + $0x68] sm:$0xf]
    %v2205 = vld [vmem:[%s2177 + $0x6c] sm:$0xf]
    %v2206 = vld [vmem:[%s2177 + $0x70] sm:$0xf]
    %v2207 = vld [vmem:[%s2177 + $0x74] sm:$0xf]
    %v2208 = vld [vmem:[%s2177 + $0x78] sm:$0xf]
    %v2209 = vld [vmem:[%s2177 + $0x7c] sm:$0xf]
    %v2212 = vrot.slane %v1825, 1
    %v2213 = vrot.slane %v1826, 1
    %v2248 = vunpack.c.l.b16 %v2178
    %v2249 = vunpack.c.l.b16 %v2179
    %v2250 = vunpack.c.l.b16 %v2180
    %v2251 = vunpack.c.l.b16 %v2181
    %v2252 = vunpack.c.l.b16 %v2182
    %v2253 = vunpack.c.l.b16 %v2183
    %v2254 = vunpack.c.l.b16 %v2184
    %v2255 = vunpack.c.l.b16 %v2185
    %v2256 = vunpack.c.l.b16 %v2186
    %v2257 = vunpack.c.l.b16 %v2187
    %v2258 = vunpack.c.l.b16 %v2188
    %v2259 = vunpack.c.l.b16 %v2189
    %v2260 = vunpack.c.l.b16 %v2190
    %v2261 = vunpack.c.l.b16 %v2191
    %v2262 = vunpack.c.l.b16 %v2192
    %v2263 = vunpack.c.l.b16 %v2193
    %v2264 = vunpack.c.l.b16 %v2194
    %v2265 = vunpack.c.l.b16 %v2195
    %v2266 = vunpack.c.l.b16 %v2196
    %v2267 = vunpack.c.l.b16 %v2197
    %v2268 = vunpack.c.l.b16 %v2198
    %v2269 = vunpack.c.l.b16 %v2199
    %v2270 = vunpack.c.l.b16 %v2200
    %v2271 = vunpack.c.l.b16 %v2201
    %v2272 = vunpack.c.l.b16 %v2202
    %v2273 = vunpack.c.l.b16 %v2203
    %v2274 = vunpack.c.l.b16 %v2204
    %v2275 = vunpack.c.l.b16 %v2205
    %v2276 = vunpack.c.l.b16 %v2206
    %v2277 = vunpack.c.l.b16 %v2207
    %v2278 = vunpack.c.l.b16 %v2208
    %v2279 = vunpack.c.l.b16 %v2209
    %v2280 = vpack.c.b16 %v2249, %v2248
    %v2281 = vpack.c.b16 %v2251, %v2250
    %v2282 = vpack.c.b16 %v2253, %v2252
    %v2283 = vpack.c.b16 %v2255, %v2254
    %v2284 = vpack.c.b16 %v2257, %v2256
    %v2285 = vpack.c.b16 %v2259, %v2258
    %v2286 = vpack.c.b16 %v2261, %v2260
    %v2287 = vpack.c.b16 %v2263, %v2262
    %v2288 = vpack.c.b16 %v2265, %v2264
    %v2289 = vpack.c.b16 %v2267, %v2266
    %v2290 = vpack.c.b16 %v2269, %v2268
    %v2291 = vpack.c.b16 %v2271, %v2270
    %v2292 = vpack.c.b16 %v2273, %v2272
    %v2293 = vpack.c.b16 %v2275, %v2274
    %v2294 = vpack.c.b16 %v2277, %v2276
    %v2295 = vpack.c.b16 %v2279, %v2278
    %2312 = vmatprep.subr.bf16.mxu0 0
    %2313 = vmatpush1.bf16.msra.mxu0 %v2280
    %2314 = vmatprep.subr.bf16.mxu0 0
    %2315 = vmatpush1.bf16.msra.mxu0 %v2281
    %2316 = vmatprep.subr.bf16.mxu0 0
    %2317 = vmatpush1.bf16.msra.mxu0 %v2282
    %2318 = vmatprep.subr.bf16.mxu0 0
    %2319 = vmatpush1.bf16.msra.mxu0 %v2283
    %2320 = vmatprep.subr.bf16.mxu0 0
    %2321 = vmatpush1.bf16.msra.mxu0 %v2284
    %2322 = vmatprep.subr.bf16.mxu0 0
    %2323 = vmatpush1.bf16.msra.mxu0 %v2285
    %2324 = vmatprep.subr.bf16.mxu0 0
    %2325 = vmatpush1.bf16.msra.mxu0 %v2286
    %2326 = vmatprep.subr.bf16.mxu0 0
    %2327 = vmatpush1.bf16.msra.mxu0 %v2287
    %2328 = vmatprep.subr.bf16.mxu0 0
    %2329 = vmatpush1.bf16.msra.mxu0 %v2288
    %2330 = vmatprep.subr.bf16.mxu0 0
    %2331 = vmatpush1.bf16.msra.mxu0 %v2289
    %2332 = vmatprep.subr.bf16.mxu0 0
    %2333 = vmatpush1.bf16.msra.mxu0 %v2290
    %2334 = vmatprep.subr.bf16.mxu0 0
    %2335 = vmatpush1.bf16.msra.mxu0 %v2291
    %2336 = vmatprep.subr.bf16.mxu0 0
    %2337 = vmatpush1.bf16.msra.mxu0 %v2292
    %2338 = vmatprep.subr.bf16.mxu0 0
    %2339 = vmatpush1.bf16.msra.mxu0 %v2293
    %2340 = vmatprep.subr.bf16.mxu0 0
    %2341 = vmatpush1.bf16.msra.mxu0 %v2294
    %2342 = vmatprep.subr.bf16.mxu0 0
    %2343 = vmatpush1.bf16.msra.mxu0 %v2295
    %2344 = vmatprep.mubr.bf16.mxu0 %v2213
    %2345 = vmatmul.mubr.bf16.gmra.mrb[0].mxu0 %v2212
    %v2346 = vpop.f32.mrb[0].mxu0
    %v2347 = vadd.f32 0.0, %v2346
    %v2348 = vpop.f32.mrb[0].mxu0
    %v2349 = vpop.f32.mrb[0].mxu0
    %v2350 = vpop.f32.mrb[0].mxu0
    %2351 = vdwg.mxu0
    %v2352 = vadd.f32 %v2176, %v2347
    %s2353 = scalar_lea.vmem %s5, 384
    %v2354 = vld [vmem:[%s2353] sm:$0xf]
    %v2355 = vld [vmem:[%s2353 + $0x4] sm:$0xf]
    %v2356 = vld [vmem:[%s2353 + $0x8] sm:$0xf]
    %v2357 = vld [vmem:[%s2353 + $0xc] sm:$0xf]
    %v2358 = vld [vmem:[%s2353 + $0x10] sm:$0xf]
    %v2359 = vld [vmem:[%s2353 + $0x14] sm:$0xf]
    %v2360 = vld [vmem:[%s2353 + $0x18] sm:$0xf]
    %v2361 = vld [vmem:[%s2353 + $0x1c] sm:$0xf]
    %v2362 = vld [vmem:[%s2353 + $0x20] sm:$0xf]
    %v2363 = vld [vmem:[%s2353 + $0x24] sm:$0xf]
    %v2364 = vld [vmem:[%s2353 + $0x28] sm:$0xf]
    %v2365 = vld [vmem:[%s2353 + $0x2c] sm:$0xf]
    %v2366 = vld [vmem:[%s2353 + $0x30] sm:$0xf]
    %v2367 = vld [vmem:[%s2353 + $0x34] sm:$0xf]
    %v2368 = vld [vmem:[%s2353 + $0x38] sm:$0xf]
    %v2369 = vld [vmem:[%s2353 + $0x3c] sm:$0xf]
    %v2370 = vld [vmem:[%s2353 + $0x40] sm:$0xf]
    %v2371 = vld [vmem:[%s2353 + $0x44] sm:$0xf]
    %v2372 = vld [vmem:[%s2353 + $0x48] sm:$0xf]
    %v2373 = vld [vmem:[%s2353 + $0x4c] sm:$0xf]
    %v2374 = vld [vmem:[%s2353 + $0x50] sm:$0xf]
    %v2375 = vld [vmem:[%s2353 + $0x54] sm:$0xf]
    %v2376 = vld [vmem:[%s2353 + $0x58] sm:$0xf]
    %v2377 = vld [vmem:[%s2353 + $0x5c] sm:$0xf]
    %v2378 = vld [vmem:[%s2353 + $0x60] sm:$0xf]
    %v2379 = vld [vmem:[%s2353 + $0x64] sm:$0xf]
    %v2380 = vld [vmem:[%s2353 + $0x68] sm:$0xf]
    %v2381 = vld [vmem:[%s2353 + $0x6c] sm:$0xf]
    %v2382 = vld [vmem:[%s2353 + $0x70] sm:$0xf]
    %v2383 = vld [vmem:[%s2353 + $0x74] sm:$0xf]
    %v2384 = vld [vmem:[%s2353 + $0x78] sm:$0xf]
    %v2385 = vld [vmem:[%s2353 + $0x7c] sm:$0xf]
    %v2386 = vrot.slane %v2033, 1
    %v2387 = vrot.slane %v2036, 1
    %v2422 = vunpack.c.l.b16 %v2354
    %v2423 = vunpack.c.l.b16 %v2355
    %v2424 = vunpack.c.l.b16 %v2356
    %v2425 = vunpack.c.l.b16 %v2357
    %v2426 = vunpack.c.l.b16 %v2358
    %v2427 = vunpack.c.l.b16 %v2359
    %v2428 = vunpack.c.l.b16 %v2360
    %v2429 = vunpack.c.l.b16 %v2361
    %v2430 = vunpack.c.l.b16 %v2362
    %v2431 = vunpack.c.l.b16 %v2363
    %v2432 = vunpack.c.l.b16 %v2364
    %v2433 = vunpack.c.l.b16 %v2365
    %v2434 = vunpack.c.l.b16 %v2366
    %v2435 = vunpack.c.l.b16 %v2367
    %v2436 = vunpack.c.l.b16 %v2368
    %v2437 = vunpack.c.l.b16 %v2369
    %v2438 = vunpack.c.l.b16 %v2370
    %v2439 = vunpack.c.l.b16 %v2371
    %v2440 = vunpack.c.l.b16 %v2372
    %v2441 = vunpack.c.l.b16 %v2373
    %v2442 = vunpack.c.l.b16 %v2374
    %v2443 = vunpack.c.l.b16 %v2375
    %v2444 = vunpack.c.l.b16 %v2376
    %v2445 = vunpack.c.l.b16 %v2377
    %v2446 = vunpack.c.l.b16 %v2378
    %v2447 = vunpack.c.l.b16 %v2379
    %v2448 = vunpack.c.l.b16 %v2380
    %v2449 = vunpack.c.l.b16 %v2381
    %v2450 = vunpack.c.l.b16 %v2382
    %v2451 = vunpack.c.l.b16 %v2383
    %v2452 = vunpack.c.l.b16 %v2384
    %v2453 = vunpack.c.l.b16 %v2385
    %v2454 = vpack.c.b16 %v2423, %v2422
    %v2455 = vpack.c.b16 %v2425, %v2424
    %v2456 = vpack.c.b16 %v2427, %v2426
    %v2457 = vpack.c.b16 %v2429, %v2428
    %v2458 = vpack.c.b16 %v2431, %v2430
    %v2459 = vpack.c.b16 %v2433, %v2432
    %v2460 = vpack.c.b16 %v2435, %v2434
    %v2461 = vpack.c.b16 %v2437, %v2436
    %v2462 = vpack.c.b16 %v2439, %v2438
    %v2463 = vpack.c.b16 %v2441, %v2440
    %v2464 = vpack.c.b16 %v2443, %v2442
    %v2465 = vpack.c.b16 %v2445, %v2444
    %v2466 = vpack.c.b16 %v2447, %v2446
    %v2467 = vpack.c.b16 %v2449, %v2448
    %v2468 = vpack.c.b16 %v2451, %v2450
    %v2469 = vpack.c.b16 %v2453, %v2452
    %2486 = vmatprep.subr.bf16.mxu0 0
    %2487 = vmatpush1.bf16.msra.mxu0 %v2454
    %2488 = vmatprep.subr.bf16.mxu0 0
    %2489 = vmatpush1.bf16.msra.mxu0 %v2455
    %2490 = vmatprep.subr.bf16.mxu0 0
    %2491 = vmatpush1.bf16.msra.mxu0 %v2456
    %2492 = vmatprep.subr.bf16.mxu0 0
    %2493 = vmatpush1.bf16.msra.mxu0 %v2457
    %2494 = vmatprep.subr.bf16.mxu0 0
    %2495 = vmatpush1.bf16.msra.mxu0 %v2458
    %2496 = vmatprep.subr.bf16.mxu0 0
    %2497 = vmatpush1.bf16.msra.mxu0 %v2459
    %2498 = vmatprep.subr.bf16.mxu0 0
    %2499 = vmatpush1.bf16.msra.mxu0 %v2460
    %2500 = vmatprep.subr.bf16.mxu0 0
    %2501 = vmatpush1.bf16.msra.mxu0 %v2461
    %2502 = vmatprep.subr.bf16.mxu0 0
    %2503 = vmatpush1.bf16.msra.mxu0 %v2462
    %2504 = vmatprep.subr.bf16.mxu0 0
    %2505 = vmatpush1.bf16.msra.mxu0 %v2463
    %2506 = vmatprep.subr.bf16.mxu0 0
    %2507 = vmatpush1.bf16.msra.mxu0 %v2464
    %2508 = vmatprep.subr.bf16.mxu0 0
    %2509 = vmatpush1.bf16.msra.mxu0 %v2465
    %2510 = vmatprep.subr.bf16.mxu0 0
    %2511 = vmatpush1.bf16.msra.mxu0 %v2466
    %2512 = vmatprep.subr.bf16.mxu0 0
    %2513 = vmatpush1.bf16.msra.mxu0 %v2467
    %2514 = vmatprep.subr.bf16.mxu0 0
    %2515 = vmatpush1.bf16.msra.mxu0 %v2468
    %2516 = vmatprep.subr.bf16.mxu0 0
    %2517 = vmatpush1.bf16.msra.mxu0 %v2469
    %2518 = vmatprep.mubr.bf16.mxu0 %v2387
    %2519 = vmatmul.mubr.bf16.gmra.mrb[0].mxu0 %v2386
    %v2520 = vpop.f32.mrb[0].mxu0
    %v2521 = vadd.f32 0.0, %v2520
    %v2522 = vpop.f32.mrb[0].mxu0
    %v2523 = vpop.f32.mrb[0].mxu0
    %v2524 = vpop.f32.mrb[0].mxu0
    %2525 = vdwg.mxu0
    %v2526 = vadd.f32 %v2352, %v2521
    %s2527 = scalar_lea.vmem %s5, 512
    %v2528 = vld [vmem:[%s2527] sm:$0xf]
    %v2529 = vld [vmem:[%s2527 + $0x4] sm:$0xf]
    %v2530 = vld [vmem:[%s2527 + $0x8] sm:$0xf]
    %v2531 = vld [vmem:[%s2527 + $0xc] sm:$0xf]
    %v2532 = vld [vmem:[%s2527 + $0x10] sm:$0xf]
    %v2533 = vld [vmem:[%s2527 + $0x14] sm:$0xf]
    %v2534 = vld [vmem:[%s2527 + $0x18] sm:$0xf]
    %v2535 = vld [vmem:[%s2527 + $0x1c] sm:$0xf]
    %v2536 = vld [vmem:[%s2527 + $0x20] sm:$0xf]
    %v2537 = vld [vmem:[%s2527 + $0x24] sm:$0xf]
    %v2538 = vld [vmem:[%s2527 + $0x28] sm:$0xf]
    %v2539 = vld [vmem:[%s2527 + $0x2c] sm:$0xf]
    %v2540 = vld [vmem:[%s2527 + $0x30] sm:$0xf]
    %v2541 = vld [vmem:[%s2527 + $0x34] sm:$0xf]
    %v2542 = vld [vmem:[%s2527 + $0x38] sm:$0xf]
    %v2543 = vld [vmem:[%s2527 + $0x3c] sm:$0xf]
    %v2544 = vld [vmem:[%s2527 + $0x40] sm:$0xf]
    %v2545 = vld [vmem:[%s2527 + $0x44] sm:$0xf]
    %v2546 = vld [vmem:[%s2527 + $0x48] sm:$0xf]
    %v2547 = vld [vmem:[%s2527 + $0x4c] sm:$0xf]
    %v2548 = vld [vmem:[%s2527 + $0x50] sm:$0xf]
    %v2549 = vld [vmem:[%s2527 + $0x54] sm:$0xf]
    %v2550 = vld [vmem:[%s2527 + $0x58] sm:$0xf]
    %v2551 = vld [vmem:[%s2527 + $0x5c] sm:$0xf]
    %v2552 = vld [vmem:[%s2527 + $0x60] sm:$0xf]
    %v2553 = vld [vmem:[%s2527 + $0x64] sm:$0xf]
    %v2554 = vld [vmem:[%s2527 + $0x68] sm:$0xf]
    %v2555 = vld [vmem:[%s2527 + $0x6c] sm:$0xf]
    %v2556 = vld [vmem:[%s2527 + $0x70] sm:$0xf]
    %v2557 = vld [vmem:[%s2527 + $0x74] sm:$0xf]
    %v2558 = vld [vmem:[%s2527 + $0x78] sm:$0xf]
    %v2559 = vld [vmem:[%s2527 + $0x7c] sm:$0xf]
    %v2560 = vrot.slane %v1825, 2
    %v2561 = vrot.slane %v1826, 2
    %v2596 = vunpack.c.l.b16 %v2528
    %v2597 = vunpack.c.l.b16 %v2529
    %v2598 = vunpack.c.l.b16 %v2530
    %v2599 = vunpack.c.l.b16 %v2531
    %v2600 = vunpack.c.l.b16 %v2532
    %v2601 = vunpack.c.l.b16 %v2533
    %v2602 = vunpack.c.l.b16 %v2534
    %v2603 = vunpack.c.l.b16 %v2535
    %v2604 = vunpack.c.l.b16 %v2536
    %v2605 = vunpack.c.l.b16 %v2537
    %v2606 = vunpack.c.l.b16 %v2538
    %v2607 = vunpack.c.l.b16 %v2539
    %v2608 = vunpack.c.l.b16 %v2540
    %v2609 = vunpack.c.l.b16 %v2541
    %v2610 = vunpack.c.l.b16 %v2542
    %v2611 = vunpack.c.l.b16 %v2543
    %v2612 = vunpack.c.l.b16 %v2544
    %v2613 = vunpack.c.l.b16 %v2545
    %v2614 = vunpack.c.l.b16 %v2546
    %v2615 = vunpack.c.l.b16 %v2547
    %v2616 = vunpack.c.l.b16 %v2548
    %v2617 = vunpack.c.l.b16 %v2549
    %v2618 = vunpack.c.l.b16 %v2550
    %v2619 = vunpack.c.l.b16 %v2551
    %v2620 = vunpack.c.l.b16 %v2552
    %v2621 = vunpack.c.l.b16 %v2553
    %v2622 = vunpack.c.l.b16 %v2554
    %v2623 = vunpack.c.l.b16 %v2555
    %v2624 = vunpack.c.l.b16 %v2556
    %v2625 = vunpack.c.l.b16 %v2557
    %v2626 = vunpack.c.l.b16 %v2558
    %v2627 = vunpack.c.l.b16 %v2559
    %v2628 = vpack.c.b16 %v2597, %v2596
    %v2629 = vpack.c.b16 %v2599, %v2598
    %v2630 = vpack.c.b16 %v2601, %v2600
    %v2631 = vpack.c.b16 %v2603, %v2602
    %v2632 = vpack.c.b16 %v2605, %v2604
    %v2633 = vpack.c.b16 %v2607, %v2606
    %v2634 = vpack.c.b16 %v2609, %v2608
    %v2635 = vpack.c.b16 %v2611, %v2610
    %v2636 = vpack.c.b16 %v2613, %v2612
    %v2637 = vpack.c.b16 %v2615, %v2614
    %v2638 = vpack.c.b16 %v2617, %v2616
    %v2639 = vpack.c.b16 %v2619, %v2618
    %v2640 = vpack.c.b16 %v2621, %v2620
    %v2641 = vpack.c.b16 %v2623, %v2622
    %v2642 = vpack.c.b16 %v2625, %v2624
    %v2643 = vpack.c.b16 %v2627, %v2626
    %2660 = vmatprep.subr.bf16.mxu0 0
    %2661 = vmatpush1.bf16.msra.mxu0 %v2628
    %2662 = vmatprep.subr.bf16.mxu0 0
    %2663 = vmatpush1.bf16.msra.mxu0 %v2629
    %2664 = vmatprep.subr.bf16.mxu0 0
    %2665 = vmatpush1.bf16.msra.mxu0 %v2630
    %2666 = vmatprep.subr.bf16.mxu0 0
    %2667 = vmatpush1.bf16.msra.mxu0 %v2631
    %2668 = vmatprep.subr.bf16.mxu0 0
    %2669 = vmatpush1.bf16.msra.mxu0 %v2632
    %2670 = vmatprep.subr.bf16.mxu0 0
    %2671 = vmatpush1.bf16.msra.mxu0 %v2633
    %2672 = vmatprep.subr.bf16.mxu0 0
    %2673 = vmatpush1.bf16.msra.mxu0 %v2634
    %2674 = vmatprep.subr.bf16.mxu0 0
    %2675 = vmatpush1.bf16.msra.mxu0 %v2635
    %2676 = vmatprep.subr.bf16.mxu0 0
    %2677 = vmatpush1.bf16.msra.mxu0 %v2636
    %2678 = vmatprep.subr.bf16.mxu0 0
    %2679 = vmatpush1.bf16.msra.mxu0 %v2637
    %2680 = vmatprep.subr.bf16.mxu0 0
    %2681 = vmatpush1.bf16.msra.mxu0 %v2638
    %2682 = vmatprep.subr.bf16.mxu0 0
    %2683 = vmatpush1.bf16.msra.mxu0 %v2639
    %2684 = vmatprep.subr.bf16.mxu0 0
    %2685 = vmatpush1.bf16.msra.mxu0 %v2640
    %2686 = vmatprep.subr.bf16.mxu0 0
    %2687 = vmatpush1.bf16.msra.mxu0 %v2641
    %2688 = vmatprep.subr.bf16.mxu0 0
    %2689 = vmatpush1.bf16.msra.mxu0 %v2642
    %2690 = vmatprep.subr.bf16.mxu0 0
    %2691 = vmatpush1.bf16.msra.mxu0 %v2643
    %2692 = vmatprep.mubr.bf16.mxu0 %v2561
    %2693 = vmatmul.mubr.bf16.gmra.mrb[0].mxu0 %v2560
    %v2694 = vpop.f32.mrb[0].mxu0
    %v2695 = vadd.f32 0.0, %v2694
    %v2696 = vpop.f32.mrb[0].mxu0
    %v2697 = vpop.f32.mrb[0].mxu0
    %v2698 = vpop.f32.mrb[0].mxu0
    %2699 = vdwg.mxu0
    %v2700 = vadd.f32 %v2526, %v2695
    %s2701 = scalar_lea.vmem %s5, 640
    %v2702 = vld [vmem:[%s2701] sm:$0xf]
    %v2703 = vld [vmem:[%s2701 + $0x4] sm:$0xf]
    %v2704 = vld [vmem:[%s2701 + $0x8] sm:$0xf]
    %v2705 = vld [vmem:[%s2701 + $0xc] sm:$0xf]
    %v2706 = vld [vmem:[%s2701 + $0x10] sm:$0xf]
    %v2707 = vld [vmem:[%s2701 + $0x14] sm:$0xf]
    %v2708 = vld [vmem:[%s2701 + $0x18] sm:$0xf]
    %v2709 = vld [vmem:[%s2701 + $0x1c] sm:$0xf]
    %v2710 = vld [vmem:[%s2701 + $0x20] sm:$0xf]
    %v2711 = vld [vmem:[%s2701 + $0x24] sm:$0xf]
    %v2712 = vld [vmem:[%s2701 + $0x28] sm:$0xf]
    %v2713 = vld [vmem:[%s2701 + $0x2c] sm:$0xf]
    %v2714 = vld [vmem:[%s2701 + $0x30] sm:$0xf]
    %v2715 = vld [vmem:[%s2701 + $0x34] sm:$0xf]
    %v2716 = vld [vmem:[%s2701 + $0x38] sm:$0xf]
    %v2717 = vld [vmem:[%s2701 + $0x3c] sm:$0xf]
    %v2718 = vld [vmem:[%s2701 + $0x40] sm:$0xf]
    %v2719 = vld [vmem:[%s2701 + $0x44] sm:$0xf]
    %v2720 = vld [vmem:[%s2701 + $0x48] sm:$0xf]
    %v2721 = vld [vmem:[%s2701 + $0x4c] sm:$0xf]
    %v2722 = vld [vmem:[%s2701 + $0x50] sm:$0xf]
    %v2723 = vld [vmem:[%s2701 + $0x54] sm:$0xf]
    %v2724 = vld [vmem:[%s2701 + $0x58] sm:$0xf]
    %v2725 = vld [vmem:[%s2701 + $0x5c] sm:$0xf]
    %v2726 = vld [vmem:[%s2701 + $0x60] sm:$0xf]
    %v2727 = vld [vmem:[%s2701 + $0x64] sm:$0xf]
    %v2728 = vld [vmem:[%s2701 + $0x68] sm:$0xf]
    %v2729 = vld [vmem:[%s2701 + $0x6c] sm:$0xf]
    %v2730 = vld [vmem:[%s2701 + $0x70] sm:$0xf]
    %v2731 = vld [vmem:[%s2701 + $0x74] sm:$0xf]
    %v2732 = vld [vmem:[%s2701 + $0x78] sm:$0xf]
    %v2733 = vld [vmem:[%s2701 + $0x7c] sm:$0xf]
    %v2734 = vrot.slane %v2033, 2
    %v2735 = vrot.slane %v2036, 2
    %v2770 = vunpack.c.l.b16 %v2702
    %v2771 = vunpack.c.l.b16 %v2703
    %v2772 = vunpack.c.l.b16 %v2704
    %v2773 = vunpack.c.l.b16 %v2705
    %v2774 = vunpack.c.l.b16 %v2706
    %v2775 = vunpack.c.l.b16 %v2707
    %v2776 = vunpack.c.l.b16 %v2708
    %v2777 = vunpack.c.l.b16 %v2709
    %v2778 = vunpack.c.l.b16 %v2710
    %v2779 = vunpack.c.l.b16 %v2711
    %v2780 = vunpack.c.l.b16 %v2712
    %v2781 = vunpack.c.l.b16 %v2713
    %v2782 = vunpack.c.l.b16 %v2714
    %v2783 = vunpack.c.l.b16 %v2715
    %v2784 = vunpack.c.l.b16 %v2716
    %v2785 = vunpack.c.l.b16 %v2717
    %v2786 = vunpack.c.l.b16 %v2718
    %v2787 = vunpack.c.l.b16 %v2719
    %v2788 = vunpack.c.l.b16 %v2720
    %v2789 = vunpack.c.l.b16 %v2721
    %v2790 = vunpack.c.l.b16 %v2722
    %v2791 = vunpack.c.l.b16 %v2723
    %v2792 = vunpack.c.l.b16 %v2724
    %v2793 = vunpack.c.l.b16 %v2725
    %v2794 = vunpack.c.l.b16 %v2726
    %v2795 = vunpack.c.l.b16 %v2727
    %v2796 = vunpack.c.l.b16 %v2728
    %v2797 = vunpack.c.l.b16 %v2729
    %v2798 = vunpack.c.l.b16 %v2730
    %v2799 = vunpack.c.l.b16 %v2731
    %v2800 = vunpack.c.l.b16 %v2732
    %v2801 = vunpack.c.l.b16 %v2733
    %v2802 = vpack.c.b16 %v2771, %v2770
    %v2803 = vpack.c.b16 %v2773, %v2772
    %v2804 = vpack.c.b16 %v2775, %v2774
    %v2805 = vpack.c.b16 %v2777, %v2776
    %v2806 = vpack.c.b16 %v2779, %v2778
    %v2807 = vpack.c.b16 %v2781, %v2780
    %v2808 = vpack.c.b16 %v2783, %v2782
    %v2809 = vpack.c.b16 %v2785, %v2784
    %v2810 = vpack.c.b16 %v2787, %v2786
    %v2811 = vpack.c.b16 %v2789, %v2788
    %v2812 = vpack.c.b16 %v2791, %v2790
    %v2813 = vpack.c.b16 %v2793, %v2792
    %v2814 = vpack.c.b16 %v2795, %v2794
    %v2815 = vpack.c.b16 %v2797, %v2796
    %v2816 = vpack.c.b16 %v2799, %v2798
    %v2817 = vpack.c.b16 %v2801, %v2800
    %2834 = vmatprep.subr.bf16.mxu0 0
    %2835 = vmatpush1.bf16.msra.mxu0 %v2802
    %2836 = vmatprep.subr.bf16.mxu0 0
    %2837 = vmatpush1.bf16.msra.mxu0 %v2803
    %2838 = vmatprep.subr.bf16.mxu0 0
    %2839 = vmatpush1.bf16.msra.mxu0 %v2804
    %2840 = vmatprep.subr.bf16.mxu0 0
    %2841 = vmatpush1.bf16.msra.mxu0 %v2805
    %2842 = vmatprep.subr.bf16.mxu0 0
    %2843 = vmatpush1.bf16.msra.mxu0 %v2806
    %2844 = vmatprep.subr.bf16.mxu0 0
    %2845 = vmatpush1.bf16.msra.mxu0 %v2807
    %2846 = vmatprep.subr.bf16.mxu0 0
    %2847 = vmatpush1.bf16.msra.mxu0 %v2808
    %2848 = vmatprep.subr.bf16.mxu0 0
    %2849 = vmatpush1.bf16.msra.mxu0 %v2809
    %2850 = vmatprep.subr.bf16.mxu0 0
    %2851 = vmatpush1.bf16.msra.mxu0 %v2810
    %2852 = vmatprep.subr.bf16.mxu0 0
    %2853 = vmatpush1.bf16.msra.mxu0 %v2811
    %2854 = vmatprep.subr.bf16.mxu0 0
    %2855 = vmatpush1.bf16.msra.mxu0 %v2812
    %2856 = vmatprep.subr.bf16.mxu0 0
    %2857 = vmatpush1.bf16.msra.mxu0 %v2813
    %2858 = vmatprep.subr.bf16.mxu0 0
    %2859 = vmatpush1.bf16.msra.mxu0 %v2814
    %2860 = vmatprep.subr.bf16.mxu0 0
    %2861 = vmatpush1.bf16.msra.mxu0 %v2815
    %2862 = vmatprep.subr.bf16.mxu0 0
    %2863 = vmatpush1.bf16.msra.mxu0 %v2816
    %2864 = vmatprep.subr.bf16.mxu0 0
    %2865 = vmatpush1.bf16.msra.mxu0 %v2817
    %2866 = vmatprep.mubr.bf16.mxu0 %v2735
    %2867 = vmatmul.mubr.bf16.gmra.mrb[0].mxu0 %v2734
    %v2868 = vpop.f32.mrb[0].mxu0
    %v2869 = vadd.f32 0.0, %v2868
    %v2870 = vpop.f32.mrb[0].mxu0
    %v2871 = vpop.f32.mrb[0].mxu0
    %v2872 = vpop.f32.mrb[0].mxu0
    %2873 = vdwg.mxu0
    %v2874 = vadd.f32 %v2700, %v2869
    %s2875 = scalar_lea.vmem %s5, 768
    %v2876 = vld [vmem:[%s2875] sm:$0xf]
    %v2877 = vld [vmem:[%s2875 + $0x4] sm:$0xf]
    %v2878 = vld [vmem:[%s2875 + $0x8] sm:$0xf]
    %v2879 = vld [vmem:[%s2875 + $0xc] sm:$0xf]
    %v2880 = vld [vmem:[%s2875 + $0x10] sm:$0xf]
    %v2881 = vld [vmem:[%s2875 + $0x14] sm:$0xf]
    %v2882 = vld [vmem:[%s2875 + $0x18] sm:$0xf]
    %v2883 = vld [vmem:[%s2875 + $0x1c] sm:$0xf]
    %v2884 = vld [vmem:[%s2875 + $0x20] sm:$0xf]
    %v2885 = vld [vmem:[%s2875 + $0x24] sm:$0xf]
    %v2886 = vld [vmem:[%s2875 + $0x28] sm:$0xf]
    %v2887 = vld [vmem:[%s2875 + $0x2c] sm:$0xf]
    %v2888 = vld [vmem:[%s2875 + $0x30] sm:$0xf]
    %v2889 = vld [vmem:[%s2875 + $0x34] sm:$0xf]
    %v2890 = vld [vmem:[%s2875 + $0x38] sm:$0xf]
    %v2891 = vld [vmem:[%s2875 + $0x3c] sm:$0xf]
    %v2892 = vld [vmem:[%s2875 + $0x40] sm:$0xf]
    %v2893 = vld [vmem:[%s2875 + $0x44] sm:$0xf]
    %v2894 = vld [vmem:[%s2875 + $0x48] sm:$0xf]
    %v2895 = vld [vmem:[%s2875 + $0x4c] sm:$0xf]
    %v2896 = vld [vmem:[%s2875 + $0x50] sm:$0xf]
    %v2897 = vld [vmem:[%s2875 + $0x54] sm:$0xf]
    %v2898 = vld [vmem:[%s2875 + $0x58] sm:$0xf]
    %v2899 = vld [vmem:[%s2875 + $0x5c] sm:$0xf]
    %v2900 = vld [vmem:[%s2875 + $0x60] sm:$0xf]
    %v2901 = vld [vmem:[%s2875 + $0x64] sm:$0xf]
    %v2902 = vld [vmem:[%s2875 + $0x68] sm:$0xf]
    %v2903 = vld [vmem:[%s2875 + $0x6c] sm:$0xf]
    %v2904 = vld [vmem:[%s2875 + $0x70] sm:$0xf]
    %v2905 = vld [vmem:[%s2875 + $0x74] sm:$0xf]
    %v2906 = vld [vmem:[%s2875 + $0x78] sm:$0xf]
    %v2907 = vld [vmem:[%s2875 + $0x7c] sm:$0xf]
    %v2908 = vrot.slane %v1825, 3
    %v2909 = vrot.slane %v1826, 3
    %v2944 = vunpack.c.l.b16 %v2876
    %v2945 = vunpack.c.l.b16 %v2877
    %v2946 = vunpack.c.l.b16 %v2878
    %v2947 = vunpack.c.l.b16 %v2879
    %v2948 = vunpack.c.l.b16 %v2880
    %v2949 = vunpack.c.l.b16 %v2881
    %v2950 = vunpack.c.l.b16 %v2882
    %v2951 = vunpack.c.l.b16 %v2883
    %v2952 = vunpack.c.l.b16 %v2884
    %v2953 = vunpack.c.l.b16 %v2885
    %v2954 = vunpack.c.l.b16 %v2886
    %v2955 = vunpack.c.l.b16 %v2887
    %v2956 = vunpack.c.l.b16 %v2888
    %v2957 = vunpack.c.l.b16 %v2889
    %v2958 = vunpack.c.l.b16 %v2890
    %v2959 = vunpack.c.l.b16 %v2891
    %v2960 = vunpack.c.l.b16 %v2892
    %v2961 = vunpack.c.l.b16 %v2893
    %v2962 = vunpack.c.l.b16 %v2894
    %v2963 = vunpack.c.l.b16 %v2895
    %v2964 = vunpack.c.l.b16 %v2896
    %v2965 = vunpack.c.l.b16 %v2897
    %v2966 = vunpack.c.l.b16 %v2898
    %v2967 = vunpack.c.l.b16 %v2899
    %v2968 = vunpack.c.l.b16 %v2900
    %v2969 = vunpack.c.l.b16 %v2901
    %v2970 = vunpack.c.l.b16 %v2902
    %v2971 = vunpack.c.l.b16 %v2903
    %v2972 = vunpack.c.l.b16 %v2904
    %v2973 = vunpack.c.l.b16 %v2905
    %v2974 = vunpack.c.l.b16 %v2906
    %v2975 = vunpack.c.l.b16 %v2907
    %v2976 = vpack.c.b16 %v2945, %v2944
    %v2977 = vpack.c.b16 %v2947, %v2946
    %v2978 = vpack.c.b16 %v2949, %v2948
    %v2979 = vpack.c.b16 %v2951, %v2950
    %v2980 = vpack.c.b16 %v2953, %v2952
    %v2981 = vpack.c.b16 %v2955, %v2954
    %v2982 = vpack.c.b16 %v2957, %v2956
    %v2983 = vpack.c.b16 %v2959, %v2958
    %v2984 = vpack.c.b16 %v2961, %v2960
    %v2985 = vpack.c.b16 %v2963, %v2962
    %v2986 = vpack.c.b16 %v2965, %v2964
    %v2987 = vpack.c.b16 %v2967, %v2966
    %v2988 = vpack.c.b16 %v2969, %v2968
    %v2989 = vpack.c.b16 %v2971, %v2970
    %v2990 = vpack.c.b16 %v2973, %v2972
    %v2991 = vpack.c.b16 %v2975, %v2974
    %3008 = vmatprep.subr.bf16.mxu0 0
    %3009 = vmatpush1.bf16.msra.mxu0 %v2976
    %3010 = vmatprep.subr.bf16.mxu0 0
    %3011 = vmatpush1.bf16.msra.mxu0 %v2977
    %3012 = vmatprep.subr.bf16.mxu0 0
    %3013 = vmatpush1.bf16.msra.mxu0 %v2978
    %3014 = vmatprep.subr.bf16.mxu0 0
    %3015 = vmatpush1.bf16.msra.mxu0 %v2979
    %3016 = vmatprep.subr.bf16.mxu0 0
    %3017 = vmatpush1.bf16.msra.mxu0 %v2980
    %3018 = vmatprep.subr.bf16.mxu0 0
    %3019 = vmatpush1.bf16.msra.mxu0 %v2981
    %3020 = vmatprep.subr.bf16.mxu0 0
    %3021 = vmatpush1.bf16.msra.mxu0 %v2982
    %3022 = vmatprep.subr.bf16.mxu0 0
    %3023 = vmatpush1.bf16.msra.mxu0 %v2983
    %3024 = vmatprep.subr.bf16.mxu0 0
    %3025 = vmatpush1.bf16.msra.mxu0 %v2984
    %3026 = vmatprep.subr.bf16.mxu0 0
    %3027 = vmatpush1.bf16.msra.mxu0 %v2985
    %3028 = vmatprep.subr.bf16.mxu0 0
    %3029 = vmatpush1.bf16.msra.mxu0 %v2986
    %3030 = vmatprep.subr.bf16.mxu0 0
    %3031 = vmatpush1.bf16.msra.mxu0 %v2987
    %3032 = vmatprep.subr.bf16.mxu0 0
    %3033 = vmatpush1.bf16.msra.mxu0 %v2988
    %3034 = vmatprep.subr.bf16.mxu0 0
    %3035 = vmatpush1.bf16.msra.mxu0 %v2989
    %3036 = vmatprep.subr.bf16.mxu0 0
    %3037 = vmatpush1.bf16.msra.mxu0 %v2990
    %3038 = vmatprep.subr.bf16.mxu0 0
    %3039 = vmatpush1.bf16.msra.mxu0 %v2991
    %3040 = vmatprep.mubr.bf16.mxu0 %v2909
    %3041 = vmatmul.mubr.bf16.gmra.mrb[0].mxu0 %v2908
    %v3042 = vpop.f32.mrb[0].mxu0
    %v3043 = vadd.f32 0.0, %v3042
    %v3044 = vpop.f32.mrb[0].mxu0
    %v3045 = vpop.f32.mrb[0].mxu0
    %v3046 = vpop.f32.mrb[0].mxu0
    %3047 = vdwg.mxu0
    %v3048 = vadd.f32 %v2874, %v3043
    %s3049 = scalar_lea.vmem %s5, 896
    %v3050 = vld [vmem:[%s3049] sm:$0xf]
    %v3051 = vld [vmem:[%s3049 + $0x4] sm:$0xf]
    %v3052 = vld [vmem:[%s3049 + $0x8] sm:$0xf]
    %v3053 = vld [vmem:[%s3049 + $0xc] sm:$0xf]
    %v3054 = vld [vmem:[%s3049 + $0x10] sm:$0xf]
    %v3055 = vld [vmem:[%s3049 + $0x14] sm:$0xf]
    %v3056 = vld [vmem:[%s3049 + $0x18] sm:$0xf]
    %v3057 = vld [vmem:[%s3049 + $0x1c] sm:$0xf]
    %v3058 = vld [vmem:[%s3049 + $0x20] sm:$0xf]
    %v3059 = vld [vmem:[%s3049 + $0x24] sm:$0xf]
    %v3060 = vld [vmem:[%s3049 + $0x28] sm:$0xf]
    %v3061 = vld [vmem:[%s3049 + $0x2c] sm:$0xf]
    %v3062 = vld [vmem:[%s3049 + $0x30] sm:$0xf]
    %v3063 = vld [vmem:[%s3049 + $0x34] sm:$0xf]
    %v3064 = vld [vmem:[%s3049 + $0x38] sm:$0xf]
    %v3065 = vld [vmem:[%s3049 + $0x3c] sm:$0xf]
    %v3066 = vld [vmem:[%s3049 + $0x40] sm:$0xf]
    %v3067 = vld [vmem:[%s3049 + $0x44] sm:$0xf]
    %v3068 = vld [vmem:[%s3049 + $0x48] sm:$0xf]
    %v3069 = vld [vmem:[%s3049 + $0x4c] sm:$0xf]
    %v3070 = vld [vmem:[%s3049 + $0x50] sm:$0xf]
    %v3071 = vld [vmem:[%s3049 + $0x54] sm:$0xf]
    %v3072 = vld [vmem:[%s3049 + $0x58] sm:$0xf]
    %v3073 = vld [vmem:[%s3049 + $0x5c] sm:$0xf]
    %v3074 = vld [vmem:[%s3049 + $0x60] sm:$0xf]
    %v3075 = vld [vmem:[%s3049 + $0x64] sm:$0xf]
    %v3076 = vld [vmem:[%s3049 + $0x68] sm:$0xf]
    %v3077 = vld [vmem:[%s3049 + $0x6c] sm:$0xf]
    %v3078 = vld [vmem:[%s3049 + $0x70] sm:$0xf]
    %v3079 = vld [vmem:[%s3049 + $0x74] sm:$0xf]
    %v3080 = vld [vmem:[%s3049 + $0x78] sm:$0xf]
    %v3081 = vld [vmem:[%s3049 + $0x7c] sm:$0xf]
    %v3082 = vrot.slane %v2033, 3
    %v3083 = vrot.slane %v2036, 3
    %v3118 = vunpack.c.l.b16 %v3050
    %v3119 = vunpack.c.l.b16 %v3051
    %v3120 = vunpack.c.l.b16 %v3052
    %v3121 = vunpack.c.l.b16 %v3053
    %v3122 = vunpack.c.l.b16 %v3054
    %v3123 = vunpack.c.l.b16 %v3055
    %v3124 = vunpack.c.l.b16 %v3056
    %v3125 = vunpack.c.l.b16 %v3057
    %v3126 = vunpack.c.l.b16 %v3058
    %v3127 = vunpack.c.l.b16 %v3059
    %v3128 = vunpack.c.l.b16 %v3060
    %v3129 = vunpack.c.l.b16 %v3061
    %v3130 = vunpack.c.l.b16 %v3062
    %v3131 = vunpack.c.l.b16 %v3063
    %v3132 = vunpack.c.l.b16 %v3064
    %v3133 = vunpack.c.l.b16 %v3065
    %v3134 = vunpack.c.l.b16 %v3066
    %v3135 = vunpack.c.l.b16 %v3067
    %v3136 = vunpack.c.l.b16 %v3068
    %v3137 = vunpack.c.l.b16 %v3069
    %v3138 = vunpack.c.l.b16 %v3070
    %v3139 = vunpack.c.l.b16 %v3071
    %v3140 = vunpack.c.l.b16 %v3072
    %v3141 = vunpack.c.l.b16 %v3073
    %v3142 = vunpack.c.l.b16 %v3074
    %v3143 = vunpack.c.l.b16 %v3075
    %v3144 = vunpack.c.l.b16 %v3076
    %v3145 = vunpack.c.l.b16 %v3077
    %v3146 = vunpack.c.l.b16 %v3078
    %v3147 = vunpack.c.l.b16 %v3079
    %v3148 = vunpack.c.l.b16 %v3080
    %v3149 = vunpack.c.l.b16 %v3081
    %v3150 = vpack.c.b16 %v3119, %v3118
    %v3151 = vpack.c.b16 %v3121, %v3120
    %v3152 = vpack.c.b16 %v3123, %v3122
    %v3153 = vpack.c.b16 %v3125, %v3124
    %v3154 = vpack.c.b16 %v3127, %v3126
    %v3155 = vpack.c.b16 %v3129, %v3128
    %v3156 = vpack.c.b16 %v3131, %v3130
    %v3157 = vpack.c.b16 %v3133, %v3132
    %v3158 = vpack.c.b16 %v3135, %v3134
    %v3159 = vpack.c.b16 %v3137, %v3136
    %v3160 = vpack.c.b16 %v3139, %v3138
    %v3161 = vpack.c.b16 %v3141, %v3140
    %v3162 = vpack.c.b16 %v3143, %v3142
    %v3163 = vpack.c.b16 %v3145, %v3144
    %v3164 = vpack.c.b16 %v3147, %v3146
    %v3165 = vpack.c.b16 %v3149, %v3148
    %3182 = vmatprep.subr.bf16.mxu0 0
    %3183 = vmatpush1.bf16.msra.mxu0 %v3150
    %3184 = vmatprep.subr.bf16.mxu0 0
    %3185 = vmatpush1.bf16.msra.mxu0 %v3151
    %3186 = vmatprep.subr.bf16.mxu0 0
    %3187 = vmatpush1.bf16.msra.mxu0 %v3152
    %3188 = vmatprep.subr.bf16.mxu0 0
    %3189 = vmatpush1.bf16.msra.mxu0 %v3153
    %3190 = vmatprep.subr.bf16.mxu0 0
    %3191 = vmatpush1.bf16.msra.mxu0 %v3154
    %3192 = vmatprep.subr.bf16.mxu0 0
    %3193 = vmatpush1.bf16.msra.mxu0 %v3155
    %3194 = vmatprep.subr.bf16.mxu0 0
    %3195 = vmatpush1.bf16.msra.mxu0 %v3156
    %3196 = vmatprep.subr.bf16.mxu0 0
    %3197 = vmatpush1.bf16.msra.mxu0 %v3157
    %3198 = vmatprep.subr.bf16.mxu0 0
    %3199 = vmatpush1.bf16.msra.mxu0 %v3158
    %3200 = vmatprep.subr.bf16.mxu0 0
    %3201 = vmatpush1.bf16.msra.mxu0 %v3159
    %3202 = vmatprep.subr.bf16.mxu0 0
    %3203 = vmatpush1.bf16.msra.mxu0 %v3160
    %3204 = vmatprep.subr.bf16.mxu0 0
    %3205 = vmatpush1.bf16.msra.mxu0 %v3161
    %3206 = vmatprep.subr.bf16.mxu0 0
    %3207 = vmatpush1.bf16.msra.mxu0 %v3162
    %3208 = vmatprep.subr.bf16.mxu0 0
    %3209 = vmatpush1.bf16.msra.mxu0 %v3163
    %3210 = vmatprep.subr.bf16.mxu0 0
    %3211 = vmatpush1.bf16.msra.mxu0 %v3164
    %3212 = vmatprep.subr.bf16.mxu0 0
    %3213 = vmatpush1.bf16.msra.mxu0 %v3165
    %3214 = vmatprep.mubr.bf16.mxu0 %v3083
    %3215 = vmatmul.mubr.bf16.gmra.mrb[0].mxu0 %v3082
    %v3216 = vpop.f32.mrb[0].mxu0
    %v3217 = vadd.f32 0.0, %v3216
    %v3218 = vpop.f32.mrb[0].mxu0
    %v3219 = vpop.f32.mrb[0].mxu0
    %v3220 = vpop.f32.mrb[0].mxu0
    %3221 = vdwg.mxu0
    %v3222 = vadd.f32 %v3048, %v3217
    %s3223 = scalar_lea.vmem %s5, 1024
    %v3224 = vld [vmem:[%s3223] sm:$0xf]
    %v3225 = vld [vmem:[%s3223 + $0x4] sm:$0xf]
    %v3226 = vld [vmem:[%s3223 + $0x8] sm:$0xf]
    %v3227 = vld [vmem:[%s3223 + $0xc] sm:$0xf]
    %v3228 = vld [vmem:[%s3223 + $0x10] sm:$0xf]
    %v3229 = vld [vmem:[%s3223 + $0x14] sm:$0xf]
    %v3230 = vld [vmem:[%s3223 + $0x18] sm:$0xf]
    %v3231 = vld [vmem:[%s3223 + $0x1c] sm:$0xf]
    %v3232 = vld [vmem:[%s3223 + $0x20] sm:$0xf]
    %v3233 = vld [vmem:[%s3223 + $0x24] sm:$0xf]
    %v3234 = vld [vmem:[%s3223 + $0x28] sm:$0xf]
    %v3235 = vld [vmem:[%s3223 + $0x2c] sm:$0xf]
    %v3236 = vld [vmem:[%s3223 + $0x30] sm:$0xf]
    %v3237 = vld [vmem:[%s3223 + $0x34] sm:$0xf]
    %v3238 = vld [vmem:[%s3223 + $0x38] sm:$0xf]
    %v3239 = vld [vmem:[%s3223 + $0x3c] sm:$0xf]
    %v3240 = vld [vmem:[%s3223 + $0x40] sm:$0xf]
    %v3241 = vld [vmem:[%s3223 + $0x44] sm:$0xf]
    %v3242 = vld [vmem:[%s3223 + $0x48] sm:$0xf]
    %v3243 = vld [vmem:[%s3223 + $0x4c] sm:$0xf]
    %v3244 = vld [vmem:[%s3223 + $0x50] sm:$0xf]
    %v3245 = vld [vmem:[%s3223 + $0x54] sm:$0xf]
    %v3246 = vld [vmem:[%s3223 + $0x58] sm:$0xf]
    %v3247 = vld [vmem:[%s3223 + $0x5c] sm:$0xf]
    %v3248 = vld [vmem:[%s3223 + $0x60] sm:$0xf]
    %v3249 = vld [vmem:[%s3223 + $0x64] sm:$0xf]
    %v3250 = vld [vmem:[%s3223 + $0x68] sm:$0xf]
    %v3251 = vld [vmem:[%s3223 + $0x6c] sm:$0xf]
    %v3252 = vld [vmem:[%s3223 + $0x70] sm:$0xf]
    %v3253 = vld [vmem:[%s3223 + $0x74] sm:$0xf]
    %v3254 = vld [vmem:[%s3223 + $0x78] sm:$0xf]
    %v3255 = vld [vmem:[%s3223 + $0x7c] sm:$0xf]
    %v3256 = vrot.slane %v1825, 4
    %v3257 = vrot.slane %v1826, 4
    %v3292 = vunpack.c.l.b16 %v3224
    %v3293 = vunpack.c.l.b16 %v3225
    %v3294 = vunpack.c.l.b16 %v3226
    %v3295 = vunpack.c.l.b16 %v3227
    %v3296 = vunpack.c.l.b16 %v3228
    %v3297 = vunpack.c.l.b16 %v3229
    %v3298 = vunpack.c.l.b16 %v3230
    %v3299 = vunpack.c.l.b16 %v3231
    %v3300 = vunpack.c.l.b16 %v3232
    %v3301 = vunpack.c.l.b16 %v3233
    %v3302 = vunpack.c.l.b16 %v3234
    %v3303 = vunpack.c.l.b16 %v3235
    %v3304 = vunpack.c.l.b16 %v3236
    %v3305 = vunpack.c.l.b16 %v3237
    %v3306 = vunpack.c.l.b16 %v3238
    %v3307 = vunpack.c.l.b16 %v3239
    %v3308 = vunpack.c.l.b16 %v3240
    %v3309 = vunpack.c.l.b16 %v3241
    %v3310 = vunpack.c.l.b16 %v3242
    %v3311 = vunpack.c.l.b16 %v3243
    %v3312 = vunpack.c.l.b16 %v3244
    %v3313 = vunpack.c.l.b16 %v3245
    %v3314 = vunpack.c.l.b16 %v3246
    %v3315 = vunpack.c.l.b16 %v3247
    %v3316 = vunpack.c.l.b16 %v3248
    %v3317 = vunpack.c.l.b16 %v3249
    %v3318 = vunpack.c.l.b16 %v3250
    %v3319 = vunpack.c.l.b16 %v3251
    %v3320 = vunpack.c.l.b16 %v3252
    %v3321 = vunpack.c.l.b16 %v3253
    %v3322 = vunpack.c.l.b16 %v3254
    %v3323 = vunpack.c.l.b16 %v3255
    %v3324 = vpack.c.b16 %v3293, %v3292
    %v3325 = vpack.c.b16 %v3295, %v3294
    %v3326 = vpack.c.b16 %v3297, %v3296
    %v3327 = vpack.c.b16 %v3299, %v3298
    %v3328 = vpack.c.b16 %v3301, %v3300
    %v3329 = vpack.c.b16 %v3303, %v3302
    %v3330 = vpack.c.b16 %v3305, %v3304
    %v3331 = vpack.c.b16 %v3307, %v3306
    %v3332 = vpack.c.b16 %v3309, %v3308
    %v3333 = vpack.c.b16 %v3311, %v3310
    %v3334 = vpack.c.b16 %v3313, %v3312
    %v3335 = vpack.c.b16 %v3315, %v3314
    %v3336 = vpack.c.b16 %v3317, %v3316
    %v3337 = vpack.c.b16 %v3319, %v3318
    %v3338 = vpack.c.b16 %v3321, %v3320
    %v3339 = vpack.c.b16 %v3323, %v3322
    %3356 = vmatprep.subr.bf16.mxu0 0
    %3357 = vmatpush1.bf16.msra.mxu0 %v3324
    %3358 = vmatprep.subr.bf16.mxu0 0
    %3359 = vmatpush1.bf16.msra.mxu0 %v3325
    %3360 = vmatprep.subr.bf16.mxu0 0
    %3361 = vmatpush1.bf16.msra.mxu0 %v3326
    %3362 = vmatprep.subr.bf16.mxu0 0
    %3363 = vmatpush1.bf16.msra.mxu0 %v3327
    %3364 = vmatprep.subr.bf16.mxu0 0
    %3365 = vmatpush1.bf16.msra.mxu0 %v3328
    %3366 = vmatprep.subr.bf16.mxu0 0
    %3367 = vmatpush1.bf16.msra.mxu0 %v3329
    %3368 = vmatprep.subr.bf16.mxu0 0
    %3369 = vmatpush1.bf16.msra.mxu0 %v3330
    %3370 = vmatprep.subr.bf16.mxu0 0
    %3371 = vmatpush1.bf16.msra.mxu0 %v3331
    %3372 = vmatprep.subr.bf16.mxu0 0
    %3373 = vmatpush1.bf16.msra.mxu0 %v3332
    %3374 = vmatprep.subr.bf16.mxu0 0
    %3375 = vmatpush1.bf16.msra.mxu0 %v3333
    %3376 = vmatprep.subr.bf16.mxu0 0
    %3377 = vmatpush1.bf16.msra.mxu0 %v3334
    %3378 = vmatprep.subr.bf16.mxu0 0
    %3379 = vmatpush1.bf16.msra.mxu0 %v3335
    %3380 = vmatprep.subr.bf16.mxu0 0
    %3381 = vmatpush1.bf16.msra.mxu0 %v3336
    %3382 = vmatprep.subr.bf16.mxu0 0
    %3383 = vmatpush1.bf16.msra.mxu0 %v3337
    %3384 = vmatprep.subr.bf16.mxu0 0
    %3385 = vmatpush1.bf16.msra.mxu0 %v3338
    %3386 = vmatprep.subr.bf16.mxu0 0
    %3387 = vmatpush1.bf16.msra.mxu0 %v3339
    %3388 = vmatprep.mubr.bf16.mxu0 %v3257
    %3389 = vmatmul.mubr.bf16.gmra.mrb[0].mxu0 %v3256
    %v3390 = vpop.f32.mrb[0].mxu0
    %v3391 = vadd.f32 0.0, %v3390
    %v3392 = vpop.f32.mrb[0].mxu0
    %v3393 = vpop.f32.mrb[0].mxu0
    %v3394 = vpop.f32.mrb[0].mxu0
    %3395 = vdwg.mxu0
    %v3396 = vadd.f32 %v3222, %v3391
    %s3397 = scalar_lea.vmem %s5, 1152
    %v3398 = vld [vmem:[%s3397] sm:$0xf]
    %v3399 = vld [vmem:[%s3397 + $0x4] sm:$0xf]
    %v3400 = vld [vmem:[%s3397 + $0x8] sm:$0xf]
    %v3401 = vld [vmem:[%s3397 + $0xc] sm:$0xf]
    %v3402 = vld [vmem:[%s3397 + $0x10] sm:$0xf]
    %v3403 = vld [vmem:[%s3397 + $0x14] sm:$0xf]
    %v3404 = vld [vmem:[%s3397 + $0x18] sm:$0xf]
    %v3405 = vld [vmem:[%s3397 + $0x1c] sm:$0xf]
    %v3406 = vld [vmem:[%s3397 + $0x20] sm:$0xf]
    %v3407 = vld [vmem:[%s3397 + $0x24] sm:$0xf]
    %v3408 = vld [vmem:[%s3397 + $0x28] sm:$0xf]
    %v3409 = vld [vmem:[%s3397 + $0x2c] sm:$0xf]
    %v3410 = vld [vmem:[%s3397 + $0x30] sm:$0xf]
    %v3411 = vld [vmem:[%s3397 + $0x34] sm:$0xf]
    %v3412 = vld [vmem:[%s3397 + $0x38] sm:$0xf]
    %v3413 = vld [vmem:[%s3397 + $0x3c] sm:$0xf]
    %v3414 = vld [vmem:[%s3397 + $0x40] sm:$0xf]
    %v3415 = vld [vmem:[%s3397 + $0x44] sm:$0xf]
    %v3416 = vld [vmem:[%s3397 + $0x48] sm:$0xf]
    %v3417 = vld [vmem:[%s3397 + $0x4c] sm:$0xf]
    %v3418 = vld [vmem:[%s3397 + $0x50] sm:$0xf]
    %v3419 = vld [vmem:[%s3397 + $0x54] sm:$0xf]
    %v3420 = vld [vmem:[%s3397 + $0x58] sm:$0xf]
    %v3421 = vld [vmem:[%s3397 + $0x5c] sm:$0xf]
    %v3422 = vld [vmem:[%s3397 + $0x60] sm:$0xf]
    %v3423 = vld [vmem:[%s3397 + $0x64] sm:$0xf]
    %v3424 = vld [vmem:[%s3397 + $0x68] sm:$0xf]
    %v3425 = vld [vmem:[%s3397 + $0x6c] sm:$0xf]
    %v3426 = vld [vmem:[%s3397 + $0x70] sm:$0xf]
    %v3427 = vld [vmem:[%s3397 + $0x74] sm:$0xf]
    %v3428 = vld [vmem:[%s3397 + $0x78] sm:$0xf]
    %v3429 = vld [vmem:[%s3397 + $0x7c] sm:$0xf]
    %v3430 = vrot.slane %v2033, 4
    %v3431 = vrot.slane %v2036, 4
    %v3466 = vunpack.c.l.b16 %v3398
    %v3467 = vunpack.c.l.b16 %v3399
    %v3468 = vunpack.c.l.b16 %v3400
    %v3469 = vunpack.c.l.b16 %v3401
    %v3470 = vunpack.c.l.b16 %v3402
    %v3471 = vunpack.c.l.b16 %v3403
    %v3472 = vunpack.c.l.b16 %v3404
    %v3473 = vunpack.c.l.b16 %v3405
    %v3474 = vunpack.c.l.b16 %v3406
    %v3475 = vunpack.c.l.b16 %v3407
    %v3476 = vunpack.c.l.b16 %v3408
    %v3477 = vunpack.c.l.b16 %v3409
    %v3478 = vunpack.c.l.b16 %v3410
    %v3479 = vunpack.c.l.b16 %v3411
    %v3480 = vunpack.c.l.b16 %v3412
    %v3481 = vunpack.c.l.b16 %v3413
    %v3482 = vunpack.c.l.b16 %v3414
    %v3483 = vunpack.c.l.b16 %v3415
    %v3484 = vunpack.c.l.b16 %v3416
    %v3485 = vunpack.c.l.b16 %v3417
    %v3486 = vunpack.c.l.b16 %v3418
    %v3487 = vunpack.c.l.b16 %v3419
    %v3488 = vunpack.c.l.b16 %v3420
    %v3489 = vunpack.c.l.b16 %v3421
    %v3490 = vunpack.c.l.b16 %v3422
    %v3491 = vunpack.c.l.b16 %v3423
    %v3492 = vunpack.c.l.b16 %v3424
    %v3493 = vunpack.c.l.b16 %v3425
    %v3494 = vunpack.c.l.b16 %v3426
    %v3495 = vunpack.c.l.b16 %v3427
    %v3496 = vunpack.c.l.b16 %v3428
    %v3497 = vunpack.c.l.b16 %v3429
    %v3498 = vpack.c.b16 %v3467, %v3466
    %v3499 = vpack.c.b16 %v3469, %v3468
    %v3500 = vpack.c.b16 %v3471, %v3470
    %v3501 = vpack.c.b16 %v3473, %v3472
    %v3502 = vpack.c.b16 %v3475, %v3474
    %v3503 = vpack.c.b16 %v3477, %v3476
    %v3504 = vpack.c.b16 %v3479, %v3478
    %v3505 = vpack.c.b16 %v3481, %v3480
    %v3506 = vpack.c.b16 %v3483, %v3482
    %v3507 = vpack.c.b16 %v3485, %v3484
    %v3508 = vpack.c.b16 %v3487, %v3486
    %v3509 = vpack.c.b16 %v3489, %v3488
    %v3510 = vpack.c.b16 %v3491, %v3490
    %v3511 = vpack.c.b16 %v3493, %v3492
    %v3512 = vpack.c.b16 %v3495, %v3494
    %v3513 = vpack.c.b16 %v3497, %v3496
    %3530 = vmatprep.subr.bf16.mxu0 0
    %3531 = vmatpush1.bf16.msra.mxu0 %v3498
    %3532 = vmatprep.subr.bf16.mxu0 0
    %3533 = vmatpush1.bf16.msra.mxu0 %v3499
    %3534 = vmatprep.subr.bf16.mxu0 0
    %3535 = vmatpush1.bf16.msra.mxu0 %v3500
    %3536 = vmatprep.subr.bf16.mxu0 0
    %3537 = vmatpush1.bf16.msra.mxu0 %v3501
    %3538 = vmatprep.subr.bf16.mxu0 0
    %3539 = vmatpush1.bf16.msra.mxu0 %v3502
    %3540 = vmatprep.subr.bf16.mxu0 0
    %3541 = vmatpush1.bf16.msra.mxu0 %v3503
    %3542 = vmatprep.subr.bf16.mxu0 0
    %3543 = vmatpush1.bf16.msra.mxu0 %v3504
    %3544 = vmatprep.subr.bf16.mxu0 0
    %3545 = vmatpush1.bf16.msra.mxu0 %v3505
    %3546 = vmatprep.subr.bf16.mxu0 0
    %3547 = vmatpush1.bf16.msra.mxu0 %v3506
    %3548 = vmatprep.subr.bf16.mxu0 0
    %3549 = vmatpush1.bf16.msra.mxu0 %v3507
    %3550 = vmatprep.subr.bf16.mxu0 0
    %3551 = vmatpush1.bf16.msra.mxu0 %v3508
    %3552 = vmatprep.subr.bf16.mxu0 0
    %3553 = vmatpush1.bf16.msra.mxu0 %v3509
    %3554 = vmatprep.subr.bf16.mxu0 0
    %3555 = vmatpush1.bf16.msra.mxu0 %v3510
    %3556 = vmatprep.subr.bf16.mxu0 0
    %3557 = vmatpush1.bf16.msra.mxu0 %v3511
    %3558 = vmatprep.subr.bf16.mxu0 0
    %3559 = vmatpush1.bf16.msra.mxu0 %v3512
    %3560 = vmatprep.subr.bf16.mxu0 0
    %3561 = vmatpush1.bf16.msra.mxu0 %v3513
    %3562 = vmatprep.mubr.bf16.mxu0 %v3431
    %3563 = vmatmul.mubr.bf16.gmra.mrb[0].mxu0 %v3430
    %v3564 = vpop.f32.mrb[0].mxu0
    %v3565 = vadd.f32 0.0, %v3564
    %v3566 = vpop.f32.mrb[0].mxu0
    %v3567 = vpop.f32.mrb[0].mxu0
    %v3568 = vpop.f32.mrb[0].mxu0
    %3569 = vdwg.mxu0
    %v3570 = vadd.f32 %v3396, %v3565
    %s3571 = scalar_lea.vmem %s5, 1280
    %v3572 = vld [vmem:[%s3571] sm:$0xf]
    %v3573 = vld [vmem:[%s3571 + $0x4] sm:$0xf]
    %v3574 = vld [vmem:[%s3571 + $0x8] sm:$0xf]
    %v3575 = vld [vmem:[%s3571 + $0xc] sm:$0xf]
    %v3576 = vld [vmem:[%s3571 + $0x10] sm:$0xf]
    %v3577 = vld [vmem:[%s3571 + $0x14] sm:$0xf]
    %v3578 = vld [vmem:[%s3571 + $0x18] sm:$0xf]
    %v3579 = vld [vmem:[%s3571 + $0x1c] sm:$0xf]
    %v3580 = vld [vmem:[%s3571 + $0x20] sm:$0xf]
    %v3581 = vld [vmem:[%s3571 + $0x24] sm:$0xf]
    %v3582 = vld [vmem:[%s3571 + $0x28] sm:$0xf]
    %v3583 = vld [vmem:[%s3571 + $0x2c] sm:$0xf]
    %v3584 = vld [vmem:[%s3571 + $0x30] sm:$0xf]
    %v3585 = vld [vmem:[%s3571 + $0x34] sm:$0xf]
    %v3586 = vld [vmem:[%s3571 + $0x38] sm:$0xf]
    %v3587 = vld [vmem:[%s3571 + $0x3c] sm:$0xf]
    %v3588 = vld [vmem:[%s3571 + $0x40] sm:$0xf]
    %v3589 = vld [vmem:[%s3571 + $0x44] sm:$0xf]
    %v3590 = vld [vmem:[%s3571 + $0x48] sm:$0xf]
    %v3591 = vld [vmem:[%s3571 + $0x4c] sm:$0xf]
    %v3592 = vld [vmem:[%s3571 + $0x50] sm:$0xf]
    %v3593 = vld [vmem:[%s3571 + $0x54] sm:$0xf]
    %v3594 = vld [vmem:[%s3571 + $0x58] sm:$0xf]
    %v3595 = vld [vmem:[%s3571 + $0x5c] sm:$0xf]
    %v3596 = vld [vmem:[%s3571 + $0x60] sm:$0xf]
    %v3597 = vld [vmem:[%s3571 + $0x64] sm:$0xf]
    %v3598 = vld [vmem:[%s3571 + $0x68] sm:$0xf]
    %v3599 = vld [vmem:[%s3571 + $0x6c] sm:$0xf]
    %v3600 = vld [vmem:[%s3571 + $0x70] sm:$0xf]
    %v3601 = vld [vmem:[%s3571 + $0x74] sm:$0xf]
    %v3602 = vld [vmem:[%s3571 + $0x78] sm:$0xf]
    %v3603 = vld [vmem:[%s3571 + $0x7c] sm:$0xf]
    %v3604 = vrot.slane %v1825, 5
    %v3605 = vrot.slane %v1826, 5
    %v3640 = vunpack.c.l.b16 %v3572
    %v3641 = vunpack.c.l.b16 %v3573
    %v3642 = vunpack.c.l.b16 %v3574
    %v3643 = vunpack.c.l.b16 %v3575
    %v3644 = vunpack.c.l.b16 %v3576
    %v3645 = vunpack.c.l.b16 %v3577
    %v3646 = vunpack.c.l.b16 %v3578
    %v3647 = vunpack.c.l.b16 %v3579
    %v3648 = vunpack.c.l.b16 %v3580
    %v3649 = vunpack.c.l.b16 %v3581
    %v3650 = vunpack.c.l.b16 %v3582
    %v3651 = vunpack.c.l.b16 %v3583
    %v3652 = vunpack.c.l.b16 %v3584
    %v3653 = vunpack.c.l.b16 %v3585
    %v3654 = vunpack.c.l.b16 %v3586
    %v3655 = vunpack.c.l.b16 %v3587
    %v3656 = vunpack.c.l.b16 %v3588
    %v3657 = vunpack.c.l.b16 %v3589
    %v3658 = vunpack.c.l.b16 %v3590
    %v3659 = vunpack.c.l.b16 %v3591
    %v3660 = vunpack.c.l.b16 %v3592
    %v3661 = vunpack.c.l.b16 %v3593
    %v3662 = vunpack.c.l.b16 %v3594
    %v3663 = vunpack.c.l.b16 %v3595
    %v3664 = vunpack.c.l.b16 %v3596
    %v3665 = vunpack.c.l.b16 %v3597
    %v3666 = vunpack.c.l.b16 %v3598
    %v3667 = vunpack.c.l.b16 %v3599
    %v3668 = vunpack.c.l.b16 %v3600
    %v3669 = vunpack.c.l.b16 %v3601
    %v3670 = vunpack.c.l.b16 %v3602
    %v3671 = vunpack.c.l.b16 %v3603
    %v3672 = vpack.c.b16 %v3641, %v3640
    %v3673 = vpack.c.b16 %v3643, %v3642
    %v3674 = vpack.c.b16 %v3645, %v3644
    %v3675 = vpack.c.b16 %v3647, %v3646
    %v3676 = vpack.c.b16 %v3649, %v3648
    %v3677 = vpack.c.b16 %v3651, %v3650
    %v3678 = vpack.c.b16 %v3653, %v3652
    %v3679 = vpack.c.b16 %v3655, %v3654
    %v3680 = vpack.c.b16 %v3657, %v3656
    %v3681 = vpack.c.b16 %v3659, %v3658
    %v3682 = vpack.c.b16 %v3661, %v3660
    %v3683 = vpack.c.b16 %v3663, %v3662
    %v3684 = vpack.c.b16 %v3665, %v3664
    %v3685 = vpack.c.b16 %v3667, %v3666
    %v3686 = vpack.c.b16 %v3669, %v3668
    %v3687 = vpack.c.b16 %v3671, %v3670
    %3704 = vmatprep.subr.bf16.mxu0 0
    %3705 = vmatpush1.bf16.msra.mxu0 %v3672
    %3706 = vmatprep.subr.bf16.mxu0 0
    %3707 = vmatpush1.bf16.msra.mxu0 %v3673
    %3708 = vmatprep.subr.bf16.mxu0 0
    %3709 = vmatpush1.bf16.msra.mxu0 %v3674
    %3710 = vmatprep.subr.bf16.mxu0 0
    %3711 = vmatpush1.bf16.msra.mxu0 %v3675
    %3712 = vmatprep.subr.bf16.mxu0 0
    %3713 = vmatpush1.bf16.msra.mxu0 %v3676
    %3714 = vmatprep.subr.bf16.mxu0 0
    %3715 = vmatpush1.bf16.msra.mxu0 %v3677
    %3716 = vmatprep.subr.bf16.mxu0 0
    %3717 = vmatpush1.bf16.msra.mxu0 %v3678
    %3718 = vmatprep.subr.bf16.mxu0 0
    %3719 = vmatpush1.bf16.msra.mxu0 %v3679
    %3720 = vmatprep.subr.bf16.mxu0 0
    %3721 = vmatpush1.bf16.msra.mxu0 %v3680
    %3722 = vmatprep.subr.bf16.mxu0 0
    %3723 = vmatpush1.bf16.msra.mxu0 %v3681
    %3724 = vmatprep.subr.bf16.mxu0 0
    %3725 = vmatpush1.bf16.msra.mxu0 %v3682
    %3726 = vmatprep.subr.bf16.mxu0 0
    %3727 = vmatpush1.bf16.msra.mxu0 %v3683
    %3728 = vmatprep.subr.bf16.mxu0 0
    %3729 = vmatpush1.bf16.msra.mxu0 %v3684
    %3730 = vmatprep.subr.bf16.mxu0 0
    %3731 = vmatpush1.bf16.msra.mxu0 %v3685
    %3732 = vmatprep.subr.bf16.mxu0 0
    %3733 = vmatpush1.bf16.msra.mxu0 %v3686
    %3734 = vmatprep.subr.bf16.mxu0 0
    %3735 = vmatpush1.bf16.msra.mxu0 %v3687
    %3736 = vmatprep.mubr.bf16.mxu0 %v3605
    %3737 = vmatmul.mubr.bf16.gmra.mrb[0].mxu0 %v3604
    %v3738 = vpop.f32.mrb[0].mxu0
    %v3739 = vadd.f32 0.0, %v3738
    %v3740 = vpop.f32.mrb[0].mxu0
    %v3741 = vpop.f32.mrb[0].mxu0
    %v3742 = vpop.f32.mrb[0].mxu0
    %3743 = vdwg.mxu0
    %v3744 = vadd.f32 %v3570, %v3739
    %s3745 = scalar_lea.vmem %s5, 1408
    %v3746 = vld [vmem:[%s3745] sm:$0xf]
    %v3747 = vld [vmem:[%s3745 + $0x4] sm:$0xf]
    %v3748 = vld [vmem:[%s3745 + $0x8] sm:$0xf]
    %v3749 = vld [vmem:[%s3745 + $0xc] sm:$0xf]
    %v3750 = vld [vmem:[%s3745 + $0x10] sm:$0xf]
    %v3751 = vld [vmem:[%s3745 + $0x14] sm:$0xf]
    %v3752 = vld [vmem:[%s3745 + $0x18] sm:$0xf]
    %v3753 = vld [vmem:[%s3745 + $0x1c] sm:$0xf]
    %v3754 = vld [vmem:[%s3745 + $0x20] sm:$0xf]
    %v3755 = vld [vmem:[%s3745 + $0x24] sm:$0xf]
    %v3756 = vld [vmem:[%s3745 + $0x28] sm:$0xf]
    %v3757 = vld [vmem:[%s3745 + $0x2c] sm:$0xf]
    %v3758 = vld [vmem:[%s3745 + $0x30] sm:$0xf]
    %v3759 = vld [vmem:[%s3745 + $0x34] sm:$0xf]
    %v3760 = vld [vmem:[%s3745 + $0x38] sm:$0xf]
    %v3761 = vld [vmem:[%s3745 + $0x3c] sm:$0xf]
    %v3762 = vld [vmem:[%s3745 + $0x40] sm:$0xf]
    %v3763 = vld [vmem:[%s3745 + $0x44] sm:$0xf]
    %v3764 = vld [vmem:[%s3745 + $0x48] sm:$0xf]
    %v3765 = vld [vmem:[%s3745 + $0x4c] sm:$0xf]
    %v3766 = vld [vmem:[%s3745 + $0x50] sm:$0xf]
    %v3767 = vld [vmem:[%s3745 + $0x54] sm:$0xf]
    %v3768 = vld [vmem:[%s3745 + $0x58] sm:$0xf]
    %v3769 = vld [vmem:[%s3745 + $0x5c] sm:$0xf]
    %v3770 = vld [vmem:[%s3745 + $0x60] sm:$0xf]
    %v3771 = vld [vmem:[%s3745 + $0x64] sm:$0xf]
    %v3772 = vld [vmem:[%s3745 + $0x68] sm:$0xf]
    %v3773 = vld [vmem:[%s3745 + $0x6c] sm:$0xf]
    %v3774 = vld [vmem:[%s3745 + $0x70] sm:$0xf]
    %v3775 = vld [vmem:[%s3745 + $0x74] sm:$0xf]
    %v3776 = vld [vmem:[%s3745 + $0x78] sm:$0xf]
    %v3777 = vld [vmem:[%s3745 + $0x7c] sm:$0xf]
    %v3778 = vrot.slane %v2033, 5
    %v3779 = vrot.slane %v2036, 5
    %v3814 = vunpack.c.l.b16 %v3746
    %v3815 = vunpack.c.l.b16 %v3747
    %v3816 = vunpack.c.l.b16 %v3748
    %v3817 = vunpack.c.l.b16 %v3749
    %v3818 = vunpack.c.l.b16 %v3750
    %v3819 = vunpack.c.l.b16 %v3751
    %v3820 = vunpack.c.l.b16 %v3752
    %v3821 = vunpack.c.l.b16 %v3753
    %v3822 = vunpack.c.l.b16 %v3754
    %v3823 = vunpack.c.l.b16 %v3755
    %v3824 = vunpack.c.l.b16 %v3756
    %v3825 = vunpack.c.l.b16 %v3757
    %v3826 = vunpack.c.l.b16 %v3758
    %v3827 = vunpack.c.l.b16 %v3759
    %v3828 = vunpack.c.l.b16 %v3760
    %v3829 = vunpack.c.l.b16 %v3761
    %v3830 = vunpack.c.l.b16 %v3762
    %v3831 = vunpack.c.l.b16 %v3763
    %v3832 = vunpack.c.l.b16 %v3764
    %v3833 = vunpack.c.l.b16 %v3765
    %v3834 = vunpack.c.l.b16 %v3766
    %v3835 = vunpack.c.l.b16 %v3767
    %v3836 = vunpack.c.l.b16 %v3768
    %v3837 = vunpack.c.l.b16 %v3769
    %v3838 = vunpack.c.l.b16 %v3770
    %v3839 = vunpack.c.l.b16 %v3771
    %v3840 = vunpack.c.l.b16 %v3772
    %v3841 = vunpack.c.l.b16 %v3773
    %v3842 = vunpack.c.l.b16 %v3774
    %v3843 = vunpack.c.l.b16 %v3775
    %v3844 = vunpack.c.l.b16 %v3776
    %v3845 = vunpack.c.l.b16 %v3777
    %v3846 = vpack.c.b16 %v3815, %v3814
    %v3847 = vpack.c.b16 %v3817, %v3816
    %v3848 = vpack.c.b16 %v3819, %v3818
    %v3849 = vpack.c.b16 %v3821, %v3820
    %v3850 = vpack.c.b16 %v3823, %v3822
    %v3851 = vpack.c.b16 %v3825, %v3824
    %v3852 = vpack.c.b16 %v3827, %v3826
    %v3853 = vpack.c.b16 %v3829, %v3828
    %v3854 = vpack.c.b16 %v3831, %v3830
    %v3855 = vpack.c.b16 %v3833, %v3832
    %v3856 = vpack.c.b16 %v3835, %v3834
    %v3857 = vpack.c.b16 %v3837, %v3836
    %v3858 = vpack.c.b16 %v3839, %v3838
    %v3859 = vpack.c.b16 %v3841, %v3840
    %v3860 = vpack.c.b16 %v3843, %v3842
    %v3861 = vpack.c.b16 %v3845, %v3844
    %3878 = vmatprep.subr.bf16.mxu0 0
    %3879 = vmatpush1.bf16.msra.mxu0 %v3846
    %3880 = vmatprep.subr.bf16.mxu0 0
    %3881 = vmatpush1.bf16.msra.mxu0 %v3847
    %3882 = vmatprep.subr.bf16.mxu0 0
    %3883 = vmatpush1.bf16.msra.mxu0 %v3848
    %3884 = vmatprep.subr.bf16.mxu0 0
    %3885 = vmatpush1.bf16.msra.mxu0 %v3849
    %3886 = vmatprep.subr.bf16.mxu0 0
    %3887 = vmatpush1.bf16.msra.mxu0 %v3850
    %3888 = vmatprep.subr.bf16.mxu0 0
    %3889 = vmatpush1.bf16.msra.mxu0 %v3851
    %3890 = vmatprep.subr.bf16.mxu0 0
    %3891 = vmatpush1.bf16.msra.mxu0 %v3852
    %3892 = vmatprep.subr.bf16.mxu0 0
    %3893 = vmatpush1.bf16.msra.mxu0 %v3853
    %3894 = vmatprep.subr.bf16.mxu0 0
    %3895 = vmatpush1.bf16.msra.mxu0 %v3854
    %3896 = vmatprep.subr.bf16.mxu0 0
    %3897 = vmatpush1.bf16.msra.mxu0 %v3855
    %3898 = vmatprep.subr.bf16.mxu0 0
    %3899 = vmatpush1.bf16.msra.mxu0 %v3856
    %3900 = vmatprep.subr.bf16.mxu0 0
    %3901 = vmatpush1.bf16.msra.mxu0 %v3857
    %3902 = vmatprep.subr.bf16.mxu0 0
    %3903 = vmatpush1.bf16.msra.mxu0 %v3858
    %3904 = vmatprep.subr.bf16.mxu0 0
    %3905 = vmatpush1.bf16.msra.mxu0 %v3859
    %3906 = vmatprep.subr.bf16.mxu0 0
    %3907 = vmatpush1.bf16.msra.mxu0 %v3860
    %3908 = vmatprep.subr.bf16.mxu0 0
    %3909 = vmatpush1.bf16.msra.mxu0 %v3861
    %3910 = vmatprep.mubr.bf16.mxu0 %v3779
    %3911 = vmatmul.mubr.bf16.gmra.mrb[0].mxu0 %v3778
    %v3912 = vpop.f32.mrb[0].mxu0
    %v3913 = vadd.f32 0.0, %v3912
    %v3914 = vpop.f32.mrb[0].mxu0
    %v3915 = vpop.f32.mrb[0].mxu0
    %v3916 = vpop.f32.mrb[0].mxu0
    %3917 = vdwg.mxu0
    %v3918 = vadd.f32 %v3744, %v3913
    %s3919 = scalar_lea.vmem %s5, 1536
    %v3920 = vld [vmem:[%s3919] sm:$0xf]
    %v3921 = vld [vmem:[%s3919 + $0x4] sm:$0xf]
    %v3922 = vld [vmem:[%s3919 + $0x8] sm:$0xf]
    %v3923 = vld [vmem:[%s3919 + $0xc] sm:$0xf]
    %v3924 = vld [vmem:[%s3919 + $0x10] sm:$0xf]
    %v3925 = vld [vmem:[%s3919 + $0x14] sm:$0xf]
    %v3926 = vld [vmem:[%s3919 + $0x18] sm:$0xf]
    %v3927 = vld [vmem:[%s3919 + $0x1c] sm:$0xf]
    %v3928 = vld [vmem:[%s3919 + $0x20] sm:$0xf]
    %v3929 = vld [vmem:[%s3919 + $0x24] sm:$0xf]
    %v3930 = vld [vmem:[%s3919 + $0x28] sm:$0xf]
    %v3931 = vld [vmem:[%s3919 + $0x2c] sm:$0xf]
    %v3932 = vld [vmem:[%s3919 + $0x30] sm:$0xf]
    %v3933 = vld [vmem:[%s3919 + $0x34] sm:$0xf]
    %v3934 = vld [vmem:[%s3919 + $0x38] sm:$0xf]
    %v3935 = vld [vmem:[%s3919 + $0x3c] sm:$0xf]
    %v3936 = vld [vmem:[%s3919 + $0x40] sm:$0xf]
    %v3937 = vld [vmem:[%s3919 + $0x44] sm:$0xf]
    %v3938 = vld [vmem:[%s3919 + $0x48] sm:$0xf]
    %v3939 = vld [vmem:[%s3919 + $0x4c] sm:$0xf]
    %v3940 = vld [vmem:[%s3919 + $0x50] sm:$0xf]
    %v3941 = vld [vmem:[%s3919 + $0x54] sm:$0xf]
    %v3942 = vld [vmem:[%s3919 + $0x58] sm:$0xf]
    %v3943 = vld [vmem:[%s3919 + $0x5c] sm:$0xf]
    %v3944 = vld [vmem:[%s3919 + $0x60] sm:$0xf]
    %v3945 = vld [vmem:[%s3919 + $0x64] sm:$0xf]
    %v3946 = vld [vmem:[%s3919 + $0x68] sm:$0xf]
    %v3947 = vld [vmem:[%s3919 + $0x6c] sm:$0xf]
    %v3948 = vld [vmem:[%s3919 + $0x70] sm:$0xf]
    %v3949 = vld [vmem:[%s3919 + $0x74] sm:$0xf]
    %v3950 = vld [vmem:[%s3919 + $0x78] sm:$0xf]
    %v3951 = vld [vmem:[%s3919 + $0x7c] sm:$0xf]
    %v3952 = vrot.slane %v1825, 6
    %v3953 = vrot.slane %v1826, 6
    %v3988 = vunpack.c.l.b16 %v3920
    %v3989 = vunpack.c.l.b16 %v3921
    %v3990 = vunpack.c.l.b16 %v3922
    %v3991 = vunpack.c.l.b16 %v3923
    %v3992 = vunpack.c.l.b16 %v3924
    %v3993 = vunpack.c.l.b16 %v3925
    %v3994 = vunpack.c.l.b16 %v3926
    %v3995 = vunpack.c.l.b16 %v3927
    %v3996 = vunpack.c.l.b16 %v3928
    %v3997 = vunpack.c.l.b16 %v3929
    %v3998 = vunpack.c.l.b16 %v3930
    %v3999 = vunpack.c.l.b16 %v3931
    %v4000 = vunpack.c.l.b16 %v3932
    %v4001 = vunpack.c.l.b16 %v3933
    %v4002 = vunpack.c.l.b16 %v3934
    %v4003 = vunpack.c.l.b16 %v3935
    %v4004 = vunpack.c.l.b16 %v3936
    %v4005 = vunpack.c.l.b16 %v3937
    %v4006 = vunpack.c.l.b16 %v3938
    %v4007 = vunpack.c.l.b16 %v3939
    %v4008 = vunpack.c.l.b16 %v3940
    %v4009 = vunpack.c.l.b16 %v3941
    %v4010 = vunpack.c.l.b16 %v3942
    %v4011 = vunpack.c.l.b16 %v3943
    %v4012 = vunpack.c.l.b16 %v3944
    %v4013 = vunpack.c.l.b16 %v3945
    %v4014 = vunpack.c.l.b16 %v3946
    %v4015 = vunpack.c.l.b16 %v3947
    %v4016 = vunpack.c.l.b16 %v3948
    %v4017 = vunpack.c.l.b16 %v3949
    %v4018 = vunpack.c.l.b16 %v3950
    %v4019 = vunpack.c.l.b16 %v3951
    %v4020 = vpack.c.b16 %v3989, %v3988
    %v4021 = vpack.c.b16 %v3991, %v3990
    %v4022 = vpack.c.b16 %v3993, %v3992
    %v4023 = vpack.c.b16 %v3995, %v3994
    %v4024 = vpack.c.b16 %v3997, %v3996
    %v4025 = vpack.c.b16 %v3999, %v3998
    %v4026 = vpack.c.b16 %v4001, %v4000
    %v4027 = vpack.c.b16 %v4003, %v4002
    %v4028 = vpack.c.b16 %v4005, %v4004
    %v4029 = vpack.c.b16 %v4007, %v4006
    %v4030 = vpack.c.b16 %v4009, %v4008
    %v4031 = vpack.c.b16 %v4011, %v4010
    %v4032 = vpack.c.b16 %v4013, %v4012
    %v4033 = vpack.c.b16 %v4015, %v4014
    %v4034 = vpack.c.b16 %v4017, %v4016
    %v4035 = vpack.c.b16 %v4019, %v4018
    %4052 = vmatprep.subr.bf16.mxu0 0
    %4053 = vmatpush1.bf16.msra.mxu0 %v4020
    %4054 = vmatprep.subr.bf16.mxu0 0
    %4055 = vmatpush1.bf16.msra.mxu0 %v4021
    %4056 = vmatprep.subr.bf16.mxu0 0
    %4057 = vmatpush1.bf16.msra.mxu0 %v4022
    %4058 = vmatprep.subr.bf16.mxu0 0
    %4059 = vmatpush1.bf16.msra.mxu0 %v4023
    %4060 = vmatprep.subr.bf16.mxu0 0
    %4061 = vmatpush1.bf16.msra.mxu0 %v4024
    %4062 = vmatprep.subr.bf16.mxu0 0
    %4063 = vmatpush1.bf16.msra.mxu0 %v4025
    %4064 = vmatprep.subr.bf16.mxu0 0
    %4065 = vmatpush1.bf16.msra.mxu0 %v4026
    %4066 = vmatprep.subr.bf16.mxu0 0
    %4067 = vmatpush1.bf16.msra.mxu0 %v4027
    %4068 = vmatprep.subr.bf16.mxu0 0
    %4069 = vmatpush1.bf16.msra.mxu0 %v4028
    %4070 = vmatprep.subr.bf16.mxu0 0
    %4071 = vmatpush1.bf16.msra.mxu0 %v4029
    %4072 = vmatprep.subr.bf16.mxu0 0
    %4073 = vmatpush1.bf16.msra.mxu0 %v4030
    %4074 = vmatprep.subr.bf16.mxu0 0
    %4075 = vmatpush1.bf16.msra.mxu0 %v4031
    %4076 = vmatprep.subr.bf16.mxu0 0
    %4077 = vmatpush1.bf16.msra.mxu0 %v4032
    %4078 = vmatprep.subr.bf16.mxu0 0
    %4079 = vmatpush1.bf16.msra.mxu0 %v4033
    %4080 = vmatprep.subr.bf16.mxu0 0
    %4081 = vmatpush1.bf16.msra.mxu0 %v4034
    %4082 = vmatprep.subr.bf16.mxu0 0
    %4083 = vmatpush1.bf16.msra.mxu0 %v4035
    %4084 = vmatprep.mubr.bf16.mxu0 %v3953
    %4085 = vmatmul.mubr.bf16.gmra.mrb[0].mxu0 %v3952
    %v4086 = vpop.f32.mrb[0].mxu0
    %v4087 = vadd.f32 0.0, %v4086
    %v4088 = vpop.f32.mrb[0].mxu0
    %v4089 = vpop.f32.mrb[0].mxu0
    %v4090 = vpop.f32.mrb[0].mxu0
    %4091 = vdwg.mxu0
    %v4092 = vadd.f32 %v3918, %v4087
    %s4093 = scalar_lea.vmem %s5, 1664
    %v4094 = vld [vmem:[%s4093] sm:$0xf]
    %v4095 = vld [vmem:[%s4093 + $0x4] sm:$0xf]
    %v4096 = vld [vmem:[%s4093 + $0x8] sm:$0xf]
    %v4097 = vld [vmem:[%s4093 + $0xc] sm:$0xf]
    %v4098 = vld [vmem:[%s4093 + $0x10] sm:$0xf]
    %v4099 = vld [vmem:[%s4093 + $0x14] sm:$0xf]
    %v4100 = vld [vmem:[%s4093 + $0x18] sm:$0xf]
    %v4101 = vld [vmem:[%s4093 + $0x1c] sm:$0xf]
    %v4102 = vld [vmem:[%s4093 + $0x20] sm:$0xf]
    %v4103 = vld [vmem:[%s4093 + $0x24] sm:$0xf]
    %v4104 = vld [vmem:[%s4093 + $0x28] sm:$0xf]
    %v4105 = vld [vmem:[%s4093 + $0x2c] sm:$0xf]
    %v4106 = vld [vmem:[%s4093 + $0x30] sm:$0xf]
    %v4107 = vld [vmem:[%s4093 + $0x34] sm:$0xf]
    %v4108 = vld [vmem:[%s4093 + $0x38] sm:$0xf]
    %v4109 = vld [vmem:[%s4093 + $0x3c] sm:$0xf]
    %v4110 = vld [vmem:[%s4093 + $0x40] sm:$0xf]
    %v4111 = vld [vmem:[%s4093 + $0x44] sm:$0xf]
    %v4112 = vld [vmem:[%s4093 + $0x48] sm:$0xf]
    %v4113 = vld [vmem:[%s4093 + $0x4c] sm:$0xf]
    %v4114 = vld [vmem:[%s4093 + $0x50] sm:$0xf]
    %v4115 = vld [vmem:[%s4093 + $0x54] sm:$0xf]
    %v4116 = vld [vmem:[%s4093 + $0x58] sm:$0xf]
    %v4117 = vld [vmem:[%s4093 + $0x5c] sm:$0xf]
    %v4118 = vld [vmem:[%s4093 + $0x60] sm:$0xf]
    %v4119 = vld [vmem:[%s4093 + $0x64] sm:$0xf]
    %v4120 = vld [vmem:[%s4093 + $0x68] sm:$0xf]
    %v4121 = vld [vmem:[%s4093 + $0x6c] sm:$0xf]
    %v4122 = vld [vmem:[%s4093 + $0x70] sm:$0xf]
    %v4123 = vld [vmem:[%s4093 + $0x74] sm:$0xf]
    %v4124 = vld [vmem:[%s4093 + $0x78] sm:$0xf]
    %v4125 = vld [vmem:[%s4093 + $0x7c] sm:$0xf]
    %v4126 = vrot.slane %v2033, 6
    %v4127 = vrot.slane %v2036, 6
    %v4162 = vunpack.c.l.b16 %v4094
    %v4163 = vunpack.c.l.b16 %v4095
    %v4164 = vunpack.c.l.b16 %v4096
    %v4165 = vunpack.c.l.b16 %v4097
    %v4166 = vunpack.c.l.b16 %v4098
    %v4167 = vunpack.c.l.b16 %v4099
    %v4168 = vunpack.c.l.b16 %v4100
    %v4169 = vunpack.c.l.b16 %v4101
    %v4170 = vunpack.c.l.b16 %v4102
    %v4171 = vunpack.c.l.b16 %v4103
    %v4172 = vunpack.c.l.b16 %v4104
    %v4173 = vunpack.c.l.b16 %v4105
    %v4174 = vunpack.c.l.b16 %v4106
    %v4175 = vunpack.c.l.b16 %v4107
    %v4176 = vunpack.c.l.b16 %v4108
    %v4177 = vunpack.c.l.b16 %v4109
    %v4178 = vunpack.c.l.b16 %v4110
    %v4179 = vunpack.c.l.b16 %v4111
    %v4180 = vunpack.c.l.b16 %v4112
    %v4181 = vunpack.c.l.b16 %v4113
    %v4182 = vunpack.c.l.b16 %v4114
    %v4183 = vunpack.c.l.b16 %v4115
    %v4184 = vunpack.c.l.b16 %v4116
    %v4185 = vunpack.c.l.b16 %v4117
    %v4186 = vunpack.c.l.b16 %v4118
    %v4187 = vunpack.c.l.b16 %v4119
    %v4188 = vunpack.c.l.b16 %v4120
    %v4189 = vunpack.c.l.b16 %v4121
    %v4190 = vunpack.c.l.b16 %v4122
    %v4191 = vunpack.c.l.b16 %v4123
    %v4192 = vunpack.c.l.b16 %v4124
    %v4193 = vunpack.c.l.b16 %v4125
    %v4194 = vpack.c.b16 %v4163, %v4162
    %v4195 = vpack.c.b16 %v4165, %v4164
    %v4196 = vpack.c.b16 %v4167, %v4166
    %v4197 = vpack.c.b16 %v4169, %v4168
    %v4198 = vpack.c.b16 %v4171, %v4170
    %v4199 = vpack.c.b16 %v4173, %v4172
    %v4200 = vpack.c.b16 %v4175, %v4174
    %v4201 = vpack.c.b16 %v4177, %v4176
    %v4202 = vpack.c.b16 %v4179, %v4178
    %v4203 = vpack.c.b16 %v4181, %v4180
    %v4204 = vpack.c.b16 %v4183, %v4182
    %v4205 = vpack.c.b16 %v4185, %v4184
    %v4206 = vpack.c.b16 %v4187, %v4186
    %v4207 = vpack.c.b16 %v4189, %v4188
    %v4208 = vpack.c.b16 %v4191, %v4190
    %v4209 = vpack.c.b16 %v4193, %v4192
    %4226 = vmatprep.subr.bf16.mxu0 0
    %4227 = vmatpush1.bf16.msra.mxu0 %v4194
    %4228 = vmatprep.subr.bf16.mxu0 0
    %4229 = vmatpush1.bf16.msra.mxu0 %v4195
    %4230 = vmatprep.subr.bf16.mxu0 0
    %4231 = vmatpush1.bf16.msra.mxu0 %v4196
    %4232 = vmatprep.subr.bf16.mxu0 0
    %4233 = vmatpush1.bf16.msra.mxu0 %v4197
    %4234 = vmatprep.subr.bf16.mxu0 0
    %4235 = vmatpush1.bf16.msra.mxu0 %v4198
    %4236 = vmatprep.subr.bf16.mxu0 0
    %4237 = vmatpush1.bf16.msra.mxu0 %v4199
    %4238 = vmatprep.subr.bf16.mxu0 0
    %4239 = vmatpush1.bf16.msra.mxu0 %v4200
    %4240 = vmatprep.subr.bf16.mxu0 0
    %4241 = vmatpush1.bf16.msra.mxu0 %v4201
    %4242 = vmatprep.subr.bf16.mxu0 0
    %4243 = vmatpush1.bf16.msra.mxu0 %v4202
    %4244 = vmatprep.subr.bf16.mxu0 0
    %4245 = vmatpush1.bf16.msra.mxu0 %v4203
    %4246 = vmatprep.subr.bf16.mxu0 0
    %4247 = vmatpush1.bf16.msra.mxu0 %v4204
    %4248 = vmatprep.subr.bf16.mxu0 0
    %4249 = vmatpush1.bf16.msra.mxu0 %v4205
    %4250 = vmatprep.subr.bf16.mxu0 0
    %4251 = vmatpush1.bf16.msra.mxu0 %v4206
    %4252 = vmatprep.subr.bf16.mxu0 0
    %4253 = vmatpush1.bf16.msra.mxu0 %v4207
    %4254 = vmatprep.subr.bf16.mxu0 0
    %4255 = vmatpush1.bf16.msra.mxu0 %v4208
    %4256 = vmatprep.subr.bf16.mxu0 0
    %4257 = vmatpush1.bf16.msra.mxu0 %v4209
    %4258 = vmatprep.mubr.bf16.mxu0 %v4127
    %4259 = vmatmul.mubr.bf16.gmra.mrb[0].mxu0 %v4126
    %v4260 = vpop.f32.mrb[0].mxu0
    %v4261 = vadd.f32 0.0, %v4260
    %v4262 = vpop.f32.mrb[0].mxu0
    %v4263 = vpop.f32.mrb[0].mxu0
    %v4264 = vpop.f32.mrb[0].mxu0
    %4265 = vdwg.mxu0
    %v4266 = vadd.f32 %v4092, %v4261
    %s4267 = scalar_lea.vmem %s5, 1792
    %v4268 = vld [vmem:[%s4267] sm:$0xf]
    %v4269 = vld [vmem:[%s4267 + $0x4] sm:$0xf]
    %v4270 = vld [vmem:[%s4267 + $0x8] sm:$0xf]
    %v4271 = vld [vmem:[%s4267 + $0xc] sm:$0xf]
    %v4272 = vld [vmem:[%s4267 + $0x10] sm:$0xf]
    %v4273 = vld [vmem:[%s4267 + $0x14] sm:$0xf]
    %v4274 = vld [vmem:[%s4267 + $0x18] sm:$0xf]
    %v4275 = vld [vmem:[%s4267 + $0x1c] sm:$0xf]
    %v4276 = vld [vmem:[%s4267 + $0x20] sm:$0xf]
    %v4277 = vld [vmem:[%s4267 + $0x24] sm:$0xf]
    %v4278 = vld [vmem:[%s4267 + $0x28] sm:$0xf]
    %v4279 = vld [vmem:[%s4267 + $0x2c] sm:$0xf]
    %v4280 = vld [vmem:[%s4267 + $0x30] sm:$0xf]
    %v4281 = vld [vmem:[%s4267 + $0x34] sm:$0xf]
    %v4282 = vld [vmem:[%s4267 + $0x38] sm:$0xf]
    %v4283 = vld [vmem:[%s4267 + $0x3c] sm:$0xf]
    %v4284 = vld [vmem:[%s4267 + $0x40] sm:$0xf]
    %v4285 = vld [vmem:[%s4267 + $0x44] sm:$0xf]
    %v4286 = vld [vmem:[%s4267 + $0x48] sm:$0xf]
    %v4287 = vld [vmem:[%s4267 + $0x4c] sm:$0xf]
    %v4288 = vld [vmem:[%s4267 + $0x50] sm:$0xf]
    %v4289 = vld [vmem:[%s4267 + $0x54] sm:$0xf]
    %v4290 = vld [vmem:[%s4267 + $0x58] sm:$0xf]
    %v4291 = vld [vmem:[%s4267 + $0x5c] sm:$0xf]
    %v4292 = vld [vmem:[%s4267 + $0x60] sm:$0xf]
    %v4293 = vld [vmem:[%s4267 + $0x64] sm:$0xf]
    %v4294 = vld [vmem:[%s4267 + $0x68] sm:$0xf]
    %v4295 = vld [vmem:[%s4267 + $0x6c] sm:$0xf]
    %v4296 = vld [vmem:[%s4267 + $0x70] sm:$0xf]
    %v4297 = vld [vmem:[%s4267 + $0x74] sm:$0xf]
    %v4298 = vld [vmem:[%s4267 + $0x78] sm:$0xf]
    %v4299 = vld [vmem:[%s4267 + $0x7c] sm:$0xf]
    %v4300 = vrot.slane %v1825, 7
    %v4301 = vrot.slane %v1826, 7
    %v4336 = vunpack.c.l.b16 %v4268
    %v4337 = vunpack.c.l.b16 %v4269
    %v4338 = vunpack.c.l.b16 %v4270
    %v4339 = vunpack.c.l.b16 %v4271
    %v4340 = vunpack.c.l.b16 %v4272
    %v4341 = vunpack.c.l.b16 %v4273
    %v4342 = vunpack.c.l.b16 %v4274
    %v4343 = vunpack.c.l.b16 %v4275
    %v4344 = vunpack.c.l.b16 %v4276
    %v4345 = vunpack.c.l.b16 %v4277
    %v4346 = vunpack.c.l.b16 %v4278
    %v4347 = vunpack.c.l.b16 %v4279
    %v4348 = vunpack.c.l.b16 %v4280
    %v4349 = vunpack.c.l.b16 %v4281
    %v4350 = vunpack.c.l.b16 %v4282
    %v4351 = vunpack.c.l.b16 %v4283
    %v4352 = vunpack.c.l.b16 %v4284
    %v4353 = vunpack.c.l.b16 %v4285
    %v4354 = vunpack.c.l.b16 %v4286
    %v4355 = vunpack.c.l.b16 %v4287
    %v4356 = vunpack.c.l.b16 %v4288
    %v4357 = vunpack.c.l.b16 %v4289
    %v4358 = vunpack.c.l.b16 %v4290
    %v4359 = vunpack.c.l.b16 %v4291
    %v4360 = vunpack.c.l.b16 %v4292
    %v4361 = vunpack.c.l.b16 %v4293
    %v4362 = vunpack.c.l.b16 %v4294
    %v4363 = vunpack.c.l.b16 %v4295
    %v4364 = vunpack.c.l.b16 %v4296
    %v4365 = vunpack.c.l.b16 %v4297
    %v4366 = vunpack.c.l.b16 %v4298
    %v4367 = vunpack.c.l.b16 %v4299
    %v4368 = vpack.c.b16 %v4337, %v4336
    %v4369 = vpack.c.b16 %v4339, %v4338
    %v4370 = vpack.c.b16 %v4341, %v4340
    %v4371 = vpack.c.b16 %v4343, %v4342
    %v4372 = vpack.c.b16 %v4345, %v4344
    %v4373 = vpack.c.b16 %v4347, %v4346
    %v4374 = vpack.c.b16 %v4349, %v4348
    %v4375 = vpack.c.b16 %v4351, %v4350
    %v4376 = vpack.c.b16 %v4353, %v4352
    %v4377 = vpack.c.b16 %v4355, %v4354
    %v4378 = vpack.c.b16 %v4357, %v4356
    %v4379 = vpack.c.b16 %v4359, %v4358
    %v4380 = vpack.c.b16 %v4361, %v4360
    %v4381 = vpack.c.b16 %v4363, %v4362
    %v4382 = vpack.c.b16 %v4365, %v4364
    %v4383 = vpack.c.b16 %v4367, %v4366
    %4400 = vmatprep.subr.bf16.mxu0 0
    %4401 = vmatpush1.bf16.msra.mxu0 %v4368
    %4402 = vmatprep.subr.bf16.mxu0 0
    %4403 = vmatpush1.bf16.msra.mxu0 %v4369
    %4404 = vmatprep.subr.bf16.mxu0 0
    %4405 = vmatpush1.bf16.msra.mxu0 %v4370
    %4406 = vmatprep.subr.bf16.mxu0 0
    %4407 = vmatpush1.bf16.msra.mxu0 %v4371
    %4408 = vmatprep.subr.bf16.mxu0 0
    %4409 = vmatpush1.bf16.msra.mxu0 %v4372
    %4410 = vmatprep.subr.bf16.mxu0 0
    %4411 = vmatpush1.bf16.msra.mxu0 %v4373
    %4412 = vmatprep.subr.bf16.mxu0 0
    %4413 = vmatpush1.bf16.msra.mxu0 %v4374
    %4414 = vmatprep.subr.bf16.mxu0 0
    %4415 = vmatpush1.bf16.msra.mxu0 %v4375
    %4416 = vmatprep.subr.bf16.mxu0 0
    %4417 = vmatpush1.bf16.msra.mxu0 %v4376
    %4418 = vmatprep.subr.bf16.mxu0 0
    %4419 = vmatpush1.bf16.msra.mxu0 %v4377
    %4420 = vmatprep.subr.bf16.mxu0 0
    %4421 = vmatpush1.bf16.msra.mxu0 %v4378
    %4422 = vmatprep.subr.bf16.mxu0 0
    %4423 = vmatpush1.bf16.msra.mxu0 %v4379
    %4424 = vmatprep.subr.bf16.mxu0 0
    %4425 = vmatpush1.bf16.msra.mxu0 %v4380
    %4426 = vmatprep.subr.bf16.mxu0 0
    %4427 = vmatpush1.bf16.msra.mxu0 %v4381
    %4428 = vmatprep.subr.bf16.mxu0 0
    %4429 = vmatpush1.bf16.msra.mxu0 %v4382
    %4430 = vmatprep.subr.bf16.mxu0 0
    %4431 = vmatpush1.bf16.msra.mxu0 %v4383
    %4432 = vmatprep.mubr.bf16.mxu0 %v4301
    %4433 = vmatmul.mubr.bf16.gmra.mrb[0].mxu0 %v4300
    %v4434 = vpop.f32.mrb[0].mxu0
    %v4435 = vadd.f32 0.0, %v4434
    %v4436 = vpop.f32.mrb[0].mxu0
    %v4437 = vpop.f32.mrb[0].mxu0
    %v4438 = vpop.f32.mrb[0].mxu0
    %4439 = vdwg.mxu0
    %v4440 = vadd.f32 %v4266, %v4435
    %s4441 = scalar_lea.vmem %s5, 1920
    %v4442 = vld [vmem:[%s4441] sm:$0xf]
    %v4443 = vld [vmem:[%s4441 + $0x4] sm:$0xf]
    %v4444 = vld [vmem:[%s4441 + $0x8] sm:$0xf]
    %v4445 = vld [vmem:[%s4441 + $0xc] sm:$0xf]
    %v4446 = vld [vmem:[%s4441 + $0x10] sm:$0xf]
    %v4447 = vld [vmem:[%s4441 + $0x14] sm:$0xf]
    %v4448 = vld [vmem:[%s4441 + $0x18] sm:$0xf]
    %v4449 = vld [vmem:[%s4441 + $0x1c] sm:$0xf]
    %v4450 = vld [vmem:[%s4441 + $0x20] sm:$0xf]
    %v4451 = vld [vmem:[%s4441 + $0x24] sm:$0xf]
    %v4452 = vld [vmem:[%s4441 + $0x28] sm:$0xf]
    %v4453 = vld [vmem:[%s4441 + $0x2c] sm:$0xf]
    %v4454 = vld [vmem:[%s4441 + $0x30] sm:$0xf]
    %v4455 = vld [vmem:[%s4441 + $0x34] sm:$0xf]
    %v4456 = vld [vmem:[%s4441 + $0x38] sm:$0xf]
    %v4457 = vld [vmem:[%s4441 + $0x3c] sm:$0xf]
    %v4458 = vld [vmem:[%s4441 + $0x40] sm:$0xf]
    %v4459 = vld [vmem:[%s4441 + $0x44] sm:$0xf]
    %v4460 = vld [vmem:[%s4441 + $0x48] sm:$0xf]
    %v4461 = vld [vmem:[%s4441 + $0x4c] sm:$0xf]
    %v4462 = vld [vmem:[%s4441 + $0x50] sm:$0xf]
    %v4463 = vld [vmem:[%s4441 + $0x54] sm:$0xf]
    %v4464 = vld [vmem:[%s4441 + $0x58] sm:$0xf]
    %v4465 = vld [vmem:[%s4441 + $0x5c] sm:$0xf]
    %v4466 = vld [vmem:[%s4441 + $0x60] sm:$0xf]
    %v4467 = vld [vmem:[%s4441 + $0x64] sm:$0xf]
    %v4468 = vld [vmem:[%s4441 + $0x68] sm:$0xf]
    %v4469 = vld [vmem:[%s4441 + $0x6c] sm:$0xf]
    %v4470 = vld [vmem:[%s4441 + $0x70] sm:$0xf]
    %v4471 = vld [vmem:[%s4441 + $0x74] sm:$0xf]
    %v4472 = vld [vmem:[%s4441 + $0x78] sm:$0xf]
    %v4473 = vld [vmem:[%s4441 + $0x7c] sm:$0xf]
    %v4474 = vrot.slane %v2033, 7
    %v4475 = vrot.slane %v2036, 7
    %v4510 = vunpack.c.l.b16 %v4442
    %v4511 = vunpack.c.l.b16 %v4443
    %v4512 = vunpack.c.l.b16 %v4444
    %v4513 = vunpack.c.l.b16 %v4445
    %v4514 = vunpack.c.l.b16 %v4446
    %v4515 = vunpack.c.l.b16 %v4447
    %v4516 = vunpack.c.l.b16 %v4448
    %v4517 = vunpack.c.l.b16 %v4449
    %v4518 = vunpack.c.l.b16 %v4450
    %v4519 = vunpack.c.l.b16 %v4451
    %v4520 = vunpack.c.l.b16 %v4452
    %v4521 = vunpack.c.l.b16 %v4453
    %v4522 = vunpack.c.l.b16 %v4454
    %v4523 = vunpack.c.l.b16 %v4455
    %v4524 = vunpack.c.l.b16 %v4456
    %v4525 = vunpack.c.l.b16 %v4457
    %v4526 = vunpack.c.l.b16 %v4458
    %v4527 = vunpack.c.l.b16 %v4459
    %v4528 = vunpack.c.l.b16 %v4460
    %v4529 = vunpack.c.l.b16 %v4461
    %v4530 = vunpack.c.l.b16 %v4462
    %v4531 = vunpack.c.l.b16 %v4463
    %v4532 = vunpack.c.l.b16 %v4464
    %v4533 = vunpack.c.l.b16 %v4465
    %v4534 = vunpack.c.l.b16 %v4466
    %v4535 = vunpack.c.l.b16 %v4467
    %v4536 = vunpack.c.l.b16 %v4468
    %v4537 = vunpack.c.l.b16 %v4469
    %v4538 = vunpack.c.l.b16 %v4470
    %v4539 = vunpack.c.l.b16 %v4471
    %v4540 = vunpack.c.l.b16 %v4472
    %v4541 = vunpack.c.l.b16 %v4473
    %v4542 = vpack.c.b16 %v4511, %v4510
    %v4543 = vpack.c.b16 %v4513, %v4512
    %v4544 = vpack.c.b16 %v4515, %v4514
    %v4545 = vpack.c.b16 %v4517, %v4516
    %v4546 = vpack.c.b16 %v4519, %v4518
    %v4547 = vpack.c.b16 %v4521, %v4520
    %v4548 = vpack.c.b16 %v4523, %v4522
    %v4549 = vpack.c.b16 %v4525, %v4524
    %v4550 = vpack.c.b16 %v4527, %v4526
    %v4551 = vpack.c.b16 %v4529, %v4528
    %v4552 = vpack.c.b16 %v4531, %v4530
    %v4553 = vpack.c.b16 %v4533, %v4532
    %v4554 = vpack.c.b16 %v4535, %v4534
    %v4555 = vpack.c.b16 %v4537, %v4536
    %v4556 = vpack.c.b16 %v4539, %v4538
    %v4557 = vpack.c.b16 %v4541, %v4540
    %4574 = vmatprep.subr.bf16.mxu0 0
    %4575 = vmatpush1.bf16.msra.mxu0 %v4542
    %4576 = vmatprep.subr.bf16.mxu0 0
    %4577 = vmatpush1.bf16.msra.mxu0 %v4543
    %4578 = vmatprep.subr.bf16.mxu0 0
    %4579 = vmatpush1.bf16.msra.mxu0 %v4544
    %4580 = vmatprep.subr.bf16.mxu0 0
    %4581 = vmatpush1.bf16.msra.mxu0 %v4545
    %4582 = vmatprep.subr.bf16.mxu0 0
    %4583 = vmatpush1.bf16.msra.mxu0 %v4546
    %4584 = vmatprep.subr.bf16.mxu0 0
    %4585 = vmatpush1.bf16.msra.mxu0 %v4547
    %4586 = vmatprep.subr.bf16.mxu0 0
    %4587 = vmatpush1.bf16.msra.mxu0 %v4548
    %4588 = vmatprep.subr.bf16.mxu0 0
    %4589 = vmatpush1.bf16.msra.mxu0 %v4549
    %4590 = vmatprep.subr.bf16.mxu0 0
    %4591 = vmatpush1.bf16.msra.mxu0 %v4550
    %4592 = vmatprep.subr.bf16.mxu0 0
    %4593 = vmatpush1.bf16.msra.mxu0 %v4551
    %4594 = vmatprep.subr.bf16.mxu0 0
    %4595 = vmatpush1.bf16.msra.mxu0 %v4552
    %4596 = vmatprep.subr.bf16.mxu0 0
    %4597 = vmatpush1.bf16.msra.mxu0 %v4553
    %4598 = vmatprep.subr.bf16.mxu0 0
    %4599 = vmatpush1.bf16.msra.mxu0 %v4554
    %4600 = vmatprep.subr.bf16.mxu0 0
    %4601 = vmatpush1.bf16.msra.mxu0 %v4555
    %4602 = vmatprep.subr.bf16.mxu0 0
    %4603 = vmatpush1.bf16.msra.mxu0 %v4556
    %4604 = vmatprep.subr.bf16.mxu0 0
    %4605 = vmatpush1.bf16.msra.mxu0 %v4557
    %4606 = vmatprep.mubr.bf16.mxu0 %v4475
    %4607 = vmatmul.mubr.bf16.gmra.mrb[0].mxu0 %v4474
    %v4608 = vpop.f32.mrb[0].mxu0
    %v4609 = vadd.f32 0.0, %v4608
    %v4610 = vpop.f32.mrb[0].mxu0
    %v4611 = vpop.f32.mrb[0].mxu0
    %v4612 = vpop.f32.mrb[0].mxu0
    %4613 = vdwg.mxu0
    %v4614 = vadd.f32 %v4440, %v4609
    %v4615 = vmax.f32 %v4614, 0.0
    %4616 = vmatprep.subr.bf16.mxu0 0
    %4617 = vmatpush1.bf16.msra.mxu0 %v1926
    %4618 = vmatprep.subr.bf16.mxu0 0
    %4619 = vmatpush1.bf16.msra.mxu0 %v1927
    %4620 = vmatprep.subr.bf16.mxu0 0
    %4621 = vmatpush1.bf16.msra.mxu0 %v1928
    %4622 = vmatprep.subr.bf16.mxu0 0
    %4623 = vmatpush1.bf16.msra.mxu0 %v1929
    %4624 = vmatprep.subr.bf16.mxu0 0
    %4625 = vmatpush1.bf16.msra.mxu0 %v1930
    %4626 = vmatprep.subr.bf16.mxu0 0
    %4627 = vmatpush1.bf16.msra.mxu0 %v1931
    %4628 = vmatprep.subr.bf16.mxu0 0
    %4629 = vmatpush1.bf16.msra.mxu0 %v1932
    %4630 = vmatprep.subr.bf16.mxu0 0
    %4631 = vmatpush1.bf16.msra.mxu0 %v1933
    %4632 = vmatprep.subr.bf16.mxu0 0
    %4633 = vmatpush1.bf16.msra.mxu0 %v1934
    %4634 = vmatprep.subr.bf16.mxu0 0
    %4635 = vmatpush1.bf16.msra.mxu0 %v1935
    %4636 = vmatprep.subr.bf16.mxu0 0
    %4637 = vmatpush1.bf16.msra.mxu0 %v1936
    %4638 = vmatprep.subr.bf16.mxu0 0
    %4639 = vmatpush1.bf16.msra.mxu0 %v1937
    %4640 = vmatprep.subr.bf16.mxu0 0
    %4641 = vmatpush1.bf16.msra.mxu0 %v1938
    %4642 = vmatprep.subr.bf16.mxu0 0
    %4643 = vmatpush1.bf16.msra.mxu0 %v1939
    %4644 = vmatprep.subr.bf16.mxu0 0
    %4645 = vmatpush1.bf16.msra.mxu0 %v1940
    %4646 = vmatprep.subr.bf16.mxu0 0
    %4647 = vmatpush1.bf16.msra.mxu0 %v1941
    %4648 = vmatprep.mubr.bf16.mxu0 %v1828
    %4649 = vmatmul.mubr.bf16.gmra.mrb[0].mxu0 %v1827
    %v4650 = vpop.f32.mrb[0].mxu0
    %v4651 = vadd.f32 0.0, %v4650
    %v4652 = vpop.f32.mrb[0].mxu0
    %v4653 = vpop.f32.mrb[0].mxu0
    %v4654 = vpop.f32.mrb[0].mxu0
    %4655 = vdwg.mxu0
    %v4656 = vadd.f32 %v1829, %v4651
    %v4658 = vshrl.u32 %v1827, 16
    %v4661 = vshrl.u32 %v1828, 16
    %4665 = vmatprep.subr.bf16.mxu0 0
    %4666 = vmatpush1.bf16.msra.mxu0 %v2104
    %4667 = vmatprep.subr.bf16.mxu0 0
    %4668 = vmatpush1.bf16.msra.mxu0 %v2105
    %4669 = vmatprep.subr.bf16.mxu0 0
    %4670 = vmatpush1.bf16.msra.mxu0 %v2106
    %4671 = vmatprep.subr.bf16.mxu0 0
    %4672 = vmatpush1.bf16.msra.mxu0 %v2107
    %4673 = vmatprep.subr.bf16.mxu0 0
    %4674 = vmatpush1.bf16.msra.mxu0 %v2108
    %4675 = vmatprep.subr.bf16.mxu0 0
    %4676 = vmatpush1.bf16.msra.mxu0 %v2109
    %4677 = vmatprep.subr.bf16.mxu0 0
    %4678 = vmatpush1.bf16.msra.mxu0 %v2110
    %4679 = vmatprep.subr.bf16.mxu0 0
    %4680 = vmatpush1.bf16.msra.mxu0 %v2111
    %4681 = vmatprep.subr.bf16.mxu0 0
    %4682 = vmatpush1.bf16.msra.mxu0 %v2112
    %4683 = vmatprep.subr.bf16.mxu0 0
    %4684 = vmatpush1.bf16.msra.mxu0 %v2113
    %4685 = vmatprep.subr.bf16.mxu0 0
    %4686 = vmatpush1.bf16.msra.mxu0 %v2114
    %4687 = vmatprep.subr.bf16.mxu0 0
    %4688 = vmatpush1.bf16.msra.mxu0 %v2115
    %4689 = vmatprep.subr.bf16.mxu0 0
    %4690 = vmatpush1.bf16.msra.mxu0 %v2116
    %4691 = vmatprep.subr.bf16.mxu0 0
    %4692 = vmatpush1.bf16.msra.mxu0 %v2117
    %4693 = vmatprep.subr.bf16.mxu0 0
    %4694 = vmatpush1.bf16.msra.mxu0 %v2118
    %4695 = vmatprep.subr.bf16.mxu0 0
    %4696 = vmatpush1.bf16.msra.mxu0 %v2119
    %4697 = vmatprep.mubr.bf16.mxu0 %v4661
    %4698 = vmatmul.mubr.bf16.gmra.mrb[0].mxu0 %v4658
    %v4699 = vpop.f32.mrb[0].mxu0
    %v4700 = vadd.f32 0.0, %v4699
    %v4701 = vpop.f32.mrb[0].mxu0
    %v4702 = vpop.f32.mrb[0].mxu0
    %v4703 = vpop.f32.mrb[0].mxu0
    %4704 = vdwg.mxu0
    %v4705 = vadd.f32 %v4656, %v4700
    %v4708 = vrot.slane %v1827, 1
    %v4709 = vrot.slane %v1828, 1
    %4712 = vmatprep.subr.bf16.mxu0 0
    %4713 = vmatpush1.bf16.msra.mxu0 %v2280
    %4714 = vmatprep.subr.bf16.mxu0 0
    %4715 = vmatpush1.bf16.msra.mxu0 %v2281
    %4716 = vmatprep.subr.bf16.mxu0 0
    %4717 = vmatpush1.bf16.msra.mxu0 %v2282
    %4718 = vmatprep.subr.bf16.mxu0 0
    %4719 = vmatpush1.bf16.msra.mxu0 %v2283
    %4720 = vmatprep.subr.bf16.mxu0 0
    %4721 = vmatpush1.bf16.msra.mxu0 %v2284
    %4722 = vmatprep.subr.bf16.mxu0 0
    %4723 = vmatpush1.bf16.msra.mxu0 %v2285
    %4724 = vmatprep.subr.bf16.mxu0 0
    %4725 = vmatpush1.bf16.msra.mxu0 %v2286
    %4726 = vmatprep.subr.bf16.mxu0 0
    %4727 = vmatpush1.bf16.msra.mxu0 %v2287
    %4728 = vmatprep.subr.bf16.mxu0 0
    %4729 = vmatpush1.bf16.msra.mxu0 %v2288
    %4730 = vmatprep.subr.bf16.mxu0 0
    %4731 = vmatpush1.bf16.msra.mxu0 %v2289
    %4732 = vmatprep.subr.bf16.mxu0 0
    %4733 = vmatpush1.bf16.msra.mxu0 %v2290
    %4734 = vmatprep.subr.bf16.mxu0 0
    %4735 = vmatpush1.bf16.msra.mxu0 %v2291
    %4736 = vmatprep.subr.bf16.mxu0 0
    %4737 = vmatpush1.bf16.msra.mxu0 %v2292
    %4738 = vmatprep.subr.bf16.mxu0 0
    %4739 = vmatpush1.bf16.msra.mxu0 %v2293
    %4740 = vmatprep.subr.bf16.mxu0 0
    %4741 = vmatpush1.bf16.msra.mxu0 %v2294
    %4742 = vmatprep.subr.bf16.mxu0 0
    %4743 = vmatpush1.bf16.msra.mxu0 %v2295
    %4744 = vmatprep.mubr.bf16.mxu0 %v4709
    %4745 = vmatmul.mubr.bf16.gmra.mrb[0].mxu0 %v4708
    %v4746 = vpop.f32.mrb[0].mxu0
    %v4747 = vadd.f32 0.0, %v4746
    %v4748 = vpop.f32.mrb[0].mxu0
    %v4749 = vpop.f32.mrb[0].mxu0
    %v4750 = vpop.f32.mrb[0].mxu0
    %4751 = vdwg.mxu0
    %v4752 = vadd.f32 %v4705, %v4747
    %v4753 = vrot.slane %v4658, 1
    %v4754 = vrot.slane %v4661, 1
    %4757 = vmatprep.subr.bf16.mxu0 0
    %4758 = vmatpush1.bf16.msra.mxu0 %v2454
    %4759 = vmatprep.subr.bf16.mxu0 0
    %4760 = vmatpush1.bf16.msra.mxu0 %v2455
    %4761 = vmatprep.subr.bf16.mxu0 0
    %4762 = vmatpush1.bf16.msra.mxu0 %v2456
    %4763 = vmatprep.subr.bf16.mxu0 0
    %4764 = vmatpush1.bf16.msra.mxu0 %v2457
    %4765 = vmatprep.subr.bf16.mxu0 0
    %4766 = vmatpush1.bf16.msra.mxu0 %v2458
    %4767 = vmatprep.subr.bf16.mxu0 0
    %4768 = vmatpush1.bf16.msra.mxu0 %v2459
    %4769 = vmatprep.subr.bf16.mxu0 0
    %4770 = vmatpush1.bf16.msra.mxu0 %v2460
    %4771 = vmatprep.subr.bf16.mxu0 0
    %4772 = vmatpush1.bf16.msra.mxu0 %v2461
    %4773 = vmatprep.subr.bf16.mxu0 0
    %4774 = vmatpush1.bf16.msra.mxu0 %v2462
    %4775 = vmatprep.subr.bf16.mxu0 0
    %4776 = vmatpush1.bf16.msra.mxu0 %v2463
    %4777 = vmatprep.subr.bf16.mxu0 0
    %4778 = vmatpush1.bf16.msra.mxu0 %v2464
    %4779 = vmatprep.subr.bf16.mxu0 0
    %4780 = vmatpush1.bf16.msra.mxu0 %v2465
    %4781 = vmatprep.subr.bf16.mxu0 0
    %4782 = vmatpush1.bf16.msra.mxu0 %v2466
    %4783 = vmatprep.subr.bf16.mxu0 0
    %4784 = vmatpush1.bf16.msra.mxu0 %v2467
    %4785 = vmatprep.subr.bf16.mxu0 0
    %4786 = vmatpush1.bf16.msra.mxu0 %v2468
    %4787 = vmatprep.subr.bf16.mxu0 0
    %4788 = vmatpush1.bf16.msra.mxu0 %v2469
    %4789 = vmatprep.mubr.bf16.mxu0 %v4754
    %4790 = vmatmul.mubr.bf16.gmra.mrb[0].mxu0 %v4753
    %v4791 = vpop.f32.mrb[0].mxu0
    %v4792 = vadd.f32 0.0, %v4791
    %v4793 = vpop.f32.mrb[0].mxu0
    %v4794 = vpop.f32.mrb[0].mxu0
    %v4795 = vpop.f32.mrb[0].mxu0
    %4796 = vdwg.mxu0
    %v4797 = vadd.f32 %v4752, %v4792
    %v4798 = vrot.slane %v1827, 2
    %v4799 = vrot.slane %v1828, 2
    %4802 = vmatprep.subr.bf16.mxu0 0
    %4803 = vmatpush1.bf16.msra.mxu0 %v2628
    %4804 = vmatprep.subr.bf16.mxu0 0
    %4805 = vmatpush1.bf16.msra.mxu0 %v2629
    %4806 = vmatprep.subr.bf16.mxu0 0
    %4807 = vmatpush1.bf16.msra.mxu0 %v2630
    %4808 = vmatprep.subr.bf16.mxu0 0
    %4809 = vmatpush1.bf16.msra.mxu0 %v2631
    %4810 = vmatprep.subr.bf16.mxu0 0
    %4811 = vmatpush1.bf16.msra.mxu0 %v2632
    %4812 = vmatprep.subr.bf16.mxu0 0
    %4813 = vmatpush1.bf16.msra.mxu0 %v2633
    %4814 = vmatprep.subr.bf16.mxu0 0
    %4815 = vmatpush1.bf16.msra.mxu0 %v2634
    %4816 = vmatprep.subr.bf16.mxu0 0
    %4817 = vmatpush1.bf16.msra.mxu0 %v2635
    %4818 = vmatprep.subr.bf16.mxu0 0
    %4819 = vmatpush1.bf16.msra.mxu0 %v2636
    %4820 = vmatprep.subr.bf16.mxu0 0
    %4821 = vmatpush1.bf16.msra.mxu0 %v2637
    %4822 = vmatprep.subr.bf16.mxu0 0
    %4823 = vmatpush1.bf16.msra.mxu0 %v2638
    %4824 = vmatprep.subr.bf16.mxu0 0
    %4825 = vmatpush1.bf16.msra.mxu0 %v2639
    %4826 = vmatprep.subr.bf16.mxu0 0
    %4827 = vmatpush1.bf16.msra.mxu0 %v2640
    %4828 = vmatprep.subr.bf16.mxu0 0
    %4829 = vmatpush1.bf16.msra.mxu0 %v2641
    %4830 = vmatprep.subr.bf16.mxu0 0
    %4831 = vmatpush1.bf16.msra.mxu0 %v2642
    %4832 = vmatprep.subr.bf16.mxu0 0
    %4833 = vmatpush1.bf16.msra.mxu0 %v2643
    %4834 = vmatprep.mubr.bf16.mxu0 %v4799
    %4835 = vmatmul.mubr.bf16.gmra.mrb[0].mxu0 %v4798
    %v4836 = vpop.f32.mrb[0].mxu0
    %v4837 = vadd.f32 0.0, %v4836
    %v4838 = vpop.f32.mrb[0].mxu0
    %v4839 = vpop.f32.mrb[0].mxu0
    %v4840 = vpop.f32.mrb[0].mxu0
    %4841 = vdwg.mxu0
    %v4842 = vadd.f32 %v4797, %v4837
    %v4843 = vrot.slane %v4658, 2
    %v4844 = vrot.slane %v4661, 2
    %4847 = vmatprep.subr.bf16.mxu0 0
    %4848 = vmatpush1.bf16.msra.mxu0 %v2802
    %4849 = vmatprep.subr.bf16.mxu0 0
    %4850 = vmatpush1.bf16.msra.mxu0 %v2803
    %4851 = vmatprep.subr.bf16.mxu0 0
    %4852 = vmatpush1.bf16.msra.mxu0 %v2804
    %4853 = vmatprep.subr.bf16.mxu0 0
    %4854 = vmatpush1.bf16.msra.mxu0 %v2805
    %4855 = vmatprep.subr.bf16.mxu0 0
    %4856 = vmatpush1.bf16.msra.mxu0 %v2806
    %4857 = vmatprep.subr.bf16.mxu0 0
    %4858 = vmatpush1.bf16.msra.mxu0 %v2807
    %4859 = vmatprep.subr.bf16.mxu0 0
    %4860 = vmatpush1.bf16.msra.mxu0 %v2808
    %4861 = vmatprep.subr.bf16.mxu0 0
    %4862 = vmatpush1.bf16.msra.mxu0 %v2809
    %4863 = vmatprep.subr.bf16.mxu0 0
    %4864 = vmatpush1.bf16.msra.mxu0 %v2810
    %4865 = vmatprep.subr.bf16.mxu0 0
    %4866 = vmatpush1.bf16.msra.mxu0 %v2811
    %4867 = vmatprep.subr.bf16.mxu0 0
    %4868 = vmatpush1.bf16.msra.mxu0 %v2812
    %4869 = vmatprep.subr.bf16.mxu0 0
    %4870 = vmatpush1.bf16.msra.mxu0 %v2813
    %4871 = vmatprep.subr.bf16.mxu0 0
    %4872 = vmatpush1.bf16.msra.mxu0 %v2814
    %4873 = vmatprep.subr.bf16.mxu0 0
    %4874 = vmatpush1.bf16.msra.mxu0 %v2815
    %4875 = vmatprep.subr.bf16.mxu0 0
    %4876 = vmatpush1.bf16.msra.mxu0 %v2816
    %4877 = vmatprep.subr.bf16.mxu0 0
    %4878 = vmatpush1.bf16.msra.mxu0 %v2817
    %4879 = vmatprep.mubr.bf16.mxu0 %v4844
    %4880 = vmatmul.mubr.bf16.gmra.mrb[0].mxu0 %v4843
    %v4881 = vpop.f32.mrb[0].mxu0
    %v4882 = vadd.f32 0.0, %v4881
    %v4883 = vpop.f32.mrb[0].mxu0
    %v4884 = vpop.f32.mrb[0].mxu0
    %v4885 = vpop.f32.mrb[0].mxu0
    %4886 = vdwg.mxu0
    %v4887 = vadd.f32 %v4842, %v4882
    %v4888 = vrot.slane %v1827, 3
    %v4889 = vrot.slane %v1828, 3
    %4892 = vmatprep.subr.bf16.mxu0 0
    %4893 = vmatpush1.bf16.msra.mxu0 %v2976
    %4894 = vmatprep.subr.bf16.mxu0 0
    %4895 = vmatpush1.bf16.msra.mxu0 %v2977
    %4896 = vmatprep.subr.bf16.mxu0 0
    %4897 = vmatpush1.bf16.msra.mxu0 %v2978
    %4898 = vmatprep.subr.bf16.mxu0 0
    %4899 = vmatpush1.bf16.msra.mxu0 %v2979
    %4900 = vmatprep.subr.bf16.mxu0 0
    %4901 = vmatpush1.bf16.msra.mxu0 %v2980
    %4902 = vmatprep.subr.bf16.mxu0 0
    %4903 = vmatpush1.bf16.msra.mxu0 %v2981
    %4904 = vmatprep.subr.bf16.mxu0 0
    %4905 = vmatpush1.bf16.msra.mxu0 %v2982
    %4906 = vmatprep.subr.bf16.mxu0 0
    %4907 = vmatpush1.bf16.msra.mxu0 %v2983
    %4908 = vmatprep.subr.bf16.mxu0 0
    %4909 = vmatpush1.bf16.msra.mxu0 %v2984
    %4910 = vmatprep.subr.bf16.mxu0 0
    %4911 = vmatpush1.bf16.msra.mxu0 %v2985
    %4912 = vmatprep.subr.bf16.mxu0 0
    %4913 = vmatpush1.bf16.msra.mxu0 %v2986
    %4914 = vmatprep.subr.bf16.mxu0 0
    %4915 = vmatpush1.bf16.msra.mxu0 %v2987
    %4916 = vmatprep.subr.bf16.mxu0 0
    %4917 = vmatpush1.bf16.msra.mxu0 %v2988
    %4918 = vmatprep.subr.bf16.mxu0 0
    %4919 = vmatpush1.bf16.msra.mxu0 %v2989
    %4920 = vmatprep.subr.bf16.mxu0 0
    %4921 = vmatpush1.bf16.msra.mxu0 %v2990
    %4922 = vmatprep.subr.bf16.mxu0 0
    %4923 = vmatpush1.bf16.msra.mxu0 %v2991
    %4924 = vmatprep.mubr.bf16.mxu0 %v4889
    %4925 = vmatmul.mubr.bf16.gmra.mrb[0].mxu0 %v4888
    %v4926 = vpop.f32.mrb[0].mxu0
    %v4927 = vadd.f32 0.0, %v4926
    %v4928 = vpop.f32.mrb[0].mxu0
    %v4929 = vpop.f32.mrb[0].mxu0
    %v4930 = vpop.f32.mrb[0].mxu0
    %4931 = vdwg.mxu0
    %v4932 = vadd.f32 %v4887, %v4927
    %v4933 = vrot.slane %v4658, 3
    %v4934 = vrot.slane %v4661, 3
    %4937 = vmatprep.subr.bf16.mxu0 0
    %4938 = vmatpush1.bf16.msra.mxu0 %v3150
    %4939 = vmatprep.subr.bf16.mxu0 0
    %4940 = vmatpush1.bf16.msra.mxu0 %v3151
    %4941 = vmatprep.subr.bf16.mxu0 0
    %4942 = vmatpush1.bf16.msra.mxu0 %v3152
    %4943 = vmatprep.subr.bf16.mxu0 0
    %4944 = vmatpush1.bf16.msra.mxu0 %v3153
    %4945 = vmatprep.subr.bf16.mxu0 0
    %4946 = vmatpush1.bf16.msra.mxu0 %v3154
    %4947 = vmatprep.subr.bf16.mxu0 0
    %4948 = vmatpush1.bf16.msra.mxu0 %v3155
    %4949 = vmatprep.subr.bf16.mxu0 0
    %4950 = vmatpush1.bf16.msra.mxu0 %v3156
    %4951 = vmatprep.subr.bf16.mxu0 0
    %4952 = vmatpush1.bf16.msra.mxu0 %v3157
    %4953 = vmatprep.subr.bf16.mxu0 0
    %4954 = vmatpush1.bf16.msra.mxu0 %v3158
    %4955 = vmatprep.subr.bf16.mxu0 0
    %4956 = vmatpush1.bf16.msra.mxu0 %v3159
    %4957 = vmatprep.subr.bf16.mxu0 0
    %4958 = vmatpush1.bf16.msra.mxu0 %v3160
    %4959 = vmatprep.subr.bf16.mxu0 0
    %4960 = vmatpush1.bf16.msra.mxu0 %v3161
    %4961 = vmatprep.subr.bf16.mxu0 0
    %4962 = vmatpush1.bf16.msra.mxu0 %v3162
    %4963 = vmatprep.subr.bf16.mxu0 0
    %4964 = vmatpush1.bf16.msra.mxu0 %v3163
    %4965 = vmatprep.subr.bf16.mxu0 0
    %4966 = vmatpush1.bf16.msra.mxu0 %v3164
    %4967 = vmatprep.subr.bf16.mxu0 0
    %4968 = vmatpush1.bf16.msra.mxu0 %v3165
    %4969 = vmatprep.mubr.bf16.mxu0 %v4934
    %4970 = vmatmul.mubr.bf16.gmra.mrb[0].mxu0 %v4933
    %v4971 = vpop.f32.mrb[0].mxu0
    %v4972 = vadd.f32 0.0, %v4971
    %v4973 = vpop.f32.mrb[0].mxu0
    %v4974 = vpop.f32.mrb[0].mxu0
    %v4975 = vpop.f32.mrb[0].mxu0
    %4976 = vdwg.mxu0
    %v4977 = vadd.f32 %v4932, %v4972
    %v4978 = vrot.slane %v1827, 4
    %v4979 = vrot.slane %v1828, 4
    %4982 = vmatprep.subr.bf16.mxu0 0
    %4983 = vmatpush1.bf16.msra.mxu0 %v3324
    %4984 = vmatprep.subr.bf16.mxu0 0
    %4985 = vmatpush1.bf16.msra.mxu0 %v3325
    %4986 = vmatprep.subr.bf16.mxu0 0
    %4987 = vmatpush1.bf16.msra.mxu0 %v3326
    %4988 = vmatprep.subr.bf16.mxu0 0
    %4989 = vmatpush1.bf16.msra.mxu0 %v3327
    %4990 = vmatprep.subr.bf16.mxu0 0
    %4991 = vmatpush1.bf16.msra.mxu0 %v3328
    %4992 = vmatprep.subr.bf16.mxu0 0
    %4993 = vmatpush1.bf16.msra.mxu0 %v3329
    %4994 = vmatprep.subr.bf16.mxu0 0
    %4995 = vmatpush1.bf16.msra.mxu0 %v3330
    %4996 = vmatprep.subr.bf16.mxu0 0
    %4997 = vmatpush1.bf16.msra.mxu0 %v3331
    %4998 = vmatprep.subr.bf16.mxu0 0
    %4999 = vmatpush1.bf16.msra.mxu0 %v3332
    %5000 = vmatprep.subr.bf16.mxu0 0
    %5001 = vmatpush1.bf16.msra.mxu0 %v3333
    %5002 = vmatprep.subr.bf16.mxu0 0
    %5003 = vmatpush1.bf16.msra.mxu0 %v3334
    %5004 = vmatprep.subr.bf16.mxu0 0
    %5005 = vmatpush1.bf16.msra.mxu0 %v3335
    %5006 = vmatprep.subr.bf16.mxu0 0
    %5007 = vmatpush1.bf16.msra.mxu0 %v3336
    %5008 = vmatprep.subr.bf16.mxu0 0
    %5009 = vmatpush1.bf16.msra.mxu0 %v3337
    %5010 = vmatprep.subr.bf16.mxu0 0
    %5011 = vmatpush1.bf16.msra.mxu0 %v3338
    %5012 = vmatprep.subr.bf16.mxu0 0
    %5013 = vmatpush1.bf16.msra.mxu0 %v3339
    %5014 = vmatprep.mubr.bf16.mxu0 %v4979
    %5015 = vmatmul.mubr.bf16.gmra.mrb[0].mxu0 %v4978
    %v5016 = vpop.f32.mrb[0].mxu0
    %v5017 = vadd.f32 0.0, %v5016
    %v5018 = vpop.f32.mrb[0].mxu0
    %v5019 = vpop.f32.mrb[0].mxu0
    %v5020 = vpop.f32.mrb[0].mxu0
    %5021 = vdwg.mxu0
    %v5022 = vadd.f32 %v4977, %v5017
    %v5023 = vrot.slane %v4658, 4
    %v5024 = vrot.slane %v4661, 4
    %5027 = vmatprep.subr.bf16.mxu0 0
    %5028 = vmatpush1.bf16.msra.mxu0 %v3498
    %5029 = vmatprep.subr.bf16.mxu0 0
    %5030 = vmatpush1.bf16.msra.mxu0 %v3499
    %5031 = vmatprep.subr.bf16.mxu0 0
    %5032 = vmatpush1.bf16.msra.mxu0 %v3500
    %5033 = vmatprep.subr.bf16.mxu0 0
    %5034 = vmatpush1.bf16.msra.mxu0 %v3501
    %5035 = vmatprep.subr.bf16.mxu0 0
    %5036 = vmatpush1.bf16.msra.mxu0 %v3502
    %5037 = vmatprep.subr.bf16.mxu0 0
    %5038 = vmatpush1.bf16.msra.mxu0 %v3503
    %5039 = vmatprep.subr.bf16.mxu0 0
    %5040 = vmatpush1.bf16.msra.mxu0 %v3504
    %5041 = vmatprep.subr.bf16.mxu0 0
    %5042 = vmatpush1.bf16.msra.mxu0 %v3505
    %5043 = vmatprep.subr.bf16.mxu0 0
    %5044 = vmatpush1.bf16.msra.mxu0 %v3506
    %5045 = vmatprep.subr.bf16.mxu0 0
    %5046 = vmatpush1.bf16.msra.mxu0 %v3507
    %5047 = vmatprep.subr.bf16.mxu0 0
    %5048 = vmatpush1.bf16.msra.mxu0 %v3508
    %5049 = vmatprep.subr.bf16.mxu0 0
    %5050 = vmatpush1.bf16.msra.mxu0 %v3509
    %5051 = vmatprep.subr.bf16.mxu0 0
    %5052 = vmatpush1.bf16.msra.mxu0 %v3510
    %5053 = vmatprep.subr.bf16.mxu0 0
    %5054 = vmatpush1.bf16.msra.mxu0 %v3511
    %5055 = vmatprep.subr.bf16.mxu0 0
    %5056 = vmatpush1.bf16.msra.mxu0 %v3512
    %5057 = vmatprep.subr.bf16.mxu0 0
    %5058 = vmatpush1.bf16.msra.mxu0 %v3513
    %5059 = vmatprep.mubr.bf16.mxu0 %v5024
    %5060 = vmatmul.mubr.bf16.gmra.mrb[0].mxu0 %v5023
    %v5061 = vpop.f32.mrb[0].mxu0
    %v5062 = vadd.f32 0.0, %v5061
    %v5063 = vpop.f32.mrb[0].mxu0
    %v5064 = vpop.f32.mrb[0].mxu0
    %v5065 = vpop.f32.mrb[0].mxu0
    %5066 = vdwg.mxu0
    %v5067 = vadd.f32 %v5022, %v5062
    %v5068 = vrot.slane %v1827, 5
    %v5069 = vrot.slane %v1828, 5
    %5072 = vmatprep.subr.bf16.mxu0 0
    %5073 = vmatpush1.bf16.msra.mxu0 %v3672
    %5074 = vmatprep.subr.bf16.mxu0 0
    %5075 = vmatpush1.bf16.msra.mxu0 %v3673
    %5076 = vmatprep.subr.bf16.mxu0 0
    %5077 = vmatpush1.bf16.msra.mxu0 %v3674
    %5078 = vmatprep.subr.bf16.mxu0 0
    %5079 = vmatpush1.bf16.msra.mxu0 %v3675
    %5080 = vmatprep.subr.bf16.mxu0 0
    %5081 = vmatpush1.bf16.msra.mxu0 %v3676
    %5082 = vmatprep.subr.bf16.mxu0 0
    %5083 = vmatpush1.bf16.msra.mxu0 %v3677
    %5084 = vmatprep.subr.bf16.mxu0 0
    %5085 = vmatpush1.bf16.msra.mxu0 %v3678
    %5086 = vmatprep.subr.bf16.mxu0 0
    %5087 = vmatpush1.bf16.msra.mxu0 %v3679
    %5088 = vmatprep.subr.bf16.mxu0 0
    %5089 = vmatpush1.bf16.msra.mxu0 %v3680
    %5090 = vmatprep.subr.bf16.mxu0 0
    %5091 = vmatpush1.bf16.msra.mxu0 %v3681
    %5092 = vmatprep.subr.bf16.mxu0 0
    %5093 = vmatpush1.bf16.msra.mxu0 %v3682
    %5094 = vmatprep.subr.bf16.mxu0 0
    %5095 = vmatpush1.bf16.msra.mxu0 %v3683
    %5096 = vmatprep.subr.bf16.mxu0 0
    %5097 = vmatpush1.bf16.msra.mxu0 %v3684
    %5098 = vmatprep.subr.bf16.mxu0 0
    %5099 = vmatpush1.bf16.msra.mxu0 %v3685
    %5100 = vmatprep.subr.bf16.mxu0 0
    %5101 = vmatpush1.bf16.msra.mxu0 %v3686
    %5102 = vmatprep.subr.bf16.mxu0 0
    %5103 = vmatpush1.bf16.msra.mxu0 %v3687
    %5104 = vmatprep.mubr.bf16.mxu0 %v5069
    %5105 = vmatmul.mubr.bf16.gmra.mrb[0].mxu0 %v5068
    %v5106 = vpop.f32.mrb[0].mxu0
    %v5107 = vadd.f32 0.0, %v5106
    %v5108 = vpop.f32.mrb[0].mxu0
    %v5109 = vpop.f32.mrb[0].mxu0
    %v5110 = vpop.f32.mrb[0].mxu0
    %5111 = vdwg.mxu0
    %v5112 = vadd.f32 %v5067, %v5107
    %v5113 = vrot.slane %v4658, 5
    %v5114 = vrot.slane %v4661, 5
    %5117 = vmatprep.subr.bf16.mxu0 0
    %5118 = vmatpush1.bf16.msra.mxu0 %v3846
    %5119 = vmatprep.subr.bf16.mxu0 0
    %5120 = vmatpush1.bf16.msra.mxu0 %v3847
    %5121 = vmatprep.subr.bf16.mxu0 0
    %5122 = vmatpush1.bf16.msra.mxu0 %v3848
    %5123 = vmatprep.subr.bf16.mxu0 0
    %5124 = vmatpush1.bf16.msra.mxu0 %v3849
    %5125 = vmatprep.subr.bf16.mxu0 0
    %5126 = vmatpush1.bf16.msra.mxu0 %v3850
    %5127 = vmatprep.subr.bf16.mxu0 0
    %5128 = vmatpush1.bf16.msra.mxu0 %v3851
    %5129 = vmatprep.subr.bf16.mxu0 0
    %5130 = vmatpush1.bf16.msra.mxu0 %v3852
    %5131 = vmatprep.subr.bf16.mxu0 0
    %5132 = vmatpush1.bf16.msra.mxu0 %v3853
    %5133 = vmatprep.subr.bf16.mxu0 0
    %5134 = vmatpush1.bf16.msra.mxu0 %v3854
    %5135 = vmatprep.subr.bf16.mxu0 0
    %5136 = vmatpush1.bf16.msra.mxu0 %v3855
    %5137 = vmatprep.subr.bf16.mxu0 0
    %5138 = vmatpush1.bf16.msra.mxu0 %v3856
    %5139 = vmatprep.subr.bf16.mxu0 0
    %5140 = vmatpush1.bf16.msra.mxu0 %v3857
    %5141 = vmatprep.subr.bf16.mxu0 0
    %5142 = vmatpush1.bf16.msra.mxu0 %v3858
    %5143 = vmatprep.subr.bf16.mxu0 0
    %5144 = vmatpush1.bf16.msra.mxu0 %v3859
    %5145 = vmatprep.subr.bf16.mxu0 0
    %5146 = vmatpush1.bf16.msra.mxu0 %v3860
    %5147 = vmatprep.subr.bf16.mxu0 0
    %5148 = vmatpush1.bf16.msra.mxu0 %v3861
    %5149 = vmatprep.mubr.bf16.mxu0 %v5114
    %5150 = vmatmul.mubr.bf16.gmra.mrb[0].mxu0 %v5113
    %v5151 = vpop.f32.mrb[0].mxu0
    %v5152 = vadd.f32 0.0, %v5151
    %v5153 = vpop.f32.mrb[0].mxu0
    %v5154 = vpop.f32.mrb[0].mxu0
    %v5155 = vpop.f32.mrb[0].mxu0
    %5156 = vdwg.mxu0
    %v5157 = vadd.f32 %v5112, %v5152
    %v5158 = vrot.slane %v1827, 6
    %v5159 = vrot.slane %v1828, 6
    %5162 = vmatprep.subr.bf16.mxu0 0
    %5163 = vmatpush1.bf16.msra.mxu0 %v4020
    %5164 = vmatprep.subr.bf16.mxu0 0
    %5165 = vmatpush1.bf16.msra.mxu0 %v4021
    %5166 = vmatprep.subr.bf16.mxu0 0
    %5167 = vmatpush1.bf16.msra.mxu0 %v4022
    %5168 = vmatprep.subr.bf16.mxu0 0
    %5169 = vmatpush1.bf16.msra.mxu0 %v4023
    %5170 = vmatprep.subr.bf16.mxu0 0
    %5171 = vmatpush1.bf16.msra.mxu0 %v4024
    %5172 = vmatprep.subr.bf16.mxu0 0
    %5173 = vmatpush1.bf16.msra.mxu0 %v4025
    %5174 = vmatprep.subr.bf16.mxu0 0
    %5175 = vmatpush1.bf16.msra.mxu0 %v4026
    %5176 = vmatprep.subr.bf16.mxu0 0
    %5177 = vmatpush1.bf16.msra.mxu0 %v4027
    %5178 = vmatprep.subr.bf16.mxu0 0
    %5179 = vmatpush1.bf16.msra.mxu0 %v4028
    %5180 = vmatprep.subr.bf16.mxu0 0
    %5181 = vmatpush1.bf16.msra.mxu0 %v4029
    %5182 = vmatprep.subr.bf16.mxu0 0
    %5183 = vmatpush1.bf16.msra.mxu0 %v4030
    %5184 = vmatprep.subr.bf16.mxu0 0
    %5185 = vmatpush1.bf16.msra.mxu0 %v4031
    %5186 = vmatprep.subr.bf16.mxu0 0
    %5187 = vmatpush1.bf16.msra.mxu0 %v4032
    %5188 = vmatprep.subr.bf16.mxu0 0
    %5189 = vmatpush1.bf16.msra.mxu0 %v4033
    %5190 = vmatprep.subr.bf16.mxu0 0
    %5191 = vmatpush1.bf16.msra.mxu0 %v4034
    %5192 = vmatprep.subr.bf16.mxu0 0
    %5193 = vmatpush1.bf16.msra.mxu0 %v4035
    %5194 = vmatprep.mubr.bf16.mxu0 %v5159
    %5195 = vmatmul.mubr.bf16.gmra.mrb[0].mxu0 %v5158
    %v5196 = vpop.f32.mrb[0].mxu0
    %v5197 = vadd.f32 0.0, %v5196
    %v5198 = vpop.f32.mrb[0].mxu0
    %v5199 = vpop.f32.mrb[0].mxu0
    %v5200 = vpop.f32.mrb[0].mxu0
    %5201 = vdwg.mxu0
    %v5202 = vadd.f32 %v5157, %v5197
    %v5203 = vrot.slane %v4658, 6
    %v5204 = vrot.slane %v4661, 6
    %5207 = vmatprep.subr.bf16.mxu0 0
    %5208 = vmatpush1.bf16.msra.mxu0 %v4194
    %5209 = vmatprep.subr.bf16.mxu0 0
    %5210 = vmatpush1.bf16.msra.mxu0 %v4195
    %5211 = vmatprep.subr.bf16.mxu0 0
    %5212 = vmatpush1.bf16.msra.mxu0 %v4196
    %5213 = vmatprep.subr.bf16.mxu0 0
    %5214 = vmatpush1.bf16.msra.mxu0 %v4197
    %5215 = vmatprep.subr.bf16.mxu0 0
    %5216 = vmatpush1.bf16.msra.mxu0 %v4198
    %5217 = vmatprep.subr.bf16.mxu0 0
    %5218 = vmatpush1.bf16.msra.mxu0 %v4199
    %5219 = vmatprep.subr.bf16.mxu0 0
    %5220 = vmatpush1.bf16.msra.mxu0 %v4200
    %5221 = vmatprep.subr.bf16.mxu0 0
    %5222 = vmatpush1.bf16.msra.mxu0 %v4201
    %5223 = vmatprep.subr.bf16.mxu0 0
    %5224 = vmatpush1.bf16.msra.mxu0 %v4202
    %5225 = vmatprep.subr.bf16.mxu0 0
    %5226 = vmatpush1.bf16.msra.mxu0 %v4203
    %5227 = vmatprep.subr.bf16.mxu0 0
    %5228 = vmatpush1.bf16.msra.mxu0 %v4204
    %5229 = vmatprep.subr.bf16.mxu0 0
    %5230 = vmatpush1.bf16.msra.mxu0 %v4205
    %5231 = vmatprep.subr.bf16.mxu0 0
    %5232 = vmatpush1.bf16.msra.mxu0 %v4206
    %5233 = vmatprep.subr.bf16.mxu0 0
    %5234 = vmatpush1.bf16.msra.mxu0 %v4207
    %5235 = vmatprep.subr.bf16.mxu0 0
    %5236 = vmatpush1.bf16.msra.mxu0 %v4208
    %5237 = vmatprep.subr.bf16.mxu0 0
    %5238 = vmatpush1.bf16.msra.mxu0 %v4209
    %5239 = vmatprep.mubr.bf16.mxu0 %v5204
    %5240 = vmatmul.mubr.bf16.gmra.mrb[0].mxu0 %v5203
    %v5241 = vpop.f32.mrb[0].mxu0
    %v5242 = vadd.f32 0.0, %v5241
    %v5243 = vpop.f32.mrb[0].mxu0
    %v5244 = vpop.f32.mrb[0].mxu0
    %v5245 = vpop.f32.mrb[0].mxu0
    %5246 = vdwg.mxu0
    %v5247 = vadd.f32 %v5202, %v5242
    %v5248 = vrot.slane %v1827, 7
    %v5249 = vrot.slane %v1828, 7
    %5252 = vmatprep.subr.bf16.mxu0 0
    %5253 = vmatpush1.bf16.msra.mxu0 %v4368
    %5254 = vmatprep.subr.bf16.mxu0 0
    %5255 = vmatpush1.bf16.msra.mxu0 %v4369
    %5256 = vmatprep.subr.bf16.mxu0 0
    %5257 = vmatpush1.bf16.msra.mxu0 %v4370
    %5258 = vmatprep.subr.bf16.mxu0 0
    %5259 = vmatpush1.bf16.msra.mxu0 %v4371
    %5260 = vmatprep.subr.bf16.mxu0 0
    %5261 = vmatpush1.bf16.msra.mxu0 %v4372
    %5262 = vmatprep.subr.bf16.mxu0 0
    %5263 = vmatpush1.bf16.msra.mxu0 %v4373
    %5264 = vmatprep.subr.bf16.mxu0 0
    %5265 = vmatpush1.bf16.msra.mxu0 %v4374
    %5266 = vmatprep.subr.bf16.mxu0 0
    %5267 = vmatpush1.bf16.msra.mxu0 %v4375
    %5268 = vmatprep.subr.bf16.mxu0 0
    %5269 = vmatpush1.bf16.msra.mxu0 %v4376
    %5270 = vmatprep.subr.bf16.mxu0 0
    %5271 = vmatpush1.bf16.msra.mxu0 %v4377
    %5272 = vmatprep.subr.bf16.mxu0 0
    %5273 = vmatpush1.bf16.msra.mxu0 %v4378
    %5274 = vmatprep.subr.bf16.mxu0 0
    %5275 = vmatpush1.bf16.msra.mxu0 %v4379
    %5276 = vmatprep.subr.bf16.mxu0 0
    %5277 = vmatpush1.bf16.msra.mxu0 %v4380
    %5278 = vmatprep.subr.bf16.mxu0 0
    %5279 = vmatpush1.bf16.msra.mxu0 %v4381
    %5280 = vmatprep.subr.bf16.mxu0 0
    %5281 = vmatpush1.bf16.msra.mxu0 %v4382
    %5282 = vmatprep.subr.bf16.mxu0 0
    %5283 = vmatpush1.bf16.msra.mxu0 %v4383
    %5284 = vmatprep.mubr.bf16.mxu0 %v5249
    %5285 = vmatmul.mubr.bf16.gmra.mrb[0].mxu0 %v5248
    %v5286 = vpop.f32.mrb[0].mxu0
    %v5287 = vadd.f32 0.0, %v5286
    %v5288 = vpop.f32.mrb[0].mxu0
    %v5289 = vpop.f32.mrb[0].mxu0
    %v5290 = vpop.f32.mrb[0].mxu0
    %5291 = vdwg.mxu0
    %v5292 = vadd.f32 %v5247, %v5287
    %v5293 = vrot.slane %v4658, 7
    %v5294 = vrot.slane %v4661, 7
    %5297 = vmatprep.subr.bf16.mxu0 0
    %5298 = vmatpush1.bf16.msra.mxu0 %v4542
    %5299 = vmatprep.subr.bf16.mxu0 0
    %5300 = vmatpush1.bf16.msra.mxu0 %v4543
    %5301 = vmatprep.subr.bf16.mxu0 0
    %5302 = vmatpush1.bf16.msra.mxu0 %v4544
    %5303 = vmatprep.subr.bf16.mxu0 0
    %5304 = vmatpush1.bf16.msra.mxu0 %v4545
    %5305 = vmatprep.subr.bf16.mxu0 0
    %5306 = vmatpush1.bf16.msra.mxu0 %v4546
    %5307 = vmatprep.subr.bf16.mxu0 0
    %5308 = vmatpush1.bf16.msra.mxu0 %v4547
    %5309 = vmatprep.subr.bf16.mxu0 0
    %5310 = vmatpush1.bf16.msra.mxu0 %v4548
    %5311 = vmatprep.subr.bf16.mxu0 0
    %5312 = vmatpush1.bf16.msra.mxu0 %v4549
    %5313 = vmatprep.subr.bf16.mxu0 0
    %5314 = vmatpush1.bf16.msra.mxu0 %v4550
    %5315 = vmatprep.subr.bf16.mxu0 0
    %5316 = vmatpush1.bf16.msra.mxu0 %v4551
    %5317 = vmatprep.subr.bf16.mxu0 0
    %5318 = vmatpush1.bf16.msra.mxu0 %v4552
    %5319 = vmatprep.subr.bf16.mxu0 0
    %5320 = vmatpush1.bf16.msra.mxu0 %v4553
    %5321 = vmatprep.subr.bf16.mxu0 0
    %5322 = vmatpush1.bf16.msra.mxu0 %v4554
    %5323 = vmatprep.subr.bf16.mxu0 0
    %5324 = vmatpush1.bf16.msra.mxu0 %v4555
    %5325 = vmatprep.subr.bf16.mxu0 0
    %5326 = vmatpush1.bf16.msra.mxu0 %v4556
    %5327 = vmatprep.subr.bf16.mxu0 0
    %5328 = vmatpush1.bf16.msra.mxu0 %v4557
    %5329 = vmatprep.mubr.bf16.mxu0 %v5294
    %5330 = vmatmul.mubr.bf16.gmra.mrb[0].mxu0 %v5293
    %v5331 = vpop.f32.mrb[0].mxu0
    %v5332 = vadd.f32 0.0, %v5331
    %v5333 = vpop.f32.mrb[0].mxu0
    %v5334 = vpop.f32.mrb[0].mxu0
    %v5335 = vpop.f32.mrb[0].mxu0
    %5336 = vdwg.mxu0
    %v5337 = vadd.f32 %v5292, %v5332
    %v5338 = vmax.f32 %v5337, 0.0
    %v5340 = vlaneseq
    %v5341 = vshrl.u32 %v5340, 7
    %v5342 = vsub.s32 0, %v5341
    %v5343 = vrot.slane %v5338, %v5342
    %vm5345 = vcmask 1040384
    %v5346 = vsel %vm5345, %v4615, %v5343
    %v5347 = vpack.c.bf16 %v5346, %v5346
    %v5348 = vld [vmem:[%s7] sm:$0xf]
    %v5349 = vld [vmem:[%s7 + $0x4] sm:$0xf]
    %v5350 = vld [vmem:[%s7 + $0x8] sm:$0xf]
    %v5351 = vld [vmem:[%s7 + $0xc] sm:$0xf]
    %v5352 = vld [vmem:[%s8] sm:$0x1]
    %v5354 = vlaneseq
    %v5355 = vshrl.u32 %v5354, 7
    %v5356 = vsub.s32 0, %v5355
    %v5357 = vrot.slane %v5352, %v5356
    %v5363 = vunpack.c.l.b16 %v5348
    %v5364 = vunpack.c.l.b16 %v5349
    %v5365 = vunpack.c.l.b16 %v5350
    %v5366 = vunpack.c.l.b16 %v5351
    %v5367 = vpack.c.b16 %v5364, %v5363
    %v5368 = vpack.c.b16 %v5366, %v5365
    %vm5371 = vcmask 261120
    %v5373 = vsel %vm5371, %v5347, 0
    %5375 = vmatprep.subr.bf16.mxu0 0
    %5376 = vmatpush1.bf16.msra.mxu0 %v5367
    %5377 = vmatprep.subr.bf16.mxu0 0
    %5378 = vmatpush1.bf16.msra.mxu0 %v5368
    %5379 = vmatprep.subr.bf16.mxu0 0
    %5380 = vmatpush1.bf16.msra.mxu0 0
    %5381 = vmatprep.subr.bf16.mxu0 0
    %5382 = vmatpush1.bf16.msra.mxu0 0
    %5383 = vmatprep.subr.bf16.mxu0 0
    %5384 = vmatpush1.bf16.msra.mxu0 0
    %5385 = vmatprep.subr.bf16.mxu0 0
    %5386 = vmatpush1.bf16.msra.mxu0 0
    %5387 = vmatprep.subr.bf16.mxu0 0
    %5388 = vmatpush1.bf16.msra.mxu0 0
    %5389 = vmatprep.subr.bf16.mxu0 0
    %5390 = vmatpush1.bf16.msra.mxu0 0
    %5391 = vmatprep.subr.bf16.mxu0 0
    %5392 = vmatpush1.bf16.msra.mxu0 0
    %5393 = vmatprep.subr.bf16.mxu0 0
    %5394 = vmatpush1.bf16.msra.mxu0 0
    %5395 = vmatprep.subr.bf16.mxu0 0
    %5396 = vmatpush1.bf16.msra.mxu0 0
    %5397 = vmatprep.subr.bf16.mxu0 0
    %5398 = vmatpush1.bf16.msra.mxu0 0
    %5399 = vmatprep.subr.bf16.mxu0 0
    %5400 = vmatpush1.bf16.msra.mxu0 0
    %5401 = vmatprep.subr.bf16.mxu0 0
    %5402 = vmatpush1.bf16.msra.mxu0 0
    %5403 = vmatprep.subr.bf16.mxu0 0
    %5404 = vmatpush1.bf16.msra.mxu0 0
    %5405 = vmatprep.subr.bf16.mxu0 0
    %5406 = vmatpush1.bf16.msra.mxu0 0
    %5407 = vmatprep.mubr.bf16.mxu0 0
    %5408 = vmatmul.mubr.bf16.gmra.mrb[0].mxu0 %v5373
    %v5409 = vpop.f32.mrb[0].mxu0
    %v5410 = vadd.f32 %v5357, %v5409
    %v5411 = vpop.f32.mrb[0].mxu0
    %v5412 = vpop.f32.mrb[0].mxu0
    %v5413 = vpop.f32.mrb[0].mxu0
    %5414 = vdwg.mxu0
    %v5415 = vmax.f32 %v5410, 0.0
    %v5416 = vld [vmem:[%s1] sm:$0x3]
    %v5417 = vld [vmem:[%s2] sm:$0x3]
    %5419 = vset.pattern.permute.xlu0 0
    %5420 = vperm.xlu0 %5419, %v5417
    %v5421 = vpop.permute.xlu0 %5420
    %v5423 = vmul.f32 %v5416, %v5421
    %v5424 = vpack.c.bf16 %v5415, %v5415
    %v5425 = vpack.c.bf16 %v5423, %v5423
    %v5426 = vld [vmem:[%s9] sm:$0xf]
    %v5427 = vld [vmem:[%s9 + $0x4] sm:$0xf]
    %v5428 = vld [vmem:[%s9 + $0x8] sm:$0xf]
    %v5429 = vld [vmem:[%s9 + $0xc] sm:$0xf]
    %v5430 = vld [vmem:[%s12] sm:$0xf]
    %v5431 = vld [vmem:[%s12 + $0x4] sm:$0xf]
    %v5432 = vld [vmem:[%s12 + $0x8] sm:$0xf]
    %v5433 = vld [vmem:[%s12 + $0xc] sm:$0xf]
    %v5438 = vunpack.c.l.b16 %v5430
    %v5439 = vunpack.c.l.b16 %v5431
    %v5440 = vunpack.c.l.b16 %v5432
    %v5441 = vunpack.c.l.b16 %v5433
    %v5442 = vpack.c.b16 %v5439, %v5438
    %v5443 = vpack.c.b16 %v5441, %v5440
    %v5447 = vsel %vm5371, %v5425, 0
    %5449 = vmatprep.subr.bf16.mxu0 0
    %5450 = vmatpush1.bf16.msra.mxu0 %v5442
    %5451 = vmatprep.subr.bf16.mxu0 0
    %5452 = vmatpush1.bf16.msra.mxu0 %v5443
    %5453 = vmatprep.subr.bf16.mxu0 0
    %5454 = vmatpush1.bf16.msra.mxu0 0
    %5455 = vmatprep.subr.bf16.mxu0 0
    %5456 = vmatpush1.bf16.msra.mxu0 0
    %5457 = vmatprep.subr.bf16.mxu0 0
    %5458 = vmatpush1.bf16.msra.mxu0 0
    %5459 = vmatprep.subr.bf16.mxu0 0
    %5460 = vmatpush1.bf16.msra.mxu0 0
    %5461 = vmatprep.subr.bf16.mxu0 0
    %5462 = vmatpush1.bf16.msra.mxu0 0
    %5463 = vmatprep.subr.bf16.mxu0 0
    %5464 = vmatpush1.bf16.msra.mxu0 0
    %5465 = vmatprep.subr.bf16.mxu0 0
    %5466 = vmatpush1.bf16.msra.mxu0 0
    %5467 = vmatprep.subr.bf16.mxu0 0
    %5468 = vmatpush1.bf16.msra.mxu0 0
    %5469 = vmatprep.subr.bf16.mxu0 0
    %5470 = vmatpush1.bf16.msra.mxu0 0
    %5471 = vmatprep.subr.bf16.mxu0 0
    %5472 = vmatpush1.bf16.msra.mxu0 0
    %5473 = vmatprep.subr.bf16.mxu0 0
    %5474 = vmatpush1.bf16.msra.mxu0 0
    %5475 = vmatprep.subr.bf16.mxu0 0
    %5476 = vmatpush1.bf16.msra.mxu0 0
    %5477 = vmatprep.subr.bf16.mxu0 0
    %5478 = vmatpush1.bf16.msra.mxu0 0
    %5479 = vmatprep.subr.bf16.mxu0 0
    %5480 = vmatpush1.bf16.msra.mxu0 0
    %5481 = vmatprep.mubr.bf16.mxu0 0
    %5482 = vmatmul.mubr.bf16.gmra.mrb[0].mxu0 %v5447
    %v5483 = vpop.f32.mrb[0].mxu0
    %v5484 = vadd.f32 0.0, %v5483
    %v5485 = vpop.f32.mrb[0].mxu0
    %v5486 = vpop.f32.mrb[0].mxu0
    %v5487 = vpop.f32.mrb[0].mxu0
    %5488 = vdwg.mxu0
    %v5493 = vunpack.c.l.b16 %v5426
    %v5494 = vunpack.c.l.b16 %v5427
    %v5495 = vunpack.c.l.b16 %v5428
    %v5496 = vunpack.c.l.b16 %v5429
    %v5497 = vpack.c.b16 %v5494, %v5493
    %v5498 = vpack.c.b16 %v5496, %v5495
    %v5502 = vsel %vm5371, %v5424, 0
    %5504 = vmatprep.subr.bf16.mxu0 0
    %5505 = vmatpush1.bf16.msra.mxu0 %v5497
    %5506 = vmatprep.subr.bf16.mxu0 0
    %5507 = vmatpush1.bf16.msra.mxu0 %v5498
    %5508 = vmatprep.subr.bf16.mxu0 0
    %5509 = vmatpush1.bf16.msra.mxu0 0
    %5510 = vmatprep.subr.bf16.mxu0 0
    %5511 = vmatpush1.bf16.msra.mxu0 0
    %5512 = vmatprep.subr.bf16.mxu0 0
    %5513 = vmatpush1.bf16.msra.mxu0 0
    %5514 = vmatprep.subr.bf16.mxu0 0
    %5515 = vmatpush1.bf16.msra.mxu0 0
    %5516 = vmatprep.subr.bf16.mxu0 0
    %5517 = vmatpush1.bf16.msra.mxu0 0
    %5518 = vmatprep.subr.bf16.mxu0 0
    %5519 = vmatpush1.bf16.msra.mxu0 0
    %5520 = vmatprep.subr.bf16.mxu0 0
    %5521 = vmatpush1.bf16.msra.mxu0 0
    %5522 = vmatprep.subr.bf16.mxu0 0
    %5523 = vmatpush1.bf16.msra.mxu0 0
    %5524 = vmatprep.subr.bf16.mxu0 0
    %5525 = vmatpush1.bf16.msra.mxu0 0
    %5526 = vmatprep.subr.bf16.mxu0 0
    %5527 = vmatpush1.bf16.msra.mxu0 0
    %5528 = vmatprep.subr.bf16.mxu0 0
    %5529 = vmatpush1.bf16.msra.mxu0 0
    %5530 = vmatprep.subr.bf16.mxu0 0
    %5531 = vmatpush1.bf16.msra.mxu0 0
    %5532 = vmatprep.subr.bf16.mxu0 0
    %5533 = vmatpush1.bf16.msra.mxu0 0
    %5534 = vmatprep.subr.bf16.mxu0 0
    %5535 = vmatpush1.bf16.msra.mxu0 0
    %5536 = vmatprep.mubr.bf16.mxu0 0
    %5537 = vmatmul.mubr.bf16.gmra.mrb[0].mxu0 %v5502
    %v5538 = vpop.f32.mrb[0].mxu0
    %v5539 = vadd.f32 %v5484, %v5538
    %v5540 = vpop.f32.mrb[0].mxu0
    %v5541 = vpop.f32.mrb[0].mxu0
    %v5542 = vpop.f32.mrb[0].mxu0
    %5543 = vdwg.mxu0
    %v5544 = vld [vmem:[%s15] sm:$0x1]
    %v5546 = vlaneseq
    %v5547 = vshrl.u32 %v5546, 7
    %v5548 = vsub.s32 0, %v5547
    %v5549 = vrot.slane %v5544, %v5548
    %v5551 = vadd.f32 %v5539, %v5549
    %v5552 = vxor.u32 %v5551, 2147483648
    %v5553 = vmul.f32 %v5552, 1.442695
    %v5554 = vpow.pop %v5553
    %v5555 = vadd.f32 %v5554, 1.0
    %v5556 = vrcp.pop %v5555
    %v5557 = vmul.f32 1.0, %v5556
    %v5558 = vld [vmem:[%s10] sm:$0xf]
    %v5559 = vld [vmem:[%s10 + $0x4] sm:$0xf]
    %v5560 = vld [vmem:[%s10 + $0x8] sm:$0xf]
    %v5561 = vld [vmem:[%s10 + $0xc] sm:$0xf]
    %v5562 = vld [vmem:[%s13] sm:$0xf]
    %v5563 = vld [vmem:[%s13 + $0x4] sm:$0xf]
    %v5564 = vld [vmem:[%s13 + $0x8] sm:$0xf]
    %v5565 = vld [vmem:[%s13 + $0xc] sm:$0xf]
    %v5570 = vunpack.c.l.b16 %v5562
    %v5571 = vunpack.c.l.b16 %v5563
    %v5572 = vunpack.c.l.b16 %v5564
    %v5573 = vunpack.c.l.b16 %v5565
    %v5574 = vpack.c.b16 %v5571, %v5570
    %v5575 = vpack.c.b16 %v5573, %v5572
    %5578 = vmatprep.subr.bf16.mxu0 0
    %5579 = vmatpush1.bf16.msra.mxu0 %v5574
    %5580 = vmatprep.subr.bf16.mxu0 0
    %5581 = vmatpush1.bf16.msra.mxu0 %v5575
    %5582 = vmatprep.subr.bf16.mxu0 0
    %5583 = vmatpush1.bf16.msra.mxu0 0
    %5584 = vmatprep.subr.bf16.mxu0 0
    %5585 = vmatpush1.bf16.msra.mxu0 0
    %5586 = vmatprep.subr.bf16.mxu0 0
    %5587 = vmatpush1.bf16.msra.mxu0 0
    %5588 = vmatprep.subr.bf16.mxu0 0
    %5589 = vmatpush1.bf16.msra.mxu0 0
    %5590 = vmatprep.subr.bf16.mxu0 0
    %5591 = vmatpush1.bf16.msra.mxu0 0
    %5592 = vmatprep.subr.bf16.mxu0 0
    %5593 = vmatpush1.bf16.msra.mxu0 0
    %5594 = vmatprep.subr.bf16.mxu0 0
    %5595 = vmatpush1.bf16.msra.mxu0 0
    %5596 = vmatprep.subr.bf16.mxu0 0
    %5597 = vmatpush1.bf16.msra.mxu0 0
    %5598 = vmatprep.subr.bf16.mxu0 0
    %5599 = vmatpush1.bf16.msra.mxu0 0
    %5600 = vmatprep.subr.bf16.mxu0 0
    %5601 = vmatpush1.bf16.msra.mxu0 0
    %5602 = vmatprep.subr.bf16.mxu0 0
    %5603 = vmatpush1.bf16.msra.mxu0 0
    %5604 = vmatprep.subr.bf16.mxu0 0
    %5605 = vmatpush1.bf16.msra.mxu0 0
    %5606 = vmatprep.subr.bf16.mxu0 0
    %5607 = vmatpush1.bf16.msra.mxu0 0
    %5608 = vmatprep.subr.bf16.mxu0 0
    %5609 = vmatpush1.bf16.msra.mxu0 0
    %5610 = vmatprep.mubr.bf16.mxu0 0
    %5611 = vmatmul.mubr.bf16.gmra.mrb[0].mxu0 %v5447
    %v5612 = vpop.f32.mrb[0].mxu0
    %v5613 = vadd.f32 0.0, %v5612
    %v5614 = vpop.f32.mrb[0].mxu0
    %v5615 = vpop.f32.mrb[0].mxu0
    %v5616 = vpop.f32.mrb[0].mxu0
    %5617 = vdwg.mxu0
    %v5622 = vunpack.c.l.b16 %v5558
    %v5623 = vunpack.c.l.b16 %v5559
    %v5624 = vunpack.c.l.b16 %v5560
    %v5625 = vunpack.c.l.b16 %v5561
    %v5626 = vpack.c.b16 %v5623, %v5622
    %v5627 = vpack.c.b16 %v5625, %v5624
    %5630 = vmatprep.subr.bf16.mxu0 0
    %5631 = vmatpush1.bf16.msra.mxu0 %v5626
    %5632 = vmatprep.subr.bf16.mxu0 0
    %5633 = vmatpush1.bf16.msra.mxu0 %v5627
    %5634 = vmatprep.subr.bf16.mxu0 0
    %5635 = vmatpush1.bf16.msra.mxu0 0
    %5636 = vmatprep.subr.bf16.mxu0 0
    %5637 = vmatpush1.bf16.msra.mxu0 0
    %5638 = vmatprep.subr.bf16.mxu0 0
    %5639 = vmatpush1.bf16.msra.mxu0 0
    %5640 = vmatprep.subr.bf16.mxu0 0
    %5641 = vmatpush1.bf16.msra.mxu0 0
    %5642 = vmatprep.subr.bf16.mxu0 0
    %5643 = vmatpush1.bf16.msra.mxu0 0
    %5644 = vmatprep.subr.bf16.mxu0 0
    %5645 = vmatpush1.bf16.msra.mxu0 0
    %5646 = vmatprep.subr.bf16.mxu0 0
    %5647 = vmatpush1.bf16.msra.mxu0 0
    %5648 = vmatprep.subr.bf16.mxu0 0
    %5649 = vmatpush1.bf16.msra.mxu0 0
    %5650 = vmatprep.subr.bf16.mxu0 0
    %5651 = vmatpush1.bf16.msra.mxu0 0
    %5652 = vmatprep.subr.bf16.mxu0 0
    %5653 = vmatpush1.bf16.msra.mxu0 0
    %5654 = vmatprep.subr.bf16.mxu0 0
    %5655 = vmatpush1.bf16.msra.mxu0 0
    %5656 = vmatprep.subr.bf16.mxu0 0
    %5657 = vmatpush1.bf16.msra.mxu0 0
    %5658 = vmatprep.subr.bf16.mxu0 0
    %5659 = vmatpush1.bf16.msra.mxu0 0
    %5660 = vmatprep.subr.bf16.mxu0 0
    %5661 = vmatpush1.bf16.msra.mxu0 0
    %5662 = vmatprep.mubr.bf16.mxu0 0
    %5663 = vmatmul.mubr.bf16.gmra.mrb[0].mxu0 %v5502
    %v5664 = vpop.f32.mrb[0].mxu0
    %v5665 = vadd.f32 %v5613, %v5664
    %v5666 = vpop.f32.mrb[0].mxu0
    %v5667 = vpop.f32.mrb[0].mxu0
    %v5668 = vpop.f32.mrb[0].mxu0
    %5669 = vdwg.mxu0
    %v5670 = vld [vmem:[%s16] sm:$0x1]
    %v5672 = vlaneseq
    %v5673 = vshrl.u32 %v5672, 7
    %v5674 = vsub.s32 0, %v5673
    %v5675 = vrot.slane %v5670, %v5674
    %v5677 = vadd.f32 %v5665, %v5675
    %v5678 = vxor.u32 %v5677, 2147483648
    %v5679 = vmul.f32 %v5678, 1.442695
    %v5680 = vpow.pop %v5679
    %v5681 = vadd.f32 %v5680, 1.0
    %v5682 = vrcp.pop %v5681
    %v5683 = vmul.f32 1.0, %v5682
    %v5684 = vld [vmem:[%s11] sm:$0xf]
    %v5685 = vld [vmem:[%s11 + $0x4] sm:$0xf]
    %v5686 = vld [vmem:[%s11 + $0x8] sm:$0xf]
    %v5687 = vld [vmem:[%s11 + $0xc] sm:$0xf]
    %v5688 = vld [vmem:[%s17] sm:$0x1]
    %v5690 = vlaneseq
    %v5691 = vshrl.u32 %v5690, 7
    %v5692 = vsub.s32 0, %v5691
    %v5693 = vrot.slane %v5688, %v5692
    %v5699 = vunpack.c.l.b16 %v5684
    %v5700 = vunpack.c.l.b16 %v5685
    %v5701 = vunpack.c.l.b16 %v5686
    %v5702 = vunpack.c.l.b16 %v5687
    %v5703 = vpack.c.b16 %v5700, %v5699
    %v5704 = vpack.c.b16 %v5702, %v5701
    %5707 = vmatprep.subr.bf16.mxu0 0
    %5708 = vmatpush1.bf16.msra.mxu0 %v5703
    %5709 = vmatprep.subr.bf16.mxu0 0
    %5710 = vmatpush1.bf16.msra.mxu0 %v5704
    %5711 = vmatprep.subr.bf16.mxu0 0
    %5712 = vmatpush1.bf16.msra.mxu0 0
    %5713 = vmatprep.subr.bf16.mxu0 0
    %5714 = vmatpush1.bf16.msra.mxu0 0
    %5715 = vmatprep.subr.bf16.mxu0 0
    %5716 = vmatpush1.bf16.msra.mxu0 0
    %5717 = vmatprep.subr.bf16.mxu0 0
    %5718 = vmatpush1.bf16.msra.mxu0 0
    %5719 = vmatprep.subr.bf16.mxu0 0
    %5720 = vmatpush1.bf16.msra.mxu0 0
    %5721 = vmatprep.subr.bf16.mxu0 0
    %5722 = vmatpush1.bf16.msra.mxu0 0
    %5723 = vmatprep.subr.bf16.mxu0 0
    %5724 = vmatpush1.bf16.msra.mxu0 0
    %5725 = vmatprep.subr.bf16.mxu0 0
    %5726 = vmatpush1.bf16.msra.mxu0 0
    %5727 = vmatprep.subr.bf16.mxu0 0
    %5728 = vmatpush1.bf16.msra.mxu0 0
    %5729 = vmatprep.subr.bf16.mxu0 0
    %5730 = vmatpush1.bf16.msra.mxu0 0
    %5731 = vmatprep.subr.bf16.mxu0 0
    %5732 = vmatpush1.bf16.msra.mxu0 0
    %5733 = vmatprep.subr.bf16.mxu0 0
    %5734 = vmatpush1.bf16.msra.mxu0 0
    %5735 = vmatprep.subr.bf16.mxu0 0
    %5736 = vmatpush1.bf16.msra.mxu0 0
    %5737 = vmatprep.subr.bf16.mxu0 0
    %5738 = vmatpush1.bf16.msra.mxu0 0
    %5739 = vmatprep.mubr.bf16.mxu0 0
    %5740 = vmatmul.mubr.bf16.gmra.mrb[0].mxu0 %v5502
    %v5741 = vpop.f32.mrb[0].mxu0
    %v5742 = vadd.f32 %v5693, %v5741
    %v5743 = vpop.f32.mrb[0].mxu0
    %v5744 = vpop.f32.mrb[0].mxu0
    %v5745 = vpop.f32.mrb[0].mxu0
    %5746 = vdwg.mxu0
    %v5747 = vld [vmem:[%s14] sm:$0xf]
    %v5748 = vld [vmem:[%s14 + $0x4] sm:$0xf]
    %v5749 = vld [vmem:[%s14 + $0x8] sm:$0xf]
    %v5750 = vld [vmem:[%s14 + $0xc] sm:$0xf]
    %v5751 = vld [vmem:[%s18] sm:$0x1]
    %v5753 = vlaneseq
    %v5754 = vshrl.u32 %v5753, 7
    %v5755 = vsub.s32 0, %v5754
    %v5756 = vrot.slane %v5751, %v5755
    %v5762 = vunpack.c.l.b16 %v5747
    %v5763 = vunpack.c.l.b16 %v5748
    %v5764 = vunpack.c.l.b16 %v5749
    %v5765 = vunpack.c.l.b16 %v5750
    %v5766 = vpack.c.b16 %v5763, %v5762
    %v5767 = vpack.c.b16 %v5765, %v5764
    %5770 = vmatprep.subr.bf16.mxu0 0
    %5771 = vmatpush1.bf16.msra.mxu0 %v5766
    %5772 = vmatprep.subr.bf16.mxu0 0
    %5773 = vmatpush1.bf16.msra.mxu0 %v5767
    %5774 = vmatprep.subr.bf16.mxu0 0
    %5775 = vmatpush1.bf16.msra.mxu0 0
    %5776 = vmatprep.subr.bf16.mxu0 0
    %5777 = vmatpush1.bf16.msra.mxu0 0
    %5778 = vmatprep.subr.bf16.mxu0 0
    %5779 = vmatpush1.bf16.msra.mxu0 0
    %5780 = vmatprep.subr.bf16.mxu0 0
    %5781 = vmatpush1.bf16.msra.mxu0 0
    %5782 = vmatprep.subr.bf16.mxu0 0
    %5783 = vmatpush1.bf16.msra.mxu0 0
    %5784 = vmatprep.subr.bf16.mxu0 0
    %5785 = vmatpush1.bf16.msra.mxu0 0
    %5786 = vmatprep.subr.bf16.mxu0 0
    %5787 = vmatpush1.bf16.msra.mxu0 0
    %5788 = vmatprep.subr.bf16.mxu0 0
    %5789 = vmatpush1.bf16.msra.mxu0 0
    %5790 = vmatprep.subr.bf16.mxu0 0
    %5791 = vmatpush1.bf16.msra.mxu0 0
    %5792 = vmatprep.subr.bf16.mxu0 0
    %5793 = vmatpush1.bf16.msra.mxu0 0
    %5794 = vmatprep.subr.bf16.mxu0 0
    %5795 = vmatpush1.bf16.msra.mxu0 0
    %5796 = vmatprep.subr.bf16.mxu0 0
    %5797 = vmatpush1.bf16.msra.mxu0 0
    %5798 = vmatprep.subr.bf16.mxu0 0
    %5799 = vmatpush1.bf16.msra.mxu0 0
    %5800 = vmatprep.subr.bf16.mxu0 0
    %5801 = vmatpush1.bf16.msra.mxu0 0
    %5802 = vmatprep.mubr.bf16.mxu0 0
    %5803 = vmatmul.mubr.bf16.gmra.mrb[0].mxu0 %v5447
    %v5804 = vpop.f32.mrb[0].mxu0
    %v5805 = vadd.f32 %v5756, %v5804
    %v5806 = vpop.f32.mrb[0].mxu0
    %v5807 = vpop.f32.mrb[0].mxu0
    %v5808 = vpop.f32.mrb[0].mxu0
    %5809 = vdwg.mxu0
    %v5810 = vmul.f32 %v5557, %v5805
    %v5811 = vadd.f32 %v5742, %v5810
    %v5812 = vtanh.pop %v5811
    %v5813 = vsub.f32 1.0, %v5683
    %v5814 = vmul.f32 %v5813, %v5812
    %v5815 = vmul.f32 %v5683, %v5423
    %v5816 = vadd.f32 %v5814, %v5815
    %vm5817 = vcmask 254976
    %5818 = vst.msk [vmem:[#allocation3] sm:$0x3] %vm5817, %v5816
    %v5819 = vsel %vm5817, %v5816, 0.0
    %5820 = vadd.xlane.f32.xlu0 %v5819
    %v5821 = vpop.xlane.xlu0 %5820
    %v5822 = vrcp.pop 32.0
    %v5823 = vmul.f32 %v5821, %v5822
    %v5824 = vsub.f32 %v5816, %v5823
    %v5825 = vmul.f32 %v5824, %v5824
    %v5826 = vsel %vm5817, %v5825, 0.0
    %5827 = vadd.xlane.f32.xlu0 %v5826
    %v5828 = vpop.xlane.xlu0 %5827
    %v5829 = vmul.f32 %v5828, %v5822
    %v5830 = vadd.f32 %v5829, 1e-05
    %v5831 = vrsqrt.pop %v5830
    %v5832 = vmul.f32 %v5824, %v5831
    %v5833 = vld [vmem:[%s19] sm:$0x1]
    %v5835 = vlaneseq
    %v5836 = vshrl.u32 %v5835, 7
    %v5837 = vsub.s32 0, %v5836
    %v5838 = vrot.slane %v5833, %v5837
    %v5840 = vmul.f32 %v5832, %v5838
    %v5841 = vld [vmem:[%s20] sm:$0x1]
    %v5843 = vlaneseq
    %v5844 = vshrl.u32 %v5843, 7
    %v5845 = vsub.s32 0, %v5844
    %v5846 = vrot.slane %v5841, %v5845
    %v5848 = vadd.f32 %v5840, %v5846
    %v5849 = vld [vmem:[%s21] sm:$0x1]
    %v5850 = vmul.f32 %v5848, %v5849
    %vm5851 = vcmask 253952
    %v5852 = vsel %vm5851, %v5850, 0.0
    %5853 = vadd.xlane.f32.xlu0 %v5852
    %v5854 = vpop.xlane.xlu0 %5853
    %v5855 = vld [vmem:[#allocation2] sm:$0x1]
    %v5856 = vadd.f32 %v5854, %v5855
    %vm5857 = vcmask 0
    %5858 = vst.msk [vmem:[#allocation5] sm:$0x1] %vm5857, %v5856
    // Predicated region
    $region94: #{r_critic_forward.1} parent=1 // pred_check
      _
    $region95: #{r_critic_forward.1} parent=1 // pred_check_branch
      %5860 = sbr.rel (0) target = $region97
    $region96: #{r_critic_forward.1} parent=1 // pred_region
      %s5862 = ssub.s32 32, 32
      %5863 = vsyncadd [#allocation4], %s5862
      %s5865 = sshll.u32 [#allocation3], 4
      %s5866 = int_to_ptr.vmem [resolvable:$true] %s5865
      %5868 = dma.vmem_to_hbm [thread:$0]  %s5866, 32, %s23, [#allocation4]
    $region97: #{r_critic_forward.1} parent=1 // pred_fallthru
      _
    // Predicated region
    $region98: #{r_critic_forward.1} parent=1 // pred_check
      _
    $region99: #{r_critic_forward.1} parent=1 // pred_check_branch
      %5870 = sbr.rel (0) target = $region101
    $region100: #{r_critic_forward.1} parent=1 // pred_region
      %s5872 = ssub.s32 16, 16
      %5873 = vsyncadd [#allocation6], %s5872
      %s5875 = sshll.u32 [#allocation5], 4
      %s5876 = int_to_ptr.vmem [resolvable:$true] %s5875
      %5878 = dma.vmem_to_hbm [thread:$0]  %s5876, 16, %s24, [#allocation6]
    $region101: #{r_critic_forward.1} parent=1 // pred_fallthru
      _
    // Predicated region
    $region102: #{r_critic_forward.1} parent=1 // pred_check
      _
    $region103: #{r_critic_forward.1} parent=1 // pred_check_branch
      %5880 = sbr.rel (0) target = $region105
    $region104: #{r_critic_forward.1} parent=1 // pred_region
      %5881 = dma.done [#allocation4], 32
    $region105: #{r_critic_forward.1} parent=1 // pred_fallthru
      _
    // Predicated region
    $region106: #{r_critic_forward.1} parent=1 // pred_check
      _
    $region107: #{r_critic_forward.1} parent=1 // pred_check_branch
      %5883 = sbr.rel (0) target = $region109
    $region108: #{r_critic_forward.1} parent=1 // pred_region
      %5884 = dma.done [#allocation6], 16
    $region109: #{r_critic_forward.1} parent=1 // pred_fallthru
      _
    %5885 = vsyncpa [#allocation4], 1
    %5886 = vsyncpa [#allocation6], 1

</llo_original>
